<compile_context>
chip_gen: v6e
topology: v6e:2x2x1
jax: 0.10.0
libtpu: 0.0.40
codegen_flags: <defaults>
</compile_context>

<pallas_src>
import functools

import jax
import jax.numpy as jnp
from jax.experimental import pallas as pl
from jax.experimental.pallas import tpu as pltpu

KERNEL_SIZE = 4
PADDING = 1
STRIDE = 2
NEGATIVE_SLOPE = 0.2
BN_EPS = 1e-5

_VMEM_LIMIT = 32 * 1024 * 1024  # safe on v5e/v6e (128 MiB) and v7x (64 MiB)


def _round_up(x, m):
    return ((x + m - 1) // m) * m


def _k_tiling(K, max_tk=1024):
    """Pick tk (multiple of 128, <= max_tk) so k_pad is (nearly) round_up(K,128)."""
    k128 = _round_up(max(K, 1), 128)
    u = k128 // 128
    n_k = -(-u // (max_tk // 128))          # ceil
    tk = (-(-u // n_k)) * 128               # ceil(u / n_k) * 128
    return tk, tk * n_k


def _divisor_tile(total, unit, cap):
    """Largest multiple of `unit` dividing `total`, capped at `cap`."""
    t = min(cap, total)
    t -= t % unit
    while t > unit and total % t != 0:
        t -= unit
    return max(t, unit)


# ----------------------------- Pallas kernels ------------------------------

def _conv_matmul_kernel(a_ref, w_ref, y_ref, *rest, act, slope, with_stats):
    """Tiled matmul with f32 accumulator, fused activation and (optionally)
    fused per-(M-tile, C-tile) partial sum / sum-of-squares for BatchNorm."""
    if with_stats:
        stats_ref, acc_ref = rest
    else:
        (acc_ref,) = rest

    # Grid queries only at the top level of the kernel body.
    k = pl.program_id(2)
    nk = pl.num_programs(2)

    @pl.when(k == 0)
    def _init():
        acc_ref[...] = jnp.zeros_like(acc_ref)

    # bf16 x bf16 -> f32 accumulate on the MXU.
    acc_ref[...] += jnp.dot(a_ref[...], w_ref[...],
                            preferred_element_type=jnp.float32)

    @pl.when(k == nk - 1)
    def _finalize():
        y = acc_ref[...]                      # f32 accumulator
        if with_stats:
            # Partial stats from the f32 accumulator, before the bf16 cast.
            # Padded to 8 sublanes so the store is unmasked.
            s = jnp.sum(y, axis=0, keepdims=True)
            ss = jnp.sum(y * y, axis=0, keepdims=True)
            pad = jnp.zeros((6, y.shape[1]), jnp.float32)
            stats_ref[...] = jnp.concatenate([s, ss, pad], axis=0)
        if act == "leaky" and slope != 1.0:
            y = jnp.where(y >= 0, y, slope * y)
        elif act == "tanh":
            y = jnp.tanh(y)
        y_ref[...] = y.astype(y_ref.dtype)


def _bn_act_kernel(y_ref, stats_ref, o_ref, *, inv_count, slope, eps):
    """Training-mode BatchNorm2d (gamma=1, beta=0 elided) + LeakyReLU.
    bf16 in/out, all statistics math in f32."""
    mean = stats_ref[0:1, :] * inv_count                 # (1, tn)
    var = stats_ref[1:2, :] * inv_count - mean * mean    # biased variance
    var = jnp.maximum(var, 0.0)                          # cancellation guard
    scale = jax.lax.rsqrt(var + eps)
    y = (y_ref[...].astype(jnp.float32) - mean) * scale
    if slope != 1.0:   # nn.LeakyReLU(True) -> slope 1.0 -> identity, skip
        y = jnp.where(y >= 0, y, slope * y)
    o_ref[...] = y.astype(o_ref.dtype)


# ----------------------------- Pallas wrappers ------------------------------

def conv_matmul(a, w_pad, *, tk, tn, act="none", slope=0.0, with_stats=False):
    """a: (M, K) bf16 im2col patches; w_pad: (k_pad, c_pad) bf16 pre-padded
    filter matrix.  Returns y_pad (m_pad, c_pad) bf16 and, if requested,
    per-M-tile partial stats (n_m*8, c_pad) f32 (rows 0/1 of each 8-row group
    hold sum / sum-of-squares of the pre-activation output)."""
    M, K = a.shape
    k_pad, c_pad = w_pad.shape

    tm = min(512, _round_up(M, 8))
    m_pad = _round_up(M, tm)
    if M != m_pad or K != k_pad:
        a = jnp.pad(a, ((0, m_pad - M), (0, k_pad - K)))

    n_n, n_m, n_k = c_pad // tn, m_pad // tm, k_pad // tk

    kernel = functools.partial(_conv_matmul_kernel, act=act, slope=slope,
                               with_stats=with_stats)

    out_shape = [jax.ShapeDtypeStruct((m_pad, c_pad), jnp.bfloat16)]
    out_specs = [pl.BlockSpec((tm, tn), lambda j, i, k: (i, j))]
    if with_stats:
        out_shape.append(jax.ShapeDtypeStruct((n_m * 8, c_pad), jnp.float32))
        out_specs.append(pl.BlockSpec((8, tn), lambda j, i, k: (i, j)))

    res = pl.pallas_call(
        kernel,
        grid=(n_n, n_m, n_k),
        in_specs=[
            pl.BlockSpec((tm, tk), lambda j, i, k: (i, k)),
            pl.BlockSpec((tk, tn), lambda j, i, k: (k, j)),
        ],
        out_specs=out_specs,
        out_shape=out_shape,
        scratch_shapes=[pltpu.VMEM((tm, tn), jnp.float32)],
        compiler_params=pltpu.CompilerParams(
            dimension_semantics=("parallel", "parallel", "arbitrary"),
            vmem_limit_bytes=_VMEM_LIMIT),
    )(a, w_pad)

    if with_stats:
        return res[0], res[1]
    return res[0]


def bn_apply(y_pad, stats_partial, count, slope):
    """Normalize y_pad (m_pad, c_pad) bf16 with per-tile partial (sum, sumsq)
    stats and apply LeakyReLU.  `count` = true N*Ho*Wo elements per channel."""
    m_pad, c_pad = y_pad.shape
    # Reduce per-M-tile partials -> (8, c_pad); rows 0/1 carry sum / sumsq.
    stats = stats_partial.reshape(-1, 8, c_pad).sum(axis=0)

    tm = _divisor_tile(m_pad, 8, 1024)
    kernel = functools.partial(_bn_act_kernel, inv_count=1.0 / float(count),
                               slope=slope, eps=BN_EPS)
    return pl.pallas_call(
        kernel,
        grid=(m_pad // tm,),
        in_specs=[
            pl.BlockSpec((tm, c_pad), lambda i: (i, 0)),
            pl.BlockSpec((8, c_pad), lambda i: (0, 0)),
        ],
        out_specs=pl.BlockSpec((tm, c_pad), lambda i: (i, 0)),
        out_shape=jax.ShapeDtypeStruct((m_pad, c_pad), jnp.bfloat16),
        compiler_params=pltpu.CompilerParams(
            dimension_semantics=("parallel",),
            vmem_limit_bytes=_VMEM_LIMIT),
    )(y_pad, stats)


# ------------------------------ JAX glue ------------------------------------

def im2col_nhwc(x, KH, KW, stride, pad):
    """x: (N, H, W, C) -> patches (N*Ho*Wo, KH*KW*C), plus (N, Ho, Wo)."""
    N, H, W, C = x.shape
    xp = jnp.pad(x, ((0, 0), (pad, pad), (pad, pad), (0, 0)))
    Ho = (H + 2 * pad - KH) // stride + 1
    Wo = (W + 2 * pad - KW) // stride + 1
    cols = []
    for kh in range(KH):
        for kw in range(KW):
            cols.append(xp[:, kh:kh + stride * (Ho - 1) + 1:stride,
                           kw:kw + stride * (Wo - 1) + 1:stride, :])
    patches = jnp.stack(cols, axis=3)          # (N, Ho, Wo, KH*KW, C)
    return patches.reshape(N * Ho * Wo, KH * KW * C), N, Ho, Wo


def dilate_nhwc(x, s):
    if s == 1:
        return x
    N, H, W, C = x.shape
    out = jnp.zeros((N, (H - 1) * s + 1, (W - 1) * s + 1, C), x.dtype)
    return out.at[:, ::s, ::s, :].set(x)


def apply_layers(x, layers):
    """Run a list of conv / convT layer dicts on NHWC bf16 input x."""
    for lyr in layers:
        if lyr["kind"] == "conv":
            a, N, Ho, Wo = im2col_nhwc(x, lyr["KH"], lyr["KW"],
                                       lyr["stride"], lyr["pad"])
        else:  # "convt": stride-1 conv on zero-dilated, (k-1-p)-padded input
            xd = dilate_nhwc(x, lyr["stride"])
            a, N, Ho, Wo = im2col_nhwc(xd, lyr["KH"], lyr["KW"], 1,
                                       lyr["KH"] - 1 - lyr["pad"])

        M = N * Ho * Wo
        if lyr["bn"]:
            y_pad, stats = conv_matmul(a, lyr["wmat"], tk=lyr["tk"],
                                       tn=lyr["tn"], act="none",
                                       with_stats=True)
            y_pad = bn_apply(y_pad, stats, M, lyr["slope"])
        else:
            y_pad = conv_matmul(a, lyr["wmat"], tk=lyr["tk"], tn=lyr["tn"],
                                act=lyr["act"], slope=lyr["slope"])

        Cout = lyr["Cout"]
        x = y_pad[:M, :Cout].reshape(N, Ho, Wo, Cout)
    return x


# --------------------------- parameter construction -------------------------

def _winit(key, shape, fan_in):
    # deterministic kaiming-normal-style init (std = sqrt(2/fan_in))
    return jax.random.normal(key, shape, jnp.float32) * (2.0 / fan_in) ** 0.5


def _make_layer(kind, w, stride, pad, bn, act, slope):
    """Build-time weight re-layout: (K_pad, C_pad) bf16 matrix + tiling plan."""
    if kind == "conv":                       # Conv2d weight (Cout, Cin, KH, KW)
        Cout, Cin, KH, KW = w.shape
        wmat = w.transpose(2, 3, 1, 0).reshape(KH * KW * Cin, Cout)
    else:                                    # ConvT weight (Cin, Cout, KH, KW)
        Cin, Cout, KH, KW = w.shape
        wmat = jnp.flip(w, axis=(2, 3)).transpose(2, 3, 0, 1).reshape(
            KH * KW * Cin, Cout)
    K = KH * KW * Cin
    tk, k_pad = _k_tiling(K)
    c_pad = _round_up(Cout, 128)
    tn = 256 if (c_pad >= 256 and c_pad % 256 == 0) else 128
    wmat_pad = jnp.pad(wmat, ((0, k_pad - K), (0, c_pad - Cout))
                       ).astype(jnp.bfloat16)
    return dict(kind=kind, wmat=wmat_pad, KH=KH, KW=KW, Cout=Cout,
                stride=stride, pad=pad, bn=bn, act=act, slope=slope,
                tk=tk, tn=tn)


def build_encoder_layers(opt, key, z_size=None):
    img_size = opt["img_size"]
    z_size = opt["z_size"] if z_size is None else z_size
    in_channels = opt["in_channels"]
    out_channels = opt["out_channels"]
    n_extra = opt["n_extra_layers"]
    assert img_size % 16 == 0
    ki = iter(list(jax.random.split(key, 64)))
    layers = []
    # Initial Conv + LeakyReLU(0.2)
    shp = (out_channels, in_channels, KERNEL_SIZE, KERNEL_SIZE)
    layers.append(_make_layer("conv", _winit(next(ki), shp, shp[1] * 16),
                              STRIDE, PADDING, False, "leaky", NEGATIVE_SLOPE))
    conv_img_size = img_size // 2
    # Extra layers: Conv + BN + LeakyReLU(0.2)
    for _ in range(n_extra):
        shp = (out_channels, out_channels, 3, 3)
        layers.append(_make_layer("conv", _winit(next(ki), shp, shp[1] * 9),
                                  1, PADDING, True, "leaky", NEGATIVE_SLOPE))
    # Pyramid: Conv + BN + LeakyReLU(0.2)
    while conv_img_size > 4:
        in_c, out_channels = out_channels, out_channels * 2
        shp = (out_channels, in_c, KERNEL_SIZE, KERNEL_SIZE)
        layers.append(_make_layer("conv", _winit(next(ki), shp, shp[1] * 16),
                                  STRIDE, PADDING, True, "leaky",
                                  NEGATIVE_SLOPE))
        conv_img_size //= 2
    # Final Conv (no activation)
    shp = (z_size, out_channels, KERNEL_SIZE, KERNEL_SIZE)
    layers.append(_make_layer("conv", _winit(next(ki), shp, shp[1] * 16),
                              1, 0, False, "none", 0.0))
    return layers


def build_decoder_layers(opt, key):
    img_size = opt["img_size"]
    z_size = opt["z_size"]
    out_enc = opt["in_channels"]
    out_channels = opt["out_channels"]
    n_extra = opt["n_extra_layers"]
    assert img_size % 16 == 0
    ki = iter(list(jax.random.split(key, 64)))
    layers = []
    conv_img_size = 4
    out_channels = out_channels // 2
    while conv_img_size != img_size:
        conv_img_size *= 2
        out_channels *= 2
    # Initial ConvT + BN + LeakyReLU(True) -> slope 1.0 (identity) [PyTorch quirk]
    shp = (z_size, out_channels, KERNEL_SIZE, KERNEL_SIZE)
    layers.append(_make_layer("convt", _winit(next(ki), shp, shp[0] * 16),
                              1, 0, True, "leaky", 1.0))
    conv_img_size = 4
    while conv_img_size < img_size // 2:
        in_c, out_channels = out_channels, out_channels // 2
        shp = (in_c, out_channels, KERNEL_SIZE, KERNEL_SIZE)
        layers.append(_make_layer("convt", _winit(next(ki), shp, shp[0] * 16),
                                  STRIDE, PADDING, True, "leaky", 1.0))
        conv_img_size *= 2
    for _ in range(n_extra):
        shp = (out_channels, out_channels, 3, 3)
        layers.append(_make_layer("convt", _winit(next(ki), shp, shp[0] * 9),
                                  1, PADDING, True, "leaky", 1.0))
    # Final ConvT + Tanh
    shp = (out_channels, out_enc, KERNEL_SIZE, KERNEL_SIZE)
    layers.append(_make_layer("convt", _winit(next(ki), shp, shp[0] * 16),
                              STRIDE, PADDING, False, "tanh", 0.0))
    return layers


def generator_forward(x_nchw, enc1_layers, dec_layers, enc2_layers):
    # NCHW <-> NHWC conversion and bf16 cast only at network entry/exit.
    x = x_nchw.transpose(0, 2, 3, 1).astype(jnp.bfloat16)
    z = apply_layers(x, enc1_layers)            # (N, 1, 1, z_size)
    x_prime = apply_layers(z, dec_layers)       # (N, img, img, in_channels)
    z_prime = apply_layers(x_prime, enc2_layers)
    to_nchw = lambda t: t.transpose(0, 3, 1, 2).astype(jnp.float32)
    return to_nchw(x_prime), to_nchw(z), to_nchw(z_prime)


# ----------------------------------- main -----------------------------------

if __name__ == "__main__":
    opt = dict(img_size=16, z_size=8, in_channels=4, out_channels=16,
               n_extra_layers=0)
    batch = 2

    root = jax.random.PRNGKey(0)
    k_x, k_e1, k_d, k_e2 = jax.random.split(root, 4)

    x = jax.random.normal(k_x, (batch, opt["in_channels"],
                                opt["img_size"], opt["img_size"]), jnp.float32)

    enc1 = build_encoder_layers(opt, k_e1)
    dec = build_decoder_layers(opt, k_d)
    enc2 = build_encoder_layers(opt, k_e2)

    # Single compiled executable; pre-baked (padded, bf16) weight matrices are
    # closed-over constants.
    forward = jax.jit(lambda inp: generator_forward(inp, enc1, dec, enc2))

    x_prime, z, z_prime = forward(x)
    jax.block_until_ready((x_prime, z, z_prime))

    assert z.shape == (batch, opt["z_size"], 1, 1), z.shape
    assert x_prime.shape == (batch, opt["in_channels"],
                             opt["img_size"], opt["img_size"]), x_prime.shape
    assert z_prime.shape == (batch, opt["z_size"], 1, 1), z_prime.shape
    assert bool(jnp.all(jnp.abs(x_prime) <= 1.0))   # tanh output range
    assert bool(jnp.all(jnp.isfinite(x_prime)))
    assert bool(jnp.all(jnp.isfinite(z_prime)))

    print("KERNEL_OK")
</pallas_src>

<mosaic_0001>
module attributes {stable_mosaic.version = 11 : i64} {
  func.func @_conv_matmul_kernel(%arg0: i32, %arg1: i32, %arg2: i32, %arg3: memref<128x128xbf16, #tpu.memory_space<vmem>>, %arg4: memref<128x128xbf16, #tpu.memory_space<vmem>>, %arg5: memref<128x128xbf16, #tpu.memory_space<vmem>>, %arg6: memref<128x128xf32, #tpu.memory_space<vmem>>) attributes {dimension_semantics = [#tpu.dimension_semantics<parallel>, #tpu.dimension_semantics<parallel>, #tpu.dimension_semantics<arbitrary>], iteration_bounds = array<i64: 1, 1, 1>, scalar_prefetch = 0 : i64, scratch_operands = 1 : i64, tpu.core_type = #tpu.core_type<tc>, window_params = [{transform_indices = @transform_0, window_bounds = array<i64: 128, 128>}, {transform_indices = @transform_1, window_bounds = array<i64: 128, 128>}, {transform_indices = @transform_2, window_bounds = array<i64: 128, 128>}]} {
    %c0_i32 = arith.constant 0 : i32
    %0 = arith.cmpi eq, %arg2, %c0_i32 : i32
    %1 = arith.extui %0 : i1 to i32
    %c0_i32_0 = arith.constant 0 : i32
    %2 = arith.cmpi ne, %1, %c0_i32_0 : i32
    scf.if %2 {
      %cst_10 = arith.constant 0.000000e+00 : f32
      %12 = vector.broadcast %cst_10 : f32 to vector<128x128xf32>
      %c0_11 = arith.constant 0 : index
      %c0_12 = arith.constant 0 : index
      %13 = vector.load %arg6[%c0_11, %c0_12] : memref<128x128xf32, #tpu.memory_space<vmem>>, vector<128x128xf32>
      tpu.vector_store %arg6[%c0_11, %c0_12], %12 {strides = array<i32>} : memref<128x128xf32, #tpu.memory_space<vmem>>, vector<128x128xf32>,
    } else {
    }
    %c0 = arith.constant 0 : index
    %c0_1 = arith.constant 0 : index
    %3 = vector.load %arg6[%c0, %c0_1] : memref<128x128xf32, #tpu.memory_space<vmem>>, vector<128x128xf32>
    %c0_2 = arith.constant 0 : index
    %c0_3 = arith.constant 0 : index
    %4 = vector.load %arg3[%c0_2, %c0_3] : memref<128x128xbf16, #tpu.memory_space<vmem>>, vector<128x128xbf16>
    %c0_4 = arith.constant 0 : index
    %c0_5 = arith.constant 0 : index
    %5 = vector.load %arg4[%c0_4, %c0_5] : memref<128x128xbf16, #tpu.memory_space<vmem>>, vector<128x128xbf16>
    %cst = arith.constant dense<0.000000e+00> : vector<128x128xf32>
    %6 = tpu.matmul %4, %5, %cst {dimension_numbers = #tpu.dot_dimension_numbers<[1], [0], [0], [1], [0, 0, 1, 1], [], []>} : vector<128x128xbf16>, vector<128x128xbf16>, vector<128x128xf32> -> vector<128x128xf32>
    %7 = arith.addf %3, %6 : vector<128x128xf32>
    %c0_6 = arith.constant 0 : index
    %c0_7 = arith.constant 0 : index
    %8 = vector.load %arg6[%c0_6, %c0_7] : memref<128x128xf32, #tpu.memory_space<vmem>>, vector<128x128xf32>
    tpu.vector_store %arg6[%c0_6, %c0_7], %7 {strides = array<i32>} : memref<128x128xf32, #tpu.memory_space<vmem>>, vector<128x128xf32>,
    %c0_i32_8 = arith.constant 0 : i32
    %9 = arith.cmpi eq, %arg2, %c0_i32_8 : i32
    %10 = arith.extui %9 : i1 to i32
    %c0_i32_9 = arith.constant 0 : i32
    %11 = arith.cmpi ne, %10, %c0_i32_9 : i32
    scf.if %11 {
      %c0_10 = arith.constant 0 : index
      %c0_11 = arith.constant 0 : index
      %12 = vector.load %arg6[%c0_10, %c0_11] : memref<128x128xf32, #tpu.memory_space<vmem>>, vector<128x128xf32>
      %cst_12 = arith.constant 0.000000e+00 : f32
      %13 = vector.broadcast %cst_12 : f32 to vector<128x128xf32>
      %14 = arith.cmpf oge, %12, %13 : vector<128x128xf32>
      %cst_13 = arith.constant 2.000000e-01 : f32
      %15 = vector.broadcast %cst_13 : f32 to vector<128x128xf32>
      %16 = arith.mulf %15, %12 : vector<128x128xf32>
      %17 = arith.select %14, %12, %16 : vector<128x128xi1>, vector<128x128xf32>
      %18 = arith.truncf %17 : vector<128x128xf32> to vector<128x128xbf16>
      %c0_14 = arith.constant 0 : index
      %c0_15 = arith.constant 0 : index
      %19 = vector.load %arg5[%c0_14, %c0_15] : memref<128x128xbf16, #tpu.memory_space<vmem>>, vector<128x128xbf16>
      tpu.vector_store %arg5[%c0_14, %c0_15], %18 {strides = array<i32>} : memref<128x128xbf16, #tpu.memory_space<vmem>>, vector<128x128xbf16>,
    } else {
    }
    return
  }
  func.func @transform_0(%arg0: i32, %arg1: i32, %arg2: i32) -> (i32, i32) {
    %c0_i32 = arith.constant 0 : i32
    return %arg1, %arg2 : i32, i32
  }
  func.func @transform_1(%arg0: i32, %arg1: i32, %arg2: i32) -> (i32, i32) {
    %c0_i32 = arith.constant 0 : i32
    return %arg2, %arg0 : i32, i32
  }
  func.func @transform_2(%arg0: i32, %arg1: i32, %arg2: i32) -> (i32, i32) {
    %c0_i32 = arith.constant 0 : i32
    return %arg1, %arg0 : i32, i32
  }
}

module attributes {stable_mosaic.version = 11 : i64} {
  func.func @_bn_act_kernel(%arg0: i32, %arg1: memref<32x128xbf16, #tpu.memory_space<vmem>>, %arg2: memref<8x128xf32, #tpu.memory_space<vmem>>, %arg3: memref<32x128xbf16, #tpu.memory_space<vmem>>) attributes {dimension_semantics = [#tpu.dimension_semantics<parallel>], iteration_bounds = array<i64: 1>, scalar_prefetch = 0 : i64, scratch_operands = 0 : i64, tpu.core_type = #tpu.core_type<tc>, window_params = [{transform_indices = @transform_0, window_bounds = array<i64: 32, 128>}, {pipeline_mode = #tpu.pipeline_mode<synchronous>, transform_indices = @transform_1, window_bounds = array<i64: 8, 128>}, {transform_indices = @transform_2, window_bounds = array<i64: 32, 128>}]} {
    %c0 = arith.constant 0 : index
    %c0_0 = arith.constant 0 : index
    %0 = vector.load %arg2[%c0, %c0_0] : memref<8x128xf32, #tpu.memory_space<vmem>>, vector<1x128xf32>
    %cst = arith.constant 3.125000e-02 : f32
    %1 = vector.broadcast %cst : f32 to vector<1x128xf32>
    %2 = arith.mulf %0, %1 : vector<1x128xf32>
    %c1 = arith.constant 1 : index
    %c0_1 = arith.constant 0 : index
    %3 = vector.load %arg2[%c1, %c0_1] : memref<8x128xf32, #tpu.memory_space<vmem>>, vector<1x128xf32>
    %cst_2 = arith.constant 3.125000e-02 : f32
    %4 = vector.broadcast %cst_2 : f32 to vector<1x128xf32>
    %5 = arith.mulf %3, %4 : vector<1x128xf32>
    %6 = arith.mulf %2, %2 : vector<1x128xf32>
    %7 = arith.subf %5, %6 : vector<1x128xf32>
    %cst_3 = arith.constant 0.000000e+00 : f32
    %8 = vector.broadcast %cst_3 : f32 to vector<1x128xf32>
    %9 = arith.maximumf %7, %8 : vector<1x128xf32>
    %cst_4 = arith.constant 9.99999974E-6 : f32
    %10 = vector.broadcast %cst_4 : f32 to vector<1x128xf32>
    %11 = arith.addf %9, %10 : vector<1x128xf32>
    %12 = math.rsqrt %11 : vector<1x128xf32>
    %c0_5 = arith.constant 0 : index
    %c0_6 = arith.constant 0 : index
    %13 = vector.load %arg1[%c0_5, %c0_6] : memref<32x128xbf16, #tpu.memory_space<vmem>>, vector<32x128xbf16>
    %14 = arith.extf %13 : vector<32x128xbf16> to vector<32x128xf32>
    %15 = vector.broadcast %2 : vector<1x128xf32> to vector<32x128xf32>
    %16 = arith.subf %14, %15 : vector<32x128xf32>
    %17 = vector.broadcast %12 : vector<1x128xf32> to vector<32x128xf32>
    %18 = arith.mulf %16, %17 : vector<32x128xf32>
    %cst_7 = arith.constant 0.000000e+00 : f32
    %19 = vector.broadcast %cst_7 : f32 to vector<32x128xf32>
    %20 = arith.cmpf oge, %18, %19 : vector<32x128xf32>
    %cst_8 = arith.constant 2.000000e-01 : f32
    %21 = vector.broadcast %cst_8 : f32 to vector<32x128xf32>
    %22 = arith.mulf %21, %18 : vector<32x128xf32>
    %23 = arith.select %20, %18, %22 : vector<32x128xi1>, vector<32x128xf32>
    %24 = arith.truncf %23 : vector<32x128xf32> to vector<32x128xbf16>
    %c0_9 = arith.constant 0 : index
    %c0_10 = arith.constant 0 : index
    %25 = vector.load %arg3[%c0_9, %c0_10] : memref<32x128xbf16, #tpu.memory_space<vmem>>, vector<32x128xbf16>
    tpu.vector_store %arg3[%c0_9, %c0_10], %24 {strides = array<i32>} : memref<32x128xbf16, #tpu.memory_space<vmem>>, vector<32x128xbf16>,
    return
  }
  func.func @transform_0(%arg0: i32) -> (i32, i32) {
    %c0_i32 = arith.constant 0 : i32
    %c0_i32_0 = arith.constant 0 : i32
    return %arg0, %c0_i32 : i32, i32
  }
  func.func @transform_1(%arg0: i32) -> (i32, i32) {
    %c0_i32 = arith.constant 0 : i32
    %c0_i32_0 = arith.constant 0 : i32
    %c0_i32_1 = arith.constant 0 : i32
    return %c0_i32, %c0_i32_0 : i32, i32
  }
  func.func @transform_2(%arg0: i32) -> (i32, i32) {
    %c0_i32 = arith.constant 0 : i32
    %c0_i32_0 = arith.constant 0 : i32
    return %arg0, %c0_i32 : i32, i32
  }
}

module attributes {stable_mosaic.version = 11 : i64} {
  func.func @_conv_matmul_kernel(%arg0: i32, %arg1: i32, %arg2: i32, %arg3: memref<32x256xbf16, #tpu.memory_space<vmem>>, %arg4: memref<256x128xbf16, #tpu.memory_space<vmem>>, %arg5: memref<32x128xbf16, #tpu.memory_space<vmem>>, %arg6: memref<8x128xf32, #tpu.memory_space<vmem>>, %arg7: memref<32x128xf32, #tpu.memory_space<vmem>>) attributes {dimension_semantics = [#tpu.dimension_semantics<parallel>, #tpu.dimension_semantics<parallel>, #tpu.dimension_semantics<arbitrary>], iteration_bounds = array<i64: 1, 1, 1>, scalar_prefetch = 0 : i64, scratch_operands = 1 : i64, tpu.core_type = #tpu.core_type<tc>, window_params = [{transform_indices = @transform_0, window_bounds = array<i64: 32, 256>}, {transform_indices = @transform_1, window_bounds = array<i64: 256, 128>}, {transform_indices = @transform_2, window_bounds = array<i64: 32, 128>}, {transform_indices = @transform_3, window_bounds = array<i64: 8, 128>}]} {
    %c0_i32 = arith.constant 0 : i32
    %0 = arith.cmpi eq, %arg2, %c0_i32 : i32
    %1 = arith.extui %0 : i1 to i32
    %c0_i32_0 = arith.constant 0 : i32
    %2 = arith.cmpi ne, %1, %c0_i32_0 : i32
    scf.if %2 {
      %cst_10 = arith.constant 0.000000e+00 : f32
      %12 = vector.broadcast %cst_10 : f32 to vector<32x128xf32>
      %c0_11 = arith.constant 0 : index
      %c0_12 = arith.constant 0 : index
      %13 = vector.load %arg7[%c0_11, %c0_12] : memref<32x128xf32, #tpu.memory_space<vmem>>, vector<32x128xf32>
      tpu.vector_store %arg7[%c0_11, %c0_12], %12 {strides = array<i32>} : memref<32x128xf32, #tpu.memory_space<vmem>>, vector<32x128xf32>,
    } else {
    }
    %c0 = arith.constant 0 : index
    %c0_1 = arith.constant 0 : index
    %3 = vector.load %arg7[%c0, %c0_1] : memref<32x128xf32, #tpu.memory_space<vmem>>, vector<32x128xf32>
    %c0_2 = arith.constant 0 : index
    %c0_3 = arith.constant 0 : index
    %4 = vector.load %arg3[%c0_2, %c0_3] : memref<32x256xbf16, #tpu.memory_space<vmem>>, vector<32x256xbf16>
    %c0_4 = arith.constant 0 : index
    %c0_5 = arith.constant 0 : index
    %5 = vector.load %arg4[%c0_4, %c0_5] : memref<256x128xbf16, #tpu.memory_space<vmem>>, vector<256x128xbf16>
    %cst = arith.constant dense<0.000000e+00> : vector<32x128xf32>
    %6 = tpu.matmul %4, %5, %cst {dimension_numbers = #tpu.dot_dimension_numbers<[1], [0], [0], [1], [0, 0, 1, 1], [], []>} : vector<32x256xbf16>, vector<256x128xbf16>, vector<32x128xf32> -> vector<32x128xf32>
    %7 = arith.addf %3, %6 : vector<32x128xf32>
    %c0_6 = arith.constant 0 : index
    %c0_7 = arith.constant 0 : index
    %8 = vector.load %arg7[%c0_6, %c0_7] : memref<32x128xf32, #tpu.memory_space<vmem>>, vector<32x128xf32>
    tpu.vector_store %arg7[%c0_6, %c0_7], %7 {strides = array<i32>} : memref<32x128xf32, #tpu.memory_space<vmem>>, vector<32x128xf32>,
    %c0_i32_8 = arith.constant 0 : i32
    %9 = arith.cmpi eq, %arg2, %c0_i32_8 : i32
    %10 = arith.extui %9 : i1 to i32
    %c0_i32_9 = arith.constant 0 : i32
    %11 = arith.cmpi ne, %10, %c0_i32_9 : i32
    scf.if %11 {
      %c0_10 = arith.constant 0 : index
      %c0_11 = arith.constant 0 : index
      %12 = vector.load %arg7[%c0_10, %c0_11] : memref<32x128xf32, #tpu.memory_space<vmem>>, vector<32x128xf32>
      %cst_12 = arith.constant dense<0.000000e+00> : vector<128xf32>
      %13 = vector.multi_reduction <add>, %12, %cst_12 [0] : vector<32x128xf32> to vector<128xf32>
      %14 = vector.shape_cast %13 : vector<128xf32> to vector<1x128xf32>
      %15 = arith.mulf %12, %12 : vector<32x128xf32>
      %cst_13 = arith.constant dense<0.000000e+00> : vector<128xf32>
      %16 = vector.multi_reduction <add>, %15, %cst_13 [0] : vector<32x128xf32> to vector<128xf32>
      %17 = vector.shape_cast %16 : vector<128xf32> to vector<1x128xf32>
      %cst_14 = arith.constant 0.000000e+00 : f32
      %18 = vector.broadcast %cst_14 : f32 to vector<6x128xf32>
      %19 = tpu.concatenate %14, %17, %18 in 0 : vector<1x128xf32>, vector<1x128xf32>, vector<6x128xf32> -> vector<8x128xf32>
      %c0_15 = arith.constant 0 : index
      %c0_16 = arith.constant 0 : index
      %20 = vector.load %arg6[%c0_15, %c0_16] : memref<8x128xf32, #tpu.memory_space<vmem>>, vector<8x128xf32>
      tpu.vector_store %arg6[%c0_15, %c0_16], %19 {strides = array<i32>} : memref<8x128xf32, #tpu.memory_space<vmem>>, vector<8x128xf32>,
      %21 = arith.truncf %12 : vector<32x128xf32> to vector<32x128xbf16>
      %c0_17 = arith.constant 0 : index
      %c0_18 = arith.constant 0 : index
      %22 = vector.load %arg5[%c0_17, %c0_18] : memref<32x128xbf16, #tpu.memory_space<vmem>>, vector<32x128xbf16>
      tpu.vector_store %arg5[%c0_17, %c0_18], %21 {strides = array<i32>} : memref<32x128xbf16, #tpu.memory_space<vmem>>, vector<32x128xbf16>,
    } else {
    }
    return
  }
  func.func @transform_0(%arg0: i32, %arg1: i32, %arg2: i32) -> (i32, i32) {
    %c0_i32 = arith.constant 0 : i32
    return %arg1, %arg2 : i32, i32
  }
  func.func @transform_1(%arg0: i32, %arg1: i32, %arg2: i32) -> (i32, i32) {
    %c0_i32 = arith.constant 0 : i32
    return %arg2, %arg0 : i32, i32
  }
  func.func @transform_2(%arg0: i32, %arg1: i32, %arg2: i32) -> (i32, i32) {
    %c0_i32 = arith.constant 0 : i32
    return %arg1, %arg0 : i32, i32
  }
  func.func @transform_3(%arg0: i32, %arg1: i32, %arg2: i32) -> (i32, i32) {
    %c0_i32 = arith.constant 0 : i32
    return %arg1, %arg0 : i32, i32
  }
}

module attributes {stable_mosaic.version = 11 : i64} {
  func.func @_conv_matmul_kernel(%arg0: i32, %arg1: i32, %arg2: i32, %arg3: memref<8x512xbf16, #tpu.memory_space<vmem>>, %arg4: memref<512x128xbf16, #tpu.memory_space<vmem>>, %arg5: memref<8x128xbf16, #tpu.memory_space<vmem>>, %arg6: memref<8x128xf32, #tpu.memory_space<vmem>>) attributes {dimension_semantics = [#tpu.dimension_semantics<parallel>, #tpu.dimension_semantics<parallel>, #tpu.dimension_semantics<arbitrary>], iteration_bounds = array<i64: 1, 1, 1>, scalar_prefetch = 0 : i64, scratch_operands = 1 : i64, tpu.core_type = #tpu.core_type<tc>, window_params = [{transform_indices = @transform_0, window_bounds = array<i64: 8, 512>}, {transform_indices = @transform_1, window_bounds = array<i64: 512, 128>}, {transform_indices = @transform_2, window_bounds = array<i64: 8, 128>}]} {
    %c0_i32 = arith.constant 0 : i32
    %0 = arith.cmpi eq, %arg2, %c0_i32 : i32
    %1 = arith.extui %0 : i1 to i32
    %c0_i32_0 = arith.constant 0 : i32
    %2 = arith.cmpi ne, %1, %c0_i32_0 : i32
    scf.if %2 {
      %cst_10 = arith.constant 0.000000e+00 : f32
      %12 = vector.broadcast %cst_10 : f32 to vector<8x128xf32>
      %c0_11 = arith.constant 0 : index
      %c0_12 = arith.constant 0 : index
      %13 = vector.load %arg6[%c0_11, %c0_12] : memref<8x128xf32, #tpu.memory_space<vmem>>, vector<8x128xf32>
      tpu.vector_store %arg6[%c0_11, %c0_12], %12 {strides = array<i32>} : memref<8x128xf32, #tpu.memory_space<vmem>>, vector<8x128xf32>,
    } else {
    }
    %c0 = arith.constant 0 : index
    %c0_1 = arith.constant 0 : index
    %3 = vector.load %arg6[%c0, %c0_1] : memref<8x128xf32, #tpu.memory_space<vmem>>, vector<8x128xf32>
    %c0_2 = arith.constant 0 : index
    %c0_3 = arith.constant 0 : index
    %4 = vector.load %arg3[%c0_2, %c0_3] : memref<8x512xbf16, #tpu.memory_space<vmem>>, vector<8x512xbf16>
    %c0_4 = arith.constant 0 : index
    %c0_5 = arith.constant 0 : index
    %5 = vector.load %arg4[%c0_4, %c0_5] : memref<512x128xbf16, #tpu.memory_space<vmem>>, vector<512x128xbf16>
    %cst = arith.constant dense<0.000000e+00> : vector<8x128xf32>
    %6 = tpu.matmul %4, %5, %cst {dimension_numbers = #tpu.dot_dimension_numbers<[1], [0], [0], [1], [0, 0, 1, 1], [], []>} : vector<8x512xbf16>, vector<512x128xbf16>, vector<8x128xf32> -> vector<8x128xf32>
    %7 = arith.addf %3, %6 : vector<8x128xf32>
    %c0_6 = arith.constant 0 : index
    %c0_7 = arith.constant 0 : index
    %8 = vector.load %arg6[%c0_6, %c0_7] : memref<8x128xf32, #tpu.memory_space<vmem>>, vector<8x128xf32>
    tpu.vector_store %arg6[%c0_6, %c0_7], %7 {strides = array<i32>} : memref<8x128xf32, #tpu.memory_space<vmem>>, vector<8x128xf32>,
    %c0_i32_8 = arith.constant 0 : i32
    %9 = arith.cmpi eq, %arg2, %c0_i32_8 : i32
    %10 = arith.extui %9 : i1 to i32
    %c0_i32_9 = arith.constant 0 : i32
    %11 = arith.cmpi ne, %10, %c0_i32_9 : i32
    scf.if %11 {
      %c0_10 = arith.constant 0 : index
      %c0_11 = arith.constant 0 : index
      %12 = vector.load %arg6[%c0_10, %c0_11] : memref<8x128xf32, #tpu.memory_space<vmem>>, vector<8x128xf32>
      %13 = arith.truncf %12 : vector<8x128xf32> to vector<8x128xbf16>
      %c0_12 = arith.constant 0 : index
      %c0_13 = arith.constant 0 : index
      %14 = vector.load %arg5[%c0_12, %c0_13] : memref<8x128xbf16, #tpu.memory_space<vmem>>, vector<8x128xbf16>
      tpu.vector_store %arg5[%c0_12, %c0_13], %13 {strides = array<i32>} : memref<8x128xbf16, #tpu.memory_space<vmem>>, vector<8x128xbf16>,
    } else {
    }
    return
  }
  func.func @transform_0(%arg0: i32, %arg1: i32, %arg2: i32) -> (i32, i32) {
    %c0_i32 = arith.constant 0 : i32
    return %arg1, %arg2 : i32, i32
  }
  func.func @transform_1(%arg0: i32, %arg1: i32, %arg2: i32) -> (i32, i32) {
    %c0_i32 = arith.constant 0 : i32
    return %arg2, %arg0 : i32, i32
  }
  func.func @transform_2(%arg0: i32, %arg1: i32, %arg2: i32) -> (i32, i32) {
    %c0_i32 = arith.constant 0 : i32
    return %arg1, %arg0 : i32, i32
  }
}

module attributes {stable_mosaic.version = 11 : i64} {
  func.func @_conv_matmul_kernel(%arg0: i32, %arg1: i32, %arg2: i32, %arg3: memref<32x128xbf16, #tpu.memory_space<vmem>>, %arg4: memref<128x128xbf16, #tpu.memory_space<vmem>>, %arg5: memref<32x128xbf16, #tpu.memory_space<vmem>>, %arg6: memref<8x128xf32, #tpu.memory_space<vmem>>, %arg7: memref<32x128xf32, #tpu.memory_space<vmem>>) attributes {dimension_semantics = [#tpu.dimension_semantics<parallel>, #tpu.dimension_semantics<parallel>, #tpu.dimension_semantics<arbitrary>], iteration_bounds = array<i64: 1, 1, 1>, scalar_prefetch = 0 : i64, scratch_operands = 1 : i64, tpu.core_type = #tpu.core_type<tc>, window_params = [{transform_indices = @transform_0, window_bounds = array<i64: 32, 128>}, {transform_indices = @transform_1, window_bounds = array<i64: 128, 128>}, {transform_indices = @transform_2, window_bounds = array<i64: 32, 128>}, {transform_indices = @transform_3, window_bounds = array<i64: 8, 128>}]} {
    %c0_i32 = arith.constant 0 : i32
    %0 = arith.cmpi eq, %arg2, %c0_i32 : i32
    %1 = arith.extui %0 : i1 to i32
    %c0_i32_0 = arith.constant 0 : i32
    %2 = arith.cmpi ne, %1, %c0_i32_0 : i32
    scf.if %2 {
      %cst_10 = arith.constant 0.000000e+00 : f32
      %12 = vector.broadcast %cst_10 : f32 to vector<32x128xf32>
      %c0_11 = arith.constant 0 : index
      %c0_12 = arith.constant 0 : index
      %13 = vector.load %arg7[%c0_11, %c0_12] : memref<32x128xf32, #tpu.memory_space<vmem>>, vector<32x128xf32>
      tpu.vector_store %arg7[%c0_11, %c0_12], %12 {strides = array<i32>} : memref<32x128xf32, #tpu.memory_space<vmem>>, vector<32x128xf32>,
    } else {
    }
    %c0 = arith.constant 0 : index
    %c0_1 = arith.constant 0 : index
    %3 = vector.load %arg7[%c0, %c0_1] : memref<32x128xf32, #tpu.memory_space<vmem>>, vector<32x128xf32>
    %c0_2 = arith.constant 0 : index
    %c0_3 = arith.constant 0 : index
    %4 = vector.load %arg3[%c0_2, %c0_3] : memref<32x128xbf16, #tpu.memory_space<vmem>>, vector<32x128xbf16>
    %c0_4 = arith.constant 0 : index
    %c0_5 = arith.constant 0 : index
    %5 = vector.load %arg4[%c0_4, %c0_5] : memref<128x128xbf16, #tpu.memory_space<vmem>>, vector<128x128xbf16>
    %cst = arith.constant dense<0.000000e+00> : vector<32x128xf32>
    %6 = tpu.matmul %4, %5, %cst {dimension_numbers = #tpu.dot_dimension_numbers<[1], [0], [0], [1], [0, 0, 1, 1], [], []>} : vector<32x128xbf16>, vector<128x128xbf16>, vector<32x128xf32> -> vector<32x128xf32>
    %7 = arith.addf %3, %6 : vector<32x128xf32>
    %c0_6 = arith.constant 0 : index
    %c0_7 = arith.constant 0 : index
    %8 = vector.load %arg7[%c0_6, %c0_7] : memref<32x128xf32, #tpu.memory_space<vmem>>, vector<32x128xf32>
    tpu.vector_store %arg7[%c0_6, %c0_7], %7 {strides = array<i32>} : memref<32x128xf32, #tpu.memory_space<vmem>>, vector<32x128xf32>,
    %c0_i32_8 = arith.constant 0 : i32
    %9 = arith.cmpi eq, %arg2, %c0_i32_8 : i32
    %10 = arith.extui %9 : i1 to i32
    %c0_i32_9 = arith.constant 0 : i32
    %11 = arith.cmpi ne, %10, %c0_i32_9 : i32
    scf.if %11 {
      %c0_10 = arith.constant 0 : index
      %c0_11 = arith.constant 0 : index
      %12 = vector.load %arg7[%c0_10, %c0_11] : memref<32x128xf32, #tpu.memory_space<vmem>>, vector<32x128xf32>
      %cst_12 = arith.constant dense<0.000000e+00> : vector<128xf32>
      %13 = vector.multi_reduction <add>, %12, %cst_12 [0] : vector<32x128xf32> to vector<128xf32>
      %14 = vector.shape_cast %13 : vector<128xf32> to vector<1x128xf32>
      %15 = arith.mulf %12, %12 : vector<32x128xf32>
      %cst_13 = arith.constant dense<0.000000e+00> : vector<128xf32>
      %16 = vector.multi_reduction <add>, %15, %cst_13 [0] : vector<32x128xf32> to vector<128xf32>
      %17 = vector.shape_cast %16 : vector<128xf32> to vector<1x128xf32>
      %cst_14 = arith.constant 0.000000e+00 : f32
      %18 = vector.broadcast %cst_14 : f32 to vector<6x128xf32>
      %19 = tpu.concatenate %14, %17, %18 in 0 : vector<1x128xf32>, vector<1x128xf32>, vector<6x128xf32> -> vector<8x128xf32>
      %c0_15 = arith.constant 0 : index
      %c0_16 = arith.constant 0 : index
      %20 = vector.load %arg6[%c0_15, %c0_16] : memref<8x128xf32, #tpu.memory_space<vmem>>, vector<8x128xf32>
      tpu.vector_store %arg6[%c0_15, %c0_16], %19 {strides = array<i32>} : memref<8x128xf32, #tpu.memory_space<vmem>>, vector<8x128xf32>,
      %21 = arith.truncf %12 : vector<32x128xf32> to vector<32x128xbf16>
      %c0_17 = arith.constant 0 : index
      %c0_18 = arith.constant 0 : index
      %22 = vector.load %arg5[%c0_17, %c0_18] : memref<32x128xbf16, #tpu.memory_space<vmem>>, vector<32x128xbf16>
      tpu.vector_store %arg5[%c0_17, %c0_18], %21 {strides = array<i32>} : memref<32x128xbf16, #tpu.memory_space<vmem>>, vector<32x128xbf16>,
    } else {
    }
    return
  }
  func.func @transform_0(%arg0: i32, %arg1: i32, %arg2: i32) -> (i32, i32) {
    %c0_i32 = arith.constant 0 : i32
    return %arg1, %arg2 : i32, i32
  }
  func.func @transform_1(%arg0: i32, %arg1: i32, %arg2: i32) -> (i32, i32) {
    %c0_i32 = arith.constant 0 : i32
    return %arg2, %arg0 : i32, i32
  }
  func.func @transform_2(%arg0: i32, %arg1: i32, %arg2: i32) -> (i32, i32) {
    %c0_i32 = arith.constant 0 : i32
    return %arg1, %arg0 : i32, i32
  }
  func.func @transform_3(%arg0: i32, %arg1: i32, %arg2: i32) -> (i32, i32) {
    %c0_i32 = arith.constant 0 : i32
    return %arg1, %arg0 : i32, i32
  }
}

module attributes {stable_mosaic.version = 11 : i64} {
  func.func @_bn_act_kernel(%arg0: i32, %arg1: memref<32x128xbf16, #tpu.memory_space<vmem>>, %arg2: memref<8x128xf32, #tpu.memory_space<vmem>>, %arg3: memref<32x128xbf16, #tpu.memory_space<vmem>>) attributes {dimension_semantics = [#tpu.dimension_semantics<parallel>], iteration_bounds = array<i64: 1>, scalar_prefetch = 0 : i64, scratch_operands = 0 : i64, tpu.core_type = #tpu.core_type<tc>, window_params = [{transform_indices = @transform_0, window_bounds = array<i64: 32, 128>}, {pipeline_mode = #tpu.pipeline_mode<synchronous>, transform_indices = @transform_1, window_bounds = array<i64: 8, 128>}, {transform_indices = @transform_2, window_bounds = array<i64: 32, 128>}]} {
    %c0 = arith.constant 0 : index
    %c0_0 = arith.constant 0 : index
    %0 = vector.load %arg2[%c0, %c0_0] : memref<8x128xf32, #tpu.memory_space<vmem>>, vector<1x128xf32>
    %cst = arith.constant 3.125000e-02 : f32
    %1 = vector.broadcast %cst : f32 to vector<1x128xf32>
    %2 = arith.mulf %0, %1 : vector<1x128xf32>
    %c1 = arith.constant 1 : index
    %c0_1 = arith.constant 0 : index
    %3 = vector.load %arg2[%c1, %c0_1] : memref<8x128xf32, #tpu.memory_space<vmem>>, vector<1x128xf32>
    %cst_2 = arith.constant 3.125000e-02 : f32
    %4 = vector.broadcast %cst_2 : f32 to vector<1x128xf32>
    %5 = arith.mulf %3, %4 : vector<1x128xf32>
    %6 = arith.mulf %2, %2 : vector<1x128xf32>
    %7 = arith.subf %5, %6 : vector<1x128xf32>
    %cst_3 = arith.constant 0.000000e+00 : f32
    %8 = vector.broadcast %cst_3 : f32 to vector<1x128xf32>
    %9 = arith.maximumf %7, %8 : vector<1x128xf32>
    %cst_4 = arith.constant 9.99999974E-6 : f32
    %10 = vector.broadcast %cst_4 : f32 to vector<1x128xf32>
    %11 = arith.addf %9, %10 : vector<1x128xf32>
    %12 = math.rsqrt %11 : vector<1x128xf32>
    %c0_5 = arith.constant 0 : index
    %c0_6 = arith.constant 0 : index
    %13 = vector.load %arg1[%c0_5, %c0_6] : memref<32x128xbf16, #tpu.memory_space<vmem>>, vector<32x128xbf16>
    %14 = arith.extf %13 : vector<32x128xbf16> to vector<32x128xf32>
    %15 = vector.broadcast %2 : vector<1x128xf32> to vector<32x128xf32>
    %16 = arith.subf %14, %15 : vector<32x128xf32>
    %17 = vector.broadcast %12 : vector<1x128xf32> to vector<32x128xf32>
    %18 = arith.mulf %16, %17 : vector<32x128xf32>
    %19 = arith.truncf %18 : vector<32x128xf32> to vector<32x128xbf16>
    %c0_7 = arith.constant 0 : index
    %c0_8 = arith.constant 0 : index
    %20 = vector.load %arg3[%c0_7, %c0_8] : memref<32x128xbf16, #tpu.memory_space<vmem>>, vector<32x128xbf16>
    tpu.vector_store %arg3[%c0_7, %c0_8], %19 {strides = array<i32>} : memref<32x128xbf16, #tpu.memory_space<vmem>>, vector<32x128xbf16>,
    return
  }
  func.func @transform_0(%arg0: i32) -> (i32, i32) {
    %c0_i32 = arith.constant 0 : i32
    %c0_i32_0 = arith.constant 0 : i32
    return %arg0, %c0_i32 : i32, i32
  }
  func.func @transform_1(%arg0: i32) -> (i32, i32) {
    %c0_i32 = arith.constant 0 : i32
    %c0_i32_0 = arith.constant 0 : i32
    %c0_i32_1 = arith.constant 0 : i32
    return %c0_i32, %c0_i32_0 : i32, i32
  }
  func.func @transform_2(%arg0: i32) -> (i32, i32) {
    %c0_i32 = arith.constant 0 : i32
    %c0_i32_0 = arith.constant 0 : i32
    return %arg0, %c0_i32 : i32, i32
  }
}

module attributes {stable_mosaic.version = 11 : i64} {
  func.func @_conv_matmul_kernel(%arg0: i32, %arg1: i32, %arg2: i32, %arg3: memref<128x512xbf16, #tpu.memory_space<vmem>>, %arg4: memref<512x128xbf16, #tpu.memory_space<vmem>>, %arg5: memref<128x128xbf16, #tpu.memory_space<vmem>>, %arg6: memref<8x128xf32, #tpu.memory_space<vmem>>, %arg7: memref<128x128xf32, #tpu.memory_space<vmem>>) attributes {dimension_semantics = [#tpu.dimension_semantics<parallel>, #tpu.dimension_semantics<parallel>, #tpu.dimension_semantics<arbitrary>], iteration_bounds = array<i64: 1, 1, 1>, scalar_prefetch = 0 : i64, scratch_operands = 1 : i64, tpu.core_type = #tpu.core_type<tc>, window_params = [{transform_indices = @transform_0, window_bounds = array<i64: 128, 512>}, {transform_indices = @transform_1, window_bounds = array<i64: 512, 128>}, {transform_indices = @transform_2, window_bounds = array<i64: 128, 128>}, {transform_indices = @transform_3, window_bounds = array<i64: 8, 128>}]} {
    %c0_i32 = arith.constant 0 : i32
    %0 = arith.cmpi eq, %arg2, %c0_i32 : i32
    %1 = arith.extui %0 : i1 to i32
    %c0_i32_0 = arith.constant 0 : i32
    %2 = arith.cmpi ne, %1, %c0_i32_0 : i32
    scf.if %2 {
      %cst_10 = arith.constant 0.000000e+00 : f32
      %12 = vector.broadcast %cst_10 : f32 to vector<128x128xf32>
      %c0_11 = arith.constant 0 : index
      %c0_12 = arith.constant 0 : index
      %13 = vector.load %arg7[%c0_11, %c0_12] : memref<128x128xf32, #tpu.memory_space<vmem>>, vector<128x128xf32>
      tpu.vector_store %arg7[%c0_11, %c0_12], %12 {strides = array<i32>} : memref<128x128xf32, #tpu.memory_space<vmem>>, vector<128x128xf32>,
    } else {
    }
    %c0 = arith.constant 0 : index
    %c0_1 = arith.constant 0 : index
    %3 = vector.load %arg7[%c0, %c0_1] : memref<128x128xf32, #tpu.memory_space<vmem>>, vector<128x128xf32>
    %c0_2 = arith.constant 0 : index
    %c0_3 = arith.constant 0 : index
    %4 = vector.load %arg3[%c0_2, %c0_3] : memref<128x512xbf16, #tpu.memory_space<vmem>>, vector<128x512xbf16>
    %c0_4 = arith.constant 0 : index
    %c0_5 = arith.constant 0 : index
    %5 = vector.load %arg4[%c0_4, %c0_5] : memref<512x128xbf16, #tpu.memory_space<vmem>>, vector<512x128xbf16>
    %cst = arith.constant dense<0.000000e+00> : vector<128x128xf32>
    %6 = tpu.matmul %4, %5, %cst {dimension_numbers = #tpu.dot_dimension_numbers<[1], [0], [0], [1], [0, 0, 1, 1], [], []>} : vector<128x512xbf16>, vector<512x128xbf16>, vector<128x128xf32> -> vector<128x128xf32>
    %7 = arith.addf %3, %6 : vector<128x128xf32>
    %c0_6 = arith.constant 0 : index
    %c0_7 = arith.constant 0 : index
    %8 = vector.load %arg7[%c0_6, %c0_7] : memref<128x128xf32, #tpu.memory_space<vmem>>, vector<128x128xf32>
    tpu.vector_store %arg7[%c0_6, %c0_7], %7 {strides = array<i32>} : memref<128x128xf32, #tpu.memory_space<vmem>>, vector<128x128xf32>,
    %c0_i32_8 = arith.constant 0 : i32
    %9 = arith.cmpi eq, %arg2, %c0_i32_8 : i32
    %10 = arith.extui %9 : i1 to i32
    %c0_i32_9 = arith.constant 0 : i32
    %11 = arith.cmpi ne, %10, %c0_i32_9 : i32
    scf.if %11 {
      %c0_10 = arith.constant 0 : index
      %c0_11 = arith.constant 0 : index
      %12 = vector.load %arg7[%c0_10, %c0_11] : memref<128x128xf32, #tpu.memory_space<vmem>>, vector<128x128xf32>
      %cst_12 = arith.constant dense<0.000000e+00> : vector<128xf32>
      %13 = vector.multi_reduction <add>, %12, %cst_12 [0] : vector<128x128xf32> to vector<128xf32>
      %14 = vector.shape_cast %13 : vector<128xf32> to vector<1x128xf32>
      %15 = arith.mulf %12, %12 : vector<128x128xf32>
      %cst_13 = arith.constant dense<0.000000e+00> : vector<128xf32>
      %16 = vector.multi_reduction <add>, %15, %cst_13 [0] : vector<128x128xf32> to vector<128xf32>
      %17 = vector.shape_cast %16 : vector<128xf32> to vector<1x128xf32>
      %cst_14 = arith.constant 0.000000e+00 : f32
      %18 = vector.broadcast %cst_14 : f32 to vector<6x128xf32>
      %19 = tpu.concatenate %14, %17, %18 in 0 : vector<1x128xf32>, vector<1x128xf32>, vector<6x128xf32> -> vector<8x128xf32>
      %c0_15 = arith.constant 0 : index
      %c0_16 = arith.constant 0 : index
      %20 = vector.load %arg6[%c0_15, %c0_16] : memref<8x128xf32, #tpu.memory_space<vmem>>, vector<8x128xf32>
      tpu.vector_store %arg6[%c0_15, %c0_16], %19 {strides = array<i32>} : memref<8x128xf32, #tpu.memory_space<vmem>>, vector<8x128xf32>,
      %21 = arith.truncf %12 : vector<128x128xf32> to vector<128x128xbf16>
      %c0_17 = arith.constant 0 : index
      %c0_18 = arith.constant 0 : index
      %22 = vector.load %arg5[%c0_17, %c0_18] : memref<128x128xbf16, #tpu.memory_space<vmem>>, vector<128x128xbf16>
      tpu.vector_store %arg5[%c0_17, %c0_18], %21 {strides = array<i32>} : memref<128x128xbf16, #tpu.memory_space<vmem>>, vector<128x128xbf16>,
    } else {
    }
    return
  }
  func.func @transform_0(%arg0: i32, %arg1: i32, %arg2: i32) -> (i32, i32) {
    %c0_i32 = arith.constant 0 : i32
    return %arg1, %arg2 : i32, i32
  }
  func.func @transform_1(%arg0: i32, %arg1: i32, %arg2: i32) -> (i32, i32) {
    %c0_i32 = arith.constant 0 : i32
    return %arg2, %arg0 : i32, i32
  }
  func.func @transform_2(%arg0: i32, %arg1: i32, %arg2: i32) -> (i32, i32) {
    %c0_i32 = arith.constant 0 : i32
    return %arg1, %arg0 : i32, i32
  }
  func.func @transform_3(%arg0: i32, %arg1: i32, %arg2: i32) -> (i32, i32) {
    %c0_i32 = arith.constant 0 : i32
    return %arg1, %arg0 : i32, i32
  }
}

module attributes {stable_mosaic.version = 11 : i64} {
  func.func @_bn_act_kernel(%arg0: i32, %arg1: memref<128x128xbf16, #tpu.memory_space<vmem>>, %arg2: memref<8x128xf32, #tpu.memory_space<vmem>>, %arg3: memref<128x128xbf16, #tpu.memory_space<vmem>>) attributes {dimension_semantics = [#tpu.dimension_semantics<parallel>], iteration_bounds = array<i64: 1>, scalar_prefetch = 0 : i64, scratch_operands = 0 : i64, tpu.core_type = #tpu.core_type<tc>, window_params = [{transform_indices = @transform_0, window_bounds = array<i64: 128, 128>}, {pipeline_mode = #tpu.pipeline_mode<synchronous>, transform_indices = @transform_1, window_bounds = array<i64: 8, 128>}, {transform_indices = @transform_2, window_bounds = array<i64: 128, 128>}]} {
    %c0 = arith.constant 0 : index
    %c0_0 = arith.constant 0 : index
    %0 = vector.load %arg2[%c0, %c0_0] : memref<8x128xf32, #tpu.memory_space<vmem>>, vector<1x128xf32>
    %cst = arith.constant 7.812500e-03 : f32
    %1 = vector.broadcast %cst : f32 to vector<1x128xf32>
    %2 = arith.mulf %0, %1 : vector<1x128xf32>
    %c1 = arith.constant 1 : index
    %c0_1 = arith.constant 0 : index
    %3 = vector.load %arg2[%c1, %c0_1] : memref<8x128xf32, #tpu.memory_space<vmem>>, vector<1x128xf32>
    %cst_2 = arith.constant 7.812500e-03 : f32
    %4 = vector.broadcast %cst_2 : f32 to vector<1x128xf32>
    %5 = arith.mulf %3, %4 : vector<1x128xf32>
    %6 = arith.mulf %2, %2 : vector<1x128xf32>
    %7 = arith.subf %5, %6 : vector<1x128xf32>
    %cst_3 = arith.constant 0.000000e+00 : f32
    %8 = vector.broadcast %cst_3 : f32 to vector<1x128xf32>
    %9 = arith.maximumf %7, %8 : vector<1x128xf32>
    %cst_4 = arith.constant 9.99999974E-6 : f32
    %10 = vector.broadcast %cst_4 : f32 to vector<1x128xf32>
    %11 = arith.addf %9, %10 : vector<1x128xf32>
    %12 = math.rsqrt %11 : vector<1x128xf32>
    %c0_5 = arith.constant 0 : index
    %c0_6 = arith.constant 0 : index
    %13 = vector.load %arg1[%c0_5, %c0_6] : memref<128x128xbf16, #tpu.memory_space<vmem>>, vector<128x128xbf16>
    %14 = arith.extf %13 : vector<128x128xbf16> to vector<128x128xf32>
    %15 = vector.broadcast %2 : vector<1x128xf32> to vector<128x128xf32>
    %16 = arith.subf %14, %15 : vector<128x128xf32>
    %17 = vector.broadcast %12 : vector<1x128xf32> to vector<128x128xf32>
    %18 = arith.mulf %16, %17 : vector<128x128xf32>
    %19 = arith.truncf %18 : vector<128x128xf32> to vector<128x128xbf16>
    %c0_7 = arith.constant 0 : index
    %c0_8 = arith.constant 0 : index
    %20 = vector.load %arg3[%c0_7, %c0_8] : memref<128x128xbf16, #tpu.memory_space<vmem>>, vector<128x128xbf16>
    tpu.vector_store %arg3[%c0_7, %c0_8], %19 {strides = array<i32>} : memref<128x128xbf16, #tpu.memory_space<vmem>>, vector<128x128xbf16>,
    return
  }
  func.func @transform_0(%arg0: i32) -> (i32, i32) {
    %c0_i32 = arith.constant 0 : i32
    %c0_i32_0 = arith.constant 0 : i32
    return %arg0, %c0_i32 : i32, i32
  }
  func.func @transform_1(%arg0: i32) -> (i32, i32) {
    %c0_i32 = arith.constant 0 : i32
    %c0_i32_0 = arith.constant 0 : i32
    %c0_i32_1 = arith.constant 0 : i32
    return %c0_i32, %c0_i32_0 : i32, i32
  }
  func.func @transform_2(%arg0: i32) -> (i32, i32) {
    %c0_i32 = arith.constant 0 : i32
    %c0_i32_0 = arith.constant 0 : i32
    return %arg0, %c0_i32 : i32, i32
  }
}

module attributes {stable_mosaic.version = 11 : i64} {
  func.func @_conv_matmul_kernel(%arg0: i32, %arg1: i32, %arg2: i32, %arg3: memref<512x256xbf16, #tpu.memory_space<vmem>>, %arg4: memref<256x128xbf16, #tpu.memory_space<vmem>>, %arg5: memref<512x128xbf16, #tpu.memory_space<vmem>>, %arg6: memref<512x128xf32, #tpu.memory_space<vmem>>) attributes {dimension_semantics = [#tpu.dimension_semantics<parallel>, #tpu.dimension_semantics<parallel>, #tpu.dimension_semantics<arbitrary>], iteration_bounds = array<i64: 1, 1, 1>, scalar_prefetch = 0 : i64, scratch_operands = 1 : i64, tpu.core_type = #tpu.core_type<tc>, window_params = [{transform_indices = @transform_0, window_bounds = array<i64: 512, 256>}, {transform_indices = @transform_1, window_bounds = array<i64: 256, 128>}, {transform_indices = @transform_2, window_bounds = array<i64: 512, 128>}]} {
    %c0_i32 = arith.constant 0 : i32
    %0 = arith.cmpi eq, %arg2, %c0_i32 : i32
    %1 = arith.extui %0 : i1 to i32
    %c0_i32_0 = arith.constant 0 : i32
    %2 = arith.cmpi ne, %1, %c0_i32_0 : i32
    scf.if %2 {
      %cst_10 = arith.constant 0.000000e+00 : f32
      %12 = vector.broadcast %cst_10 : f32 to vector<512x128xf32>
      %c0_11 = arith.constant 0 : index
      %c0_12 = arith.constant 0 : index
      %13 = vector.load %arg6[%c0_11, %c0_12] : memref<512x128xf32, #tpu.memory_space<vmem>>, vector<512x128xf32>
      tpu.vector_store %arg6[%c0_11, %c0_12], %12 {strides = array<i32>} : memref<512x128xf32, #tpu.memory_space<vmem>>, vector<512x128xf32>,
    } else {
    }
    %c0 = arith.constant 0 : index
    %c0_1 = arith.constant 0 : index
    %3 = vector.load %arg6[%c0, %c0_1] : memref<512x128xf32, #tpu.memory_space<vmem>>, vector<512x128xf32>
    %c0_2 = arith.constant 0 : index
    %c0_3 = arith.constant 0 : index
    %4 = vector.load %arg3[%c0_2, %c0_3] : memref<512x256xbf16, #tpu.memory_space<vmem>>, vector<512x256xbf16>
    %c0_4 = arith.constant 0 : index
    %c0_5 = arith.constant 0 : index
    %5 = vector.load %arg4[%c0_4, %c0_5] : memref<256x128xbf16, #tpu.memory_space<vmem>>, vector<256x128xbf16>
    %cst = arith.constant dense<0.000000e+00> : vector<512x128xf32>
    %6 = tpu.matmul %4, %5, %cst {dimension_numbers = #tpu.dot_dimension_numbers<[1], [0], [0], [1], [0, 0, 1, 1], [], []>} : vector<512x256xbf16>, vector<256x128xbf16>, vector<512x128xf32> -> vector<512x128xf32>
    %7 = arith.addf %3, %6 : vector<512x128xf32>
    %c0_6 = arith.constant 0 : index
    %c0_7 = arith.constant 0 : index
    %8 = vector.load %arg6[%c0_6, %c0_7] : memref<512x128xf32, #tpu.memory_space<vmem>>, vector<512x128xf32>
    tpu.vector_store %arg6[%c0_6, %c0_7], %7 {strides = array<i32>} : memref<512x128xf32, #tpu.memory_space<vmem>>, vector<512x128xf32>,
    %c0_i32_8 = arith.constant 0 : i32
    %9 = arith.cmpi eq, %arg2, %c0_i32_8 : i32
    %10 = arith.extui %9 : i1 to i32
    %c0_i32_9 = arith.constant 0 : i32
    %11 = arith.cmpi ne, %10, %c0_i32_9 : i32
    scf.if %11 {
      %c0_10 = arith.constant 0 : index
      %c0_11 = arith.constant 0 : index
      %12 = vector.load %arg6[%c0_10, %c0_11] : memref<512x128xf32, #tpu.memory_space<vmem>>, vector<512x128xf32>
      %13 = math.tanh %12 : vector<512x128xf32>
      %14 = arith.truncf %13 : vector<512x128xf32> to vector<512x128xbf16>
      %c0_12 = arith.constant 0 : index
      %c0_13 = arith.constant 0 : index
      %15 = vector.load %arg5[%c0_12, %c0_13] : memref<512x128xbf16, #tpu.memory_space<vmem>>, vector<512x128xbf16>
      tpu.vector_store %arg5[%c0_12, %c0_13], %14 {strides = array<i32>} : memref<512x128xbf16, #tpu.memory_space<vmem>>, vector<512x128xbf16>,
    } else {
    }
    return
  }
  func.func @transform_0(%arg0: i32, %arg1: i32, %arg2: i32) -> (i32, i32) {
    %c0_i32 = arith.constant 0 : i32
    return %arg1, %arg2 : i32, i32
  }
  func.func @transform_1(%arg0: i32, %arg1: i32, %arg2: i32) -> (i32, i32) {
    %c0_i32 = arith.constant 0 : i32
    return %arg2, %arg0 : i32, i32
  }
  func.func @transform_2(%arg0: i32, %arg1: i32, %arg2: i32) -> (i32, i32) {
    %c0_i32 = arith.constant 0 : i32
    return %arg1, %arg0 : i32, i32
  }
}

</mosaic_0001>

<llo_original>
// kernel: _lambda_.13
$region0: #{_lambda_.13}
  #allocation0 [shape = 'u32[]', space=smem, size = 0x4, offset = 0x4, fixed_abs, tag = 'smem constant byte address 0x4 - core index']
  #allocation1 [shape = 'u32[144,128]{1,0:T(1,128)}', space=vmem, size = 0x12000, scoped, tag = 'internal scratch']
  #allocation2 [shape = 'f32[128,128]{1,0:T(8,128)}', space=vmem, size = 0x10000, scoped, tag = 'scratch operand']
  %s0 = inlined_call_operand.vmem [shape: bf16[128,128], index: 0, kind: input, shape index: {}]
  %s1 = inlined_call_operand.vmem [shape: bf16[128,128], index: 1, kind: input, shape index: {}]
  %s2 = inlined_call_operand.vmem [shape: bf16[128,128], index: 2, kind: output, shape index: {}]
  %s3 = sld [smem:[#allocation0]]
  $region26: #{_lambda_.13} parent=0
    _
  %s5 = ssub.s32 1, %s3
  %s6 = scalar_select 0, %s5, %s3
  // Predicated region
  $region2: #{_lambda_.13} parent=0 // pred_check
    _
  $region3: #{_lambda_.13} parent=0 // pred_check_branch
    %8 = sbr.rel (0) target = $region5
  $region4: #{_lambda_.13} parent=0 // pred_region
    _
  $region5: #{_lambda_.13} parent=0 // pred_fallthru
    _
  // Predicated region
  $region6: #{_lambda_.13} parent=0 // pred_check
    _
  $region7: #{_lambda_.13} parent=0 // pred_check_branch
    %10 = sbr.rel (0) target = $region9
  $region8: #{_lambda_.13} parent=0 // pred_region
    _
  $region9: #{_lambda_.13} parent=0 // pred_fallthru
    _
  %p12 = scmp.eq.s32.totalorder 0, 0
  // Predicated region
  $region10: #{_lambda_.13} parent=0 // pred_check
    %p13 = pneg %p12
  $region11: #{_lambda_.13} parent=0 // pred_check_branch
    %15 = sbr.rel (%p13) target = $region13
  $region12: #{_lambda_.13} parent=0 // pred_region
    %16 = vst [vmem:[#allocation2] sm:$0xff] 0.0
    %17 = vst [vmem:[#allocation2 + $0x8] sm:$0xff] 0.0
    %18 = vst [vmem:[#allocation2 + $0x10] sm:$0xff] 0.0
    %19 = vst [vmem:[#allocation2 + $0x18] sm:$0xff] 0.0
    %20 = vst [vmem:[#allocation2 + $0x20] sm:$0xff] 0.0
    %21 = vst [vmem:[#allocation2 + $0x28] sm:$0xff] 0.0
    %22 = vst [vmem:[#allocation2 + $0x30] sm:$0xff] 0.0
    %23 = vst [vmem:[#allocation2 + $0x38] sm:$0xff] 0.0
    %24 = vst [vmem:[#allocation2 + $0x40] sm:$0xff] 0.0
    %25 = vst [vmem:[#allocation2 + $0x48] sm:$0xff] 0.0
    %26 = vst [vmem:[#allocation2 + $0x50] sm:$0xff] 0.0
    %27 = vst [vmem:[#allocation2 + $0x58] sm:$0xff] 0.0
    %28 = vst [vmem:[#allocation2 + $0x60] sm:$0xff] 0.0
    %29 = vst [vmem:[#allocation2 + $0x68] sm:$0xff] 0.0
    %30 = vst [vmem:[#allocation2 + $0x70] sm:$0xff] 0.0
    %31 = vst [vmem:[#allocation2 + $0x78] sm:$0xff] 0.0
  $region13: #{_lambda_.13} parent=0 // pred_fallthru
    _
  %v32 = vld [vmem:[#allocation2] sm:$0xff]
  %v33 = vld [vmem:[#allocation2 + $0x8] sm:$0xff]
  %v34 = vld [vmem:[#allocation2 + $0x10] sm:$0xff]
  %v35 = vld [vmem:[#allocation2 + $0x18] sm:$0xff]
  %v36 = vld [vmem:[#allocation2 + $0x20] sm:$0xff]
  %v37 = vld [vmem:[#allocation2 + $0x28] sm:$0xff]
  %v38 = vld [vmem:[#allocation2 + $0x30] sm:$0xff]
  %v39 = vld [vmem:[#allocation2 + $0x38] sm:$0xff]
  %v40 = vld [vmem:[#allocation2 + $0x40] sm:$0xff]
  %v41 = vld [vmem:[#allocation2 + $0x48] sm:$0xff]
  %v42 = vld [vmem:[#allocation2 + $0x50] sm:$0xff]
  %v43 = vld [vmem:[#allocation2 + $0x58] sm:$0xff]
  %v44 = vld [vmem:[#allocation2 + $0x60] sm:$0xff]
  %v45 = vld [vmem:[#allocation2 + $0x68] sm:$0xff]
  %v46 = vld [vmem:[#allocation2 + $0x70] sm:$0xff]
  %v47 = vld [vmem:[#allocation2 + $0x78] sm:$0xff]
  %v48 = vld [vmem:[%s0] sm:$0xf]
  %v49 = vld [vmem:[%s0 + $0x4] sm:$0xf]
  %v50 = vld [vmem:[%s0 + $0x8] sm:$0xf]
  %v51 = vld [vmem:[%s0 + $0xc] sm:$0xf]
  %v52 = vld [vmem:[%s0 + $0x10] sm:$0xf]
  %v53 = vld [vmem:[%s0 + $0x14] sm:$0xf]
  %v54 = vld [vmem:[%s0 + $0x18] sm:$0xf]
  %v55 = vld [vmem:[%s0 + $0x1c] sm:$0xf]
  %v56 = vld [vmem:[%s0 + $0x20] sm:$0xf]
  %v57 = vld [vmem:[%s0 + $0x24] sm:$0xf]
  %v58 = vld [vmem:[%s0 + $0x28] sm:$0xf]
  %v59 = vld [vmem:[%s0 + $0x2c] sm:$0xf]
  %v60 = vld [vmem:[%s0 + $0x30] sm:$0xf]
  %v61 = vld [vmem:[%s0 + $0x34] sm:$0xf]
  %v62 = vld [vmem:[%s0 + $0x38] sm:$0xf]
  %v63 = vld [vmem:[%s0 + $0x3c] sm:$0xf]
  %v64 = vld [vmem:[%s1] sm:$0xf]
  %v65 = vld [vmem:[%s1 + $0x4] sm:$0xf]
  %v66 = vld [vmem:[%s1 + $0x8] sm:$0xf]
  %v67 = vld [vmem:[%s1 + $0xc] sm:$0xf]
  %v68 = vld [vmem:[%s1 + $0x10] sm:$0xf]
  %v69 = vld [vmem:[%s1 + $0x14] sm:$0xf]
  %v70 = vld [vmem:[%s1 + $0x18] sm:$0xf]
  %v71 = vld [vmem:[%s1 + $0x1c] sm:$0xf]
  %v72 = vld [vmem:[%s1 + $0x20] sm:$0xf]
  %v73 = vld [vmem:[%s1 + $0x24] sm:$0xf]
  %v74 = vld [vmem:[%s1 + $0x28] sm:$0xf]
  %v75 = vld [vmem:[%s1 + $0x2c] sm:$0xf]
  %v76 = vld [vmem:[%s1 + $0x30] sm:$0xf]
  %v77 = vld [vmem:[%s1 + $0x34] sm:$0xf]
  %v78 = vld [vmem:[%s1 + $0x38] sm:$0xf]
  %v79 = vld [vmem:[%s1 + $0x3c] sm:$0xf]
  %v96 = vunpack.c.l.b16 %v48
  %v97 = vunpack.c.l.b16 %v49
  %v98 = vunpack.c.l.b16 %v50
  %v99 = vunpack.c.l.b16 %v51
  %v100 = vunpack.c.l.b16 %v52
  %v101 = vunpack.c.l.b16 %v53
  %v102 = vunpack.c.l.b16 %v54
  %v103 = vunpack.c.l.b16 %v55
  %v104 = vunpack.c.l.b16 %v56
  %v105 = vunpack.c.l.b16 %v57
  %v106 = vunpack.c.l.b16 %v58
  %v107 = vunpack.c.l.b16 %v59
  %v108 = vunpack.c.l.b16 %v60
  %v109 = vunpack.c.l.b16 %v61
  %v110 = vunpack.c.l.b16 %v62
  %v111 = vunpack.c.l.b16 %v63
  %v112 = vpack.c.b16 %v97, %v96
  %v113 = vpack.c.b16 %v99, %v98
  %v114 = vpack.c.b16 %v101, %v100
  %v115 = vpack.c.b16 %v103, %v102
  %v116 = vpack.c.b16 %v105, %v104
  %v117 = vpack.c.b16 %v107, %v106
  %v118 = vpack.c.b16 %v109, %v108
  %v119 = vpack.c.b16 %v111, %v110
  %v144 = vunpack.c.l.b16 %v64
  %v145 = vunpack.c.l.b16 %v65
  %v146 = vunpack.c.l.b16 %v66
  %v147 = vunpack.c.l.b16 %v67
  %v148 = vunpack.c.l.b16 %v68
  %v149 = vunpack.c.l.b16 %v69
  %v150 = vunpack.c.l.b16 %v70
  %v151 = vunpack.c.l.b16 %v71
  %v152 = vunpack.c.l.b16 %v72
  %v153 = vunpack.c.l.b16 %v73
  %v154 = vunpack.c.l.b16 %v74
  %v155 = vunpack.c.l.b16 %v75
  %v156 = vunpack.c.l.b16 %v76
  %v157 = vunpack.c.l.b16 %v77
  %v158 = vunpack.c.l.b16 %v78
  %v159 = vunpack.c.l.b16 %v79
  %v160 = vpack.c.b16 %v145, %v144
  %v161 = vpack.c.b16 %v147, %v146
  %v162 = vpack.c.b16 %v149, %v148
  %v163 = vpack.c.b16 %v151, %v150
  %v164 = vpack.c.b16 %v153, %v152
  %v165 = vpack.c.b16 %v155, %v154
  %v166 = vpack.c.b16 %v157, %v156
  %v167 = vpack.c.b16 %v159, %v158
  %176 = vmatprep.subr.bf16.mxu0 0
  %177 = vmatpush1.bf16.msra.mxu0 %v167
  %178 = vmatprep.subr.bf16.mxu0 0
  %179 = vmatpush1.bf16.msra.mxu0 %v166
  %180 = vmatprep.subr.bf16.mxu0 0
  %181 = vmatpush1.bf16.msra.mxu0 %v165
  %182 = vmatprep.subr.bf16.mxu0 0
  %183 = vmatpush1.bf16.msra.mxu0 %v164
  %184 = vmatprep.subr.bf16.mxu0 0
  %185 = vmatpush1.bf16.msra.mxu0 %v163
  %186 = vmatprep.subr.bf16.mxu0 0
  %187 = vmatpush1.bf16.msra.mxu0 %v162
  %188 = vmatprep.subr.bf16.mxu0 0
  %189 = vmatpush1.bf16.msra.mxu0 %v161
  %190 = vmatprep.subr.bf16.mxu0 0
  %191 = vmatpush1.bf16.msra.mxu0 %v160
  %192 = vmatprep.subr.bf16.mxu0 0
  %193 = vmatpush2.bf16.msra.mxu0 0
  %194 = vmatprep.subr.bf16.mxu0 0
  %195 = vmatpush2.bf16.msra.mxu0 0
  %196 = vmatprep.subr.bf16.mxu0 0
  %197 = vmatpush2.bf16.msra.mxu0 0
  %198 = vmatprep.subr.bf16.mxu0 0
  %199 = vmatpush2.bf16.msra.mxu0 0
  %200 = vmatprep.subr.bf16.mxu0 0
  %201 = vmatpush2.bf16.msra.mxu0 0
  %202 = vmatprep.subr.bf16.mxu0 0
  %203 = vmatpush2.bf16.msra.mxu0 0
  %204 = vmatprep.subr.bf16.mxu0 0
  %205 = vmatpush2.bf16.msra.mxu0 0
  %206 = vmatprep.subr.bf16.mxu0 0
  %207 = vmatpush2.bf16.msra.mxu0 0
  %208 = vmatprep.mubr.bf16.mxu0 0
  %209 = vmatmul.mubr.bf16.gmra.mxu0 %v112
  %v210 = vpop.f32.mrf.mxu0
  %v211 = vadd.f32 0.0, %v210
  %v212 = vpop.f32.mrf.mxu0
  %v213 = vpop.f32.mrf.mxu0
  %v214 = vadd.f32 0.0, %v213
  %v215 = vpop.f32.mrf.mxu0
  %216 = vmatprep.mubr.bf16.mxu0 0
  %217 = vmatmul.mubr.bf16.gmra.mxu0 %v113
  %v218 = vpop.f32.mrf.mxu0
  %v219 = vadd.f32 0.0, %v218
  %v220 = vpop.f32.mrf.mxu0
  %v221 = vpop.f32.mrf.mxu0
  %v222 = vadd.f32 0.0, %v221
  %v223 = vpop.f32.mrf.mxu0
  %224 = vmatprep.mubr.bf16.mxu0 0
  %225 = vmatmul.mubr.bf16.gmra.mxu0 %v114
  %v226 = vpop.f32.mrf.mxu0
  %v227 = vadd.f32 0.0, %v226
  %v228 = vpop.f32.mrf.mxu0
  %v229 = vpop.f32.mrf.mxu0
  %v230 = vadd.f32 0.0, %v229
  %v231 = vpop.f32.mrf.mxu0
  %232 = vmatprep.mubr.bf16.mxu0 0
  %233 = vmatmul.mubr.bf16.gmra.mxu0 %v115
  %v234 = vpop.f32.mrf.mxu0
  %v235 = vadd.f32 0.0, %v234
  %v236 = vpop.f32.mrf.mxu0
  %v237 = vpop.f32.mrf.mxu0
  %v238 = vadd.f32 0.0, %v237
  %v239 = vpop.f32.mrf.mxu0
  %240 = vmatprep.mubr.bf16.mxu0 0
  %241 = vmatmul.mubr.bf16.gmra.mxu0 %v116
  %v242 = vpop.f32.mrf.mxu0
  %v243 = vadd.f32 0.0, %v242
  %v244 = vpop.f32.mrf.mxu0
  %v245 = vpop.f32.mrf.mxu0
  %v246 = vadd.f32 0.0, %v245
  %v247 = vpop.f32.mrf.mxu0
  %248 = vmatprep.mubr.bf16.mxu0 0
  %249 = vmatmul.mubr.bf16.gmra.mxu0 %v117
  %v250 = vpop.f32.mrf.mxu0
  %v251 = vadd.f32 0.0, %v250
  %v252 = vpop.f32.mrf.mxu0
  %v253 = vpop.f32.mrf.mxu0
  %v254 = vadd.f32 0.0, %v253
  %v255 = vpop.f32.mrf.mxu0
  %256 = vmatprep.mubr.bf16.mxu0 0
  %257 = vmatmul.mubr.bf16.gmra.mxu0 %v118
  %v258 = vpop.f32.mrf.mxu0
  %v259 = vadd.f32 0.0, %v258
  %v260 = vpop.f32.mrf.mxu0
  %v261 = vpop.f32.mrf.mxu0
  %v262 = vadd.f32 0.0, %v261
  %v263 = vpop.f32.mrf.mxu0
  %264 = vmatprep.mubr.bf16.mxu0 0
  %265 = vmatmul.mubr.bf16.gmra.mxu0 %v119
  %v266 = vpop.f32.mrf.mxu0
  %v267 = vadd.f32 0.0, %v266
  %v268 = vpop.f32.mrf.mxu0
  %v269 = vpop.f32.mrf.mxu0
  %v270 = vadd.f32 0.0, %v269
  %v271 = vpop.f32.mrf.mxu0
  %272 = vdwg.mxu0
  %v273 = vadd.f32 %v32, %v211
  %v274 = vadd.f32 %v33, %v214
  %v275 = vadd.f32 %v34, %v219
  %v276 = vadd.f32 %v35, %v222
  %v277 = vadd.f32 %v36, %v227
  %v278 = vadd.f32 %v37, %v230
  %v279 = vadd.f32 %v38, %v235
  %v280 = vadd.f32 %v39, %v238
  %v281 = vadd.f32 %v40, %v243
  %v282 = vadd.f32 %v41, %v246
  %v283 = vadd.f32 %v42, %v251
  %v284 = vadd.f32 %v43, %v254
  %v285 = vadd.f32 %v44, %v259
  %v286 = vadd.f32 %v45, %v262
  %v287 = vadd.f32 %v46, %v267
  %v288 = vadd.f32 %v47, %v270
  %289 = vst [vmem:[#allocation2] sm:$0xff] %v273
  %290 = vst [vmem:[#allocation2 + $0x8] sm:$0xff] %v274
  %291 = vst [vmem:[#allocation2 + $0x10] sm:$0xff] %v275
  %292 = vst [vmem:[#allocation2 + $0x18] sm:$0xff] %v276
  %293 = vst [vmem:[#allocation2 + $0x20] sm:$0xff] %v277
  %294 = vst [vmem:[#allocation2 + $0x28] sm:$0xff] %v278
  %295 = vst [vmem:[#allocation2 + $0x30] sm:$0xff] %v279
  %296 = vst [vmem:[#allocation2 + $0x38] sm:$0xff] %v280
  %297 = vst [vmem:[#allocation2 + $0x40] sm:$0xff] %v281
  %298 = vst [vmem:[#allocation2 + $0x48] sm:$0xff] %v282
  %299 = vst [vmem:[#allocation2 + $0x50] sm:$0xff] %v283
  %300 = vst [vmem:[#allocation2 + $0x58] sm:$0xff] %v284
  %301 = vst [vmem:[#allocation2 + $0x60] sm:$0xff] %v285
  %302 = vst [vmem:[#allocation2 + $0x68] sm:$0xff] %v286
  %303 = vst [vmem:[#allocation2 + $0x70] sm:$0xff] %v287
  %304 = vst [vmem:[#allocation2 + $0x78] sm:$0xff] %v288
  // Predicated region
  $region14: #{_lambda_.13} parent=0 // pred_check
    %p305 = pneg %p12
  $region15: #{_lambda_.13} parent=0 // pred_check_branch
    %307 = sbr.rel (%p305) target = $region17
  $region16: #{_lambda_.13} parent=0 // pred_region
    %v308 = vld [vmem:[#allocation2] sm:$0xff]
    %v309 = vld [vmem:[#allocation2 + $0x8] sm:$0xff]
    %v310 = vld [vmem:[#allocation2 + $0x10] sm:$0xff]
    %v311 = vld [vmem:[#allocation2 + $0x18] sm:$0xff]
    %v312 = vld [vmem:[#allocation2 + $0x20] sm:$0xff]
    %v313 = vld [vmem:[#allocation2 + $0x28] sm:$0xff]
    %v314 = vld [vmem:[#allocation2 + $0x30] sm:$0xff]
    %v315 = vld [vmem:[#allocation2 + $0x38] sm:$0xff]
    %v316 = vld [vmem:[#allocation2 + $0x40] sm:$0xff]
    %v317 = vld [vmem:[#allocation2 + $0x48] sm:$0xff]
    %v318 = vld [vmem:[#allocation2 + $0x50] sm:$0xff]
    %v319 = vld [vmem:[#allocation2 + $0x58] sm:$0xff]
    %v320 = vld [vmem:[#allocation2 + $0x60] sm:$0xff]
    %v321 = vld [vmem:[#allocation2 + $0x68] sm:$0xff]
    %v322 = vld [vmem:[#allocation2 + $0x70] sm:$0xff]
    %v323 = vld [vmem:[#allocation2 + $0x78] sm:$0xff]
    %vm324 = vcmp.ge.f32.partialorder %v308, 0.0
    %vm325 = vcmp.ge.f32.partialorder %v309, 0.0
    %vm326 = vcmp.ge.f32.partialorder %v310, 0.0
    %vm327 = vcmp.ge.f32.partialorder %v311, 0.0
    %vm328 = vcmp.ge.f32.partialorder %v312, 0.0
    %vm329 = vcmp.ge.f32.partialorder %v313, 0.0
    %vm330 = vcmp.ge.f32.partialorder %v314, 0.0
    %vm331 = vcmp.ge.f32.partialorder %v315, 0.0
    %vm332 = vcmp.ge.f32.partialorder %v316, 0.0
    %vm333 = vcmp.ge.f32.partialorder %v317, 0.0
    %vm334 = vcmp.ge.f32.partialorder %v318, 0.0
    %vm335 = vcmp.ge.f32.partialorder %v319, 0.0
    %vm336 = vcmp.ge.f32.partialorder %v320, 0.0
    %vm337 = vcmp.ge.f32.partialorder %v321, 0.0
    %vm338 = vcmp.ge.f32.partialorder %v322, 0.0
    %vm339 = vcmp.ge.f32.partialorder %v323, 0.0
    %v340 = vmul.f32 %v308, 0.2
    %v341 = vmul.f32 %v309, 0.2
    %v342 = vmul.f32 %v310, 0.2
    %v343 = vmul.f32 %v311, 0.2
    %v344 = vmul.f32 %v312, 0.2
    %v345 = vmul.f32 %v313, 0.2
    %v346 = vmul.f32 %v314, 0.2
    %v347 = vmul.f32 %v315, 0.2
    %v348 = vmul.f32 %v316, 0.2
    %v349 = vmul.f32 %v317, 0.2
    %v350 = vmul.f32 %v318, 0.2
    %v351 = vmul.f32 %v319, 0.2
    %v352 = vmul.f32 %v320, 0.2
    %v353 = vmul.f32 %v321, 0.2
    %v354 = vmul.f32 %v322, 0.2
    %v355 = vmul.f32 %v323, 0.2
    %v356 = vsel %vm324, %v308, %v340
    %v357 = vsel %vm325, %v309, %v341
    %v358 = vsel %vm326, %v310, %v342
    %v359 = vsel %vm327, %v311, %v343
    %v360 = vsel %vm328, %v312, %v344
    %v361 = vsel %vm329, %v313, %v345
    %v362 = vsel %vm330, %v314, %v346
    %v363 = vsel %vm331, %v315, %v347
    %v364 = vsel %vm332, %v316, %v348
    %v365 = vsel %vm333, %v317, %v349
    %v366 = vsel %vm334, %v318, %v350
    %v367 = vsel %vm335, %v319, %v351
    %v368 = vsel %vm336, %v320, %v352
    %v369 = vsel %vm337, %v321, %v353
    %v370 = vsel %vm338, %v322, %v354
    %v371 = vsel %vm339, %v323, %v355
    %v372 = vpack.c.bf16 %v357, %v356
    %v373 = vpack.c.bf16 %v359, %v358
    %v374 = vpack.c.bf16 %v361, %v360
    %v375 = vpack.c.bf16 %v363, %v362
    %v376 = vpack.c.bf16 %v365, %v364
    %v377 = vpack.c.bf16 %v367, %v366
    %v378 = vpack.c.bf16 %v369, %v368
    %v379 = vpack.c.bf16 %v371, %v370
    %v388 = vunpack.c.l.b16 %v372
    %v389 = vunpack.c.h.b16 %v372
    %v390 = vunpack.c.l.b16 %v373
    %v391 = vunpack.c.h.b16 %v373
    %v392 = vunpack.c.l.b16 %v374
    %v393 = vunpack.c.h.b16 %v374
    %v394 = vunpack.c.l.b16 %v375
    %v395 = vunpack.c.h.b16 %v375
    %v396 = vunpack.c.l.b16 %v376
    %v397 = vunpack.c.h.b16 %v376
    %v398 = vunpack.c.l.b16 %v377
    %v399 = vunpack.c.h.b16 %v377
    %v400 = vunpack.c.l.b16 %v378
    %v401 = vunpack.c.h.b16 %v378
    %v402 = vunpack.c.l.b16 %v379
    %v403 = vunpack.c.h.b16 %v379
    %v404 = vpack.c.b16 %v388, %v388
    %v405 = vpack.c.b16 %v389, %v389
    %v406 = vpack.c.b16 %v390, %v390
    %v407 = vpack.c.b16 %v391, %v391
    %v408 = vpack.c.b16 %v392, %v392
    %v409 = vpack.c.b16 %v393, %v393
    %v410 = vpack.c.b16 %v394, %v394
    %v411 = vpack.c.b16 %v395, %v395
    %v412 = vpack.c.b16 %v396, %v396
    %v413 = vpack.c.b16 %v397, %v397
    %v414 = vpack.c.b16 %v398, %v398
    %v415 = vpack.c.b16 %v399, %v399
    %v416 = vpack.c.b16 %v400, %v400
    %v417 = vpack.c.b16 %v401, %v401
    %v418 = vpack.c.b16 %v402, %v402
    %v419 = vpack.c.b16 %v403, %v403
    %436 = vst [vmem:[%s2] sm:$0xf] %v404
    %437 = vst [vmem:[%s2 + $0x4] sm:$0xf] %v405
    %438 = vst [vmem:[%s2 + $0x8] sm:$0xf] %v406
    %439 = vst [vmem:[%s2 + $0xc] sm:$0xf] %v407
    %440 = vst [vmem:[%s2 + $0x10] sm:$0xf] %v408
    %441 = vst [vmem:[%s2 + $0x14] sm:$0xf] %v409
    %442 = vst [vmem:[%s2 + $0x18] sm:$0xf] %v410
    %443 = vst [vmem:[%s2 + $0x1c] sm:$0xf] %v411
    %444 = vst [vmem:[%s2 + $0x20] sm:$0xf] %v412
    %445 = vst [vmem:[%s2 + $0x24] sm:$0xf] %v413
    %446 = vst [vmem:[%s2 + $0x28] sm:$0xf] %v414
    %447 = vst [vmem:[%s2 + $0x2c] sm:$0xf] %v415
    %448 = vst [vmem:[%s2 + $0x30] sm:$0xf] %v416
    %449 = vst [vmem:[%s2 + $0x34] sm:$0xf] %v417
    %450 = vst [vmem:[%s2 + $0x38] sm:$0xf] %v418
    %451 = vst [vmem:[%s2 + $0x3c] sm:$0xf] %v419
  $region17: #{_lambda_.13} parent=0 // pred_fallthru
    _
  // Predicated region
  $region18: #{_lambda_.13} parent=0 // pred_check
    _
  $region19: #{_lambda_.13} parent=0 // pred_check_branch
    %453 = sbr.rel (0) target = $region21
  $region20: #{_lambda_.13} parent=0 // pred_region
    _
  $region21: #{_lambda_.13} parent=0 // pred_fallthru
    _
  // Predicated region
  $region22: #{_lambda_.13} parent=0 // pred_check
    _
  $region23: #{_lambda_.13} parent=0 // pred_check_branch
    %455 = sbr.rel (0) target = $region25
  $region24: #{_lambda_.13} parent=0 // pred_region
    _
  $region25: #{_lambda_.13} parent=0 // pred_fallthru
    _

// kernel: _lambda_.15
$region0: #{_lambda_.15}
  #allocation0 [shape = 'u32[]', space=smem, size = 0x4, offset = 0x4, fixed_abs, tag = 'smem constant byte address 0x4 - core index']
  #allocation1 [shape = 'u32[144,128]{1,0:T(1,128)}', space=vmem, size = 0x12000, scoped, tag = 'internal scratch']
  %s0 = inlined_call_operand.vmem [shape: bf16[32,128], index: 0, kind: input, shape index: {}]
  %s1 = inlined_call_operand.vmem [shape: f32[8,128], index: 1, kind: input, shape index: {}]
  %s2 = inlined_call_operand.vmem [shape: bf16[32,128], index: 2, kind: output, shape index: {}]
  %s3 = sld [smem:[#allocation0]]
  $region18: #{_lambda_.15} parent=0
    _
  %s5 = ssub.s32 1, %s3
  %s6 = scalar_select 0, %s5, %s3
  // Predicated region
  $region2: #{_lambda_.15} parent=0 // pred_check
    _
  $region3: #{_lambda_.15} parent=0 // pred_check_branch
    %8 = sbr.rel (0) target = $region5
  $region4: #{_lambda_.15} parent=0 // pred_region
    _
  $region5: #{_lambda_.15} parent=0 // pred_fallthru
    _
  // Predicated region
  $region6: #{_lambda_.15} parent=0 // pred_check
    _
  $region7: #{_lambda_.15} parent=0 // pred_check_branch
    %10 = sbr.rel (0) target = $region9
  $region8: #{_lambda_.15} parent=0 // pred_region
    _
  $region9: #{_lambda_.15} parent=0 // pred_fallthru
    _
  %v11 = vld [vmem:[%s1] sm:$0x1]
  %v12 = vmul.f32 %v11, 0.03125
  %v13 = vld [vmem:[%s1 + $0x1] sm:$0x1]
  %v14 = vmul.f32 %v13, 0.03125
  %v15 = vmul.f32 %v12, %v12
  %v16 = vsub.f32 %v14, %v15
  %v17 = vmax.f32 %v16, 0.0
  %v18 = vadd.f32 %v17, 1e-05
  %v19 = vrsqrt.pop %v18
  %v20 = vld [vmem:[%s0] sm:$0xf]
  %v21 = vld [vmem:[%s0 + $0x4] sm:$0xf]
  %v22 = vld [vmem:[%s0 + $0x8] sm:$0xf]
  %v23 = vld [vmem:[%s0 + $0xc] sm:$0xf]
  %v24 = vunpack.c.l.bf16 %v20
  %v25 = vunpack.c.l.bf16 %v21
  %v26 = vunpack.c.l.bf16 %v22
  %v27 = vunpack.c.l.bf16 %v23
  %v28 = vlaneseq
  %v29 = vshrl.u32 %v28, 7
  %v30 = vsub.s32 0, %v29
  %v31 = vrot.slane %v12, %v30
  %v32 = vsub.f32 %v24, %v31
  %v33 = vsub.f32 %v25, %v31
  %v34 = vsub.f32 %v26, %v31
  %v35 = vsub.f32 %v27, %v31
  %v36 = vlaneseq
  %v37 = vshrl.u32 %v36, 7
  %v38 = vsub.s32 0, %v37
  %v39 = vrot.slane %v19, %v38
  %v40 = vmul.f32 %v32, %v39
  %v41 = vmul.f32 %v33, %v39
  %v42 = vmul.f32 %v34, %v39
  %v43 = vmul.f32 %v35, %v39
  %vm44 = vcmp.ge.f32.partialorder %v40, 0.0
  %vm45 = vcmp.ge.f32.partialorder %v41, 0.0
  %vm46 = vcmp.ge.f32.partialorder %v42, 0.0
  %vm47 = vcmp.ge.f32.partialorder %v43, 0.0
  %v48 = vmul.f32 %v40, 0.2
  %v49 = vmul.f32 %v41, 0.2
  %v50 = vmul.f32 %v42, 0.2
  %v51 = vmul.f32 %v43, 0.2
  %v52 = vsel %vm44, %v40, %v48
  %v53 = vsel %vm45, %v41, %v49
  %v54 = vsel %vm46, %v42, %v50
  %v55 = vsel %vm47, %v43, %v51
  %v56 = vpack.c.bf16 %v53, %v52
  %v57 = vpack.c.bf16 %v55, %v54
  %v60 = vunpack.c.l.b16 %v56
  %v61 = vunpack.c.h.b16 %v56
  %v62 = vunpack.c.l.b16 %v57
  %v63 = vunpack.c.h.b16 %v57
  %v64 = vpack.c.b16 %v60, %v60
  %v65 = vpack.c.b16 %v61, %v61
  %v66 = vpack.c.b16 %v62, %v62
  %v67 = vpack.c.b16 %v63, %v63
  %72 = vst [vmem:[%s2] sm:$0xf] %v64
  %73 = vst [vmem:[%s2 + $0x4] sm:$0xf] %v65
  %74 = vst [vmem:[%s2 + $0x8] sm:$0xf] %v66
  %75 = vst [vmem:[%s2 + $0xc] sm:$0xf] %v67
  // Predicated region
  $region10: #{_lambda_.15} parent=0 // pred_check
    _
  $region11: #{_lambda_.15} parent=0 // pred_check_branch
    %77 = sbr.rel (0) target = $region13
  $region12: #{_lambda_.15} parent=0 // pred_region
    _
  $region13: #{_lambda_.15} parent=0 // pred_fallthru
    _
  // Predicated region
  $region14: #{_lambda_.15} parent=0 // pred_check
    _
  $region15: #{_lambda_.15} parent=0 // pred_check_branch
    %79 = sbr.rel (0) target = $region17
  $region16: #{_lambda_.15} parent=0 // pred_region
    _
  $region17: #{_lambda_.15} parent=0 // pred_fallthru
    _

// kernel: _lambda_.14
$region0: #{_lambda_.14}
  #allocation0 [shape = 'u32[]', space=smem, size = 0x4, offset = 0x4, fixed_abs, tag = 'smem constant byte address 0x4 - core index']
  #allocation1 [shape = 'u32[144,128]{1,0:T(1,128)}', space=vmem, size = 0x12000, scoped, tag = 'internal scratch']
  #allocation2 [shape = 'f32[32,128]{1,0:T(8,128)}', space=vmem, size = 0x4000, scoped, tag = 'scratch operand']
  %s0 = inlined_call_operand.vmem [shape: bf16[32,256], index: 0, kind: input, shape index: {}]
  %s1 = inlined_call_operand.vmem [shape: bf16[256,128], index: 1, kind: input, shape index: {}]
  %s2 = inlined_call_operand.vmem [shape: bf16[32,128], index: 2, kind: output, shape index: {0}]
  %s3 = inlined_call_operand.vmem [shape: f32[8,128], index: 3, kind: output, shape index: {1}]
  %4 = xla_tuple %s2, %s3
  %s5 = sld [smem:[#allocation0]]
  $region34: #{_lambda_.14} parent=0
    _
  %s7 = ssub.s32 1, %s5
  %s8 = scalar_select 0, %s7, %s5
  // Predicated region
  $region2: #{_lambda_.14} parent=0 // pred_check
    _
  $region3: #{_lambda_.14} parent=0 // pred_check_branch
    %10 = sbr.rel (0) target = $region5
  $region4: #{_lambda_.14} parent=0 // pred_region
    _
  $region5: #{_lambda_.14} parent=0 // pred_fallthru
    _
  // Predicated region
  $region6: #{_lambda_.14} parent=0 // pred_check
    _
  $region7: #{_lambda_.14} parent=0 // pred_check_branch
    %12 = sbr.rel (0) target = $region9
  $region8: #{_lambda_.14} parent=0 // pred_region
    _
  $region9: #{_lambda_.14} parent=0 // pred_fallthru
    _
  %p14 = scmp.eq.s32.totalorder 0, 0
  // Predicated region
  $region10: #{_lambda_.14} parent=0 // pred_check
    %p15 = pneg %p14
  $region11: #{_lambda_.14} parent=0 // pred_check_branch
    %17 = sbr.rel (%p15) target = $region13
  $region12: #{_lambda_.14} parent=0 // pred_region
    %18 = vst [vmem:[#allocation2] sm:$0xff] 0.0
    %19 = vst [vmem:[#allocation2 + $0x8] sm:$0xff] 0.0
    %20 = vst [vmem:[#allocation2 + $0x10] sm:$0xff] 0.0
    %21 = vst [vmem:[#allocation2 + $0x18] sm:$0xff] 0.0
  $region13: #{_lambda_.14} parent=0 // pred_fallthru
    _
  %v22 = vld [vmem:[#allocation2] sm:$0xff]
  %v23 = vld [vmem:[#allocation2 + $0x8] sm:$0xff]
  %v24 = vld [vmem:[#allocation2 + $0x10] sm:$0xff]
  %v25 = vld [vmem:[#allocation2 + $0x18] sm:$0xff]
  %v26 = vld [vmem:[%s0] sm:$0xff]
  %v27 = vld [vmem:[%s0 + $0x8] sm:$0xff]
  %v28 = vld [vmem:[%s0 + $0x10] sm:$0xff]
  %v29 = vld [vmem:[%s0 + $0x18] sm:$0xff]
  %v30 = vld [vmem:[%s1] sm:$0xf]
  %v31 = vld [vmem:[%s1 + $0x4] sm:$0xf]
  %v32 = vld [vmem:[%s1 + $0x8] sm:$0xf]
  %v33 = vld [vmem:[%s1 + $0xc] sm:$0xf]
  %v34 = vld [vmem:[%s1 + $0x10] sm:$0xf]
  %v35 = vld [vmem:[%s1 + $0x14] sm:$0xf]
  %v36 = vld [vmem:[%s1 + $0x18] sm:$0xf]
  %v37 = vld [vmem:[%s1 + $0x1c] sm:$0xf]
  %v38 = vld [vmem:[%s1 + $0x20] sm:$0xf]
  %v39 = vld [vmem:[%s1 + $0x24] sm:$0xf]
  %v40 = vld [vmem:[%s1 + $0x28] sm:$0xf]
  %v41 = vld [vmem:[%s1 + $0x2c] sm:$0xf]
  %v42 = vld [vmem:[%s1 + $0x30] sm:$0xf]
  %v43 = vld [vmem:[%s1 + $0x34] sm:$0xf]
  %v44 = vld [vmem:[%s1 + $0x38] sm:$0xf]
  %v45 = vld [vmem:[%s1 + $0x3c] sm:$0xf]
  %v46 = vld [vmem:[%s1 + $0x40] sm:$0xf]
  %v47 = vld [vmem:[%s1 + $0x44] sm:$0xf]
  %v48 = vld [vmem:[%s1 + $0x48] sm:$0xf]
  %v49 = vld [vmem:[%s1 + $0x4c] sm:$0xf]
  %v50 = vld [vmem:[%s1 + $0x50] sm:$0xf]
  %v51 = vld [vmem:[%s1 + $0x54] sm:$0xf]
  %v52 = vld [vmem:[%s1 + $0x58] sm:$0xf]
  %v53 = vld [vmem:[%s1 + $0x5c] sm:$0xf]
  %v54 = vld [vmem:[%s1 + $0x60] sm:$0xf]
  %v55 = vld [vmem:[%s1 + $0x64] sm:$0xf]
  %v56 = vld [vmem:[%s1 + $0x68] sm:$0xf]
  %v57 = vld [vmem:[%s1 + $0x6c] sm:$0xf]
  %v58 = vld [vmem:[%s1 + $0x70] sm:$0xf]
  %v59 = vld [vmem:[%s1 + $0x74] sm:$0xf]
  %v60 = vld [vmem:[%s1 + $0x78] sm:$0xf]
  %v61 = vld [vmem:[%s1 + $0x7c] sm:$0xf]
  %v66 = vunpack.c.l.b16 %v26
  %v67 = vunpack.c.h.b16 %v26
  %v68 = vunpack.c.l.b16 %v27
  %v69 = vunpack.c.h.b16 %v27
  %v70 = vunpack.c.l.b16 %v28
  %v71 = vunpack.c.h.b16 %v28
  %v72 = vunpack.c.l.b16 %v29
  %v73 = vunpack.c.h.b16 %v29
  %v74 = vpack.c.b16 %v68, %v66
  %v75 = vpack.c.b16 %v69, %v67
  %v76 = vpack.c.b16 %v72, %v70
  %v77 = vpack.c.b16 %v73, %v71
  %v114 = vunpack.c.l.b16 %v30
  %v115 = vunpack.c.l.b16 %v31
  %v116 = vunpack.c.l.b16 %v32
  %v117 = vunpack.c.l.b16 %v33
  %v118 = vunpack.c.l.b16 %v34
  %v119 = vunpack.c.l.b16 %v35
  %v120 = vunpack.c.l.b16 %v36
  %v121 = vunpack.c.l.b16 %v37
  %v122 = vunpack.c.l.b16 %v38
  %v123 = vunpack.c.l.b16 %v39
  %v124 = vunpack.c.l.b16 %v40
  %v125 = vunpack.c.l.b16 %v41
  %v126 = vunpack.c.l.b16 %v42
  %v127 = vunpack.c.l.b16 %v43
  %v128 = vunpack.c.l.b16 %v44
  %v129 = vunpack.c.l.b16 %v45
  %v130 = vunpack.c.l.b16 %v46
  %v131 = vunpack.c.l.b16 %v47
  %v132 = vunpack.c.l.b16 %v48
  %v133 = vunpack.c.l.b16 %v49
  %v134 = vunpack.c.l.b16 %v50
  %v135 = vunpack.c.l.b16 %v51
  %v136 = vunpack.c.l.b16 %v52
  %v137 = vunpack.c.l.b16 %v53
  %v138 = vunpack.c.l.b16 %v54
  %v139 = vunpack.c.l.b16 %v55
  %v140 = vunpack.c.l.b16 %v56
  %v141 = vunpack.c.l.b16 %v57
  %v142 = vunpack.c.l.b16 %v58
  %v143 = vunpack.c.l.b16 %v59
  %v144 = vunpack.c.l.b16 %v60
  %v145 = vunpack.c.l.b16 %v61
  %v146 = vpack.c.b16 %v115, %v114
  %v147 = vpack.c.b16 %v117, %v116
  %v148 = vpack.c.b16 %v119, %v118
  %v149 = vpack.c.b16 %v121, %v120
  %v150 = vpack.c.b16 %v123, %v122
  %v151 = vpack.c.b16 %v125, %v124
  %v152 = vpack.c.b16 %v127, %v126
  %v153 = vpack.c.b16 %v129, %v128
  %v154 = vpack.c.b16 %v131, %v130
  %v155 = vpack.c.b16 %v133, %v132
  %v156 = vpack.c.b16 %v135, %v134
  %v157 = vpack.c.b16 %v137, %v136
  %v158 = vpack.c.b16 %v139, %v138
  %v159 = vpack.c.b16 %v141, %v140
  %v160 = vpack.c.b16 %v143, %v142
  %v161 = vpack.c.b16 %v145, %v144
  %178 = vmatprep.subr.bf16.mxu0 0
  %179 = vmatpush1.bf16.msra.mxu0 %v153
  %180 = vmatprep.subr.bf16.mxu0 0
  %181 = vmatpush1.bf16.msra.mxu0 %v152
  %182 = vmatprep.subr.bf16.mxu0 0
  %183 = vmatpush1.bf16.msra.mxu0 %v151
  %184 = vmatprep.subr.bf16.mxu0 0
  %185 = vmatpush1.bf16.msra.mxu0 %v150
  %186 = vmatprep.subr.bf16.mxu0 0
  %187 = vmatpush1.bf16.msra.mxu0 %v149
  %188 = vmatprep.subr.bf16.mxu0 0
  %189 = vmatpush1.bf16.msra.mxu0 %v148
  %190 = vmatprep.subr.bf16.mxu0 0
  %191 = vmatpush1.bf16.msra.mxu0 %v147
  %192 = vmatprep.subr.bf16.mxu0 0
  %193 = vmatpush1.bf16.msra.mxu0 %v146
  %194 = vmatprep.subr.bf16.mxu0 0
  %195 = vmatpush2.bf16.msra.mxu0 %v161
  %196 = vmatprep.subr.bf16.mxu0 0
  %197 = vmatpush2.bf16.msra.mxu0 %v160
  %198 = vmatprep.subr.bf16.mxu0 0
  %199 = vmatpush2.bf16.msra.mxu0 %v159
  %200 = vmatprep.subr.bf16.mxu0 0
  %201 = vmatpush2.bf16.msra.mxu0 %v158
  %202 = vmatprep.subr.bf16.mxu0 0
  %203 = vmatpush2.bf16.msra.mxu0 %v157
  %204 = vmatprep.subr.bf16.mxu0 0
  %205 = vmatpush2.bf16.msra.mxu0 %v156
  %206 = vmatprep.subr.bf16.mxu0 0
  %207 = vmatpush2.bf16.msra.mxu0 %v155
  %208 = vmatprep.subr.bf16.mxu0 0
  %209 = vmatpush2.bf16.msra.mxu0 %v154
  %210 = vmatprep.mubr.bf16.mxu0 %v75
  %211 = vmatmul.mubr.bf16.gmra.mxu0 %v74
  %v212 = vpop.f32.mrf.mxu0
  %v213 = vadd.f32 0.0, %v212
  %v214 = vpop.f32.mrf.mxu0
  %v215 = vpop.f32.mrf.mxu0
  %v216 = vadd.f32 0.0, %v215
  %v217 = vpop.f32.mrf.mxu0
  %218 = vmatprep.mubr.bf16.mxu0 %v77
  %219 = vmatmul.mubr.bf16.gmra.mxu0 %v76
  %v220 = vpop.f32.mrf.mxu0
  %v221 = vadd.f32 0.0, %v220
  %v222 = vpop.f32.mrf.mxu0
  %v223 = vpop.f32.mrf.mxu0
  %v224 = vadd.f32 0.0, %v223
  %v225 = vpop.f32.mrf.mxu0
  %226 = vdwg.mxu0
  %v227 = vadd.f32 %v22, %v213
  %v228 = vadd.f32 %v23, %v216
  %v229 = vadd.f32 %v24, %v221
  %v230 = vadd.f32 %v25, %v224
  %231 = vst [vmem:[#allocation2] sm:$0xff] %v227
  %232 = vst [vmem:[#allocation2 + $0x8] sm:$0xff] %v228
  %233 = vst [vmem:[#allocation2 + $0x10] sm:$0xff] %v229
  %234 = vst [vmem:[#allocation2 + $0x18] sm:$0xff] %v230
  // Predicated region
  $region14: #{_lambda_.14} parent=0 // pred_check
    %p235 = pneg %p14
  $region15: #{_lambda_.14} parent=0 // pred_check_branch
    %237 = sbr.rel (%p235) target = $region17
  $region16: #{_lambda_.14} parent=0 // pred_region
    %v238 = vld [vmem:[#allocation2] sm:$0xff]
    %v239 = vld [vmem:[#allocation2 + $0x8] sm:$0xff]
    %v240 = vld [vmem:[#allocation2 + $0x10] sm:$0xff]
    %v241 = vld [vmem:[#allocation2 + $0x18] sm:$0xff]
    %v242 = vadd.f32 %v238, %v239
    %v243 = vadd.f32 %v242, %v240
    %v244 = vadd.f32 %v243, %v241
    %v245 = vrot.slane %v244, 4
    %v246 = vadd.f32 %v244, %v245
    %v247 = vrot.slane %v246, 2
    %v248 = vadd.f32 %v246, %v247
    %v249 = vrot.slane %v248, 1
    %v250 = vadd.f32 %v248, %v249
    %v251 = vmul.f32 %v238, %v238
    %v252 = vmul.f32 %v239, %v239
    %v253 = vmul.f32 %v240, %v240
    %v254 = vmul.f32 %v241, %v241
    %v255 = vadd.f32 %v251, %v252
    %v256 = vadd.f32 %v255, %v253
    %v257 = vadd.f32 %v256, %v254
    %v258 = vrot.slane %v257, 4
    %v259 = vadd.f32 %v257, %v258
    %v260 = vrot.slane %v259, 2
    %v261 = vadd.f32 %v259, %v260
    %v262 = vrot.slane %v261, 1
    %v263 = vadd.f32 %v261, %v262
    %vm264 = vcmask 1040384
    %v265 = vsel %vm264, %v250, %v263
    %vm266 = vcmask 1041408
    %v267 = vsel %vm266, %v265, 0.0
    %268 = vst [vmem:[%s3] sm:$0xff] %v267
    %v269 = vpack.c.bf16 %v239, %v238
    %v270 = vpack.c.bf16 %v241, %v240
    %v273 = vunpack.c.l.b16 %v269
    %v274 = vunpack.c.h.b16 %v269
    %v275 = vunpack.c.l.b16 %v270
    %v276 = vunpack.c.h.b16 %v270
    %v277 = vpack.c.b16 %v273, %v273
    %v278 = vpack.c.b16 %v274, %v274
    %v279 = vpack.c.b16 %v275, %v275
    %v280 = vpack.c.b16 %v276, %v276
    %285 = vst [vmem:[%s2] sm:$0xf] %v277
    %286 = vst [vmem:[%s2 + $0x4] sm:$0xf] %v278
    %287 = vst [vmem:[%s2 + $0x8] sm:$0xf] %v279
    %288 = vst [vmem:[%s2 + $0xc] sm:$0xf] %v280
  $region17: #{_lambda_.14} parent=0 // pred_fallthru
    _
  // Predicated region
  $region18: #{_lambda_.14} parent=0 // pred_check
    _
  $region19: #{_lambda_.14} parent=0 // pred_check_branch
    %290 = sbr.rel (0) target = $region21
  $region20: #{_lambda_.14} parent=0 // pred_region
    _
  $region21: #{_lambda_.14} parent=0 // pred_fallthru
    _
  // Predicated region
  $region22: #{_lambda_.14} parent=0 // pred_check
    _
  $region23: #{_lambda_.14} parent=0 // pred_check_branch
    %292 = sbr.rel (0) target = $region25
  $region24: #{_lambda_.14} parent=0 // pred_region
    _
  $region25: #{_lambda_.14} parent=0 // pred_fallthru
    _
  // Predicated region
  $region26: #{_lambda_.14} parent=0 // pred_check
    _
  $region27: #{_lambda_.14} parent=0 // pred_check_branch
    %294 = sbr.rel (0) target = $region29
  $region28: #{_lambda_.14} parent=0 // pred_region
    _
  $region29: #{_lambda_.14} parent=0 // pred_fallthru
    _
  // Predicated region
  $region30: #{_lambda_.14} parent=0 // pred_check
    _
  $region31: #{_lambda_.14} parent=0 // pred_check_branch
    %296 = sbr.rel (0) target = $region33
  $region32: #{_lambda_.14} parent=0 // pred_region
    _
  $region33: #{_lambda_.14} parent=0 // pred_fallthru
    _

// kernel: _lambda_.16
$region0: #{_lambda_.16}
  #allocation0 [shape = 'u32[]', space=smem, size = 0x4, offset = 0x4, fixed_abs, tag = 'smem constant byte address 0x4 - core index']
  #allocation1 [shape = 'u32[144,128]{1,0:T(1,128)}', space=vmem, size = 0x12000, scoped, tag = 'internal scratch']
  #allocation2 [shape = 'f32[8,128]{1,0:T(8,128)}', space=vmem, size = 0x1000, scoped, tag = 'scratch operand']
  %s0 = inlined_call_operand.vmem [shape: bf16[8,512], index: 0, kind: input, shape index: {}]
  %s1 = inlined_call_operand.vmem [shape: bf16[512,128], index: 1, kind: input, shape index: {}]
  %s2 = inlined_call_operand.vmem [shape: bf16[8,128], index: 2, kind: output, shape index: {}]
  %s3 = sld [smem:[#allocation0]]
  $region26: #{_lambda_.16} parent=0
    _
  %s5 = ssub.s32 1, %s3
  %s6 = scalar_select 0, %s5, %s3
  // Predicated region
  $region2: #{_lambda_.16} parent=0 // pred_check
    _
  $region3: #{_lambda_.16} parent=0 // pred_check_branch
    %8 = sbr.rel (0) target = $region5
  $region4: #{_lambda_.16} parent=0 // pred_region
    _
  $region5: #{_lambda_.16} parent=0 // pred_fallthru
    _
  // Predicated region
  $region6: #{_lambda_.16} parent=0 // pred_check
    _
  $region7: #{_lambda_.16} parent=0 // pred_check_branch
    %10 = sbr.rel (0) target = $region9
  $region8: #{_lambda_.16} parent=0 // pred_region
    _
  $region9: #{_lambda_.16} parent=0 // pred_fallthru
    _
  %p12 = scmp.eq.s32.totalorder 0, 0
  // Predicated region
  $region10: #{_lambda_.16} parent=0 // pred_check
    %p13 = pneg %p12
  $region11: #{_lambda_.16} parent=0 // pred_check_branch
    %15 = sbr.rel (%p13) target = $region13
  $region12: #{_lambda_.16} parent=0 // pred_region
    %16 = vst [vmem:[#allocation2] sm:$0xff] 0.0
  $region13: #{_lambda_.16} parent=0 // pred_fallthru
    _
  %v17 = vld [vmem:[#allocation2] sm:$0xff]
  %v18 = vld [vmem:[%s0] sm:$0xff]
  %v19 = vld [vmem:[%s0 + $0x8] sm:$0xff]
  %v20 = vld [vmem:[%s1] sm:$0xf]
  %v21 = vld [vmem:[%s1 + $0x4] sm:$0xf]
  %v22 = vld [vmem:[%s1 + $0x8] sm:$0xf]
  %v23 = vld [vmem:[%s1 + $0xc] sm:$0xf]
  %v24 = vld [vmem:[%s1 + $0x10] sm:$0xf]
  %v25 = vld [vmem:[%s1 + $0x14] sm:$0xf]
  %v26 = vld [vmem:[%s1 + $0x18] sm:$0xf]
  %v27 = vld [vmem:[%s1 + $0x1c] sm:$0xf]
  %v28 = vld [vmem:[%s1 + $0x20] sm:$0xf]
  %v29 = vld [vmem:[%s1 + $0x24] sm:$0xf]
  %v30 = vld [vmem:[%s1 + $0x28] sm:$0xf]
  %v31 = vld [vmem:[%s1 + $0x2c] sm:$0xf]
  %v32 = vld [vmem:[%s1 + $0x30] sm:$0xf]
  %v33 = vld [vmem:[%s1 + $0x34] sm:$0xf]
  %v34 = vld [vmem:[%s1 + $0x38] sm:$0xf]
  %v35 = vld [vmem:[%s1 + $0x3c] sm:$0xf]
  %v36 = vld [vmem:[%s1 + $0x40] sm:$0xf]
  %v37 = vld [vmem:[%s1 + $0x44] sm:$0xf]
  %v38 = vld [vmem:[%s1 + $0x48] sm:$0xf]
  %v39 = vld [vmem:[%s1 + $0x4c] sm:$0xf]
  %v40 = vld [vmem:[%s1 + $0x50] sm:$0xf]
  %v41 = vld [vmem:[%s1 + $0x54] sm:$0xf]
  %v42 = vld [vmem:[%s1 + $0x58] sm:$0xf]
  %v43 = vld [vmem:[%s1 + $0x5c] sm:$0xf]
  %v44 = vld [vmem:[%s1 + $0x60] sm:$0xf]
  %v45 = vld [vmem:[%s1 + $0x64] sm:$0xf]
  %v46 = vld [vmem:[%s1 + $0x68] sm:$0xf]
  %v47 = vld [vmem:[%s1 + $0x6c] sm:$0xf]
  %v48 = vld [vmem:[%s1 + $0x70] sm:$0xf]
  %v49 = vld [vmem:[%s1 + $0x74] sm:$0xf]
  %v50 = vld [vmem:[%s1 + $0x78] sm:$0xf]
  %v51 = vld [vmem:[%s1 + $0x7c] sm:$0xf]
  %v52 = vld [vmem:[%s1 + $0x80] sm:$0xf]
  %v53 = vld [vmem:[%s1 + $0x84] sm:$0xf]
  %v54 = vld [vmem:[%s1 + $0x88] sm:$0xf]
  %v55 = vld [vmem:[%s1 + $0x8c] sm:$0xf]
  %v56 = vld [vmem:[%s1 + $0x90] sm:$0xf]
  %v57 = vld [vmem:[%s1 + $0x94] sm:$0xf]
  %v58 = vld [vmem:[%s1 + $0x98] sm:$0xf]
  %v59 = vld [vmem:[%s1 + $0x9c] sm:$0xf]
  %v60 = vld [vmem:[%s1 + $0xa0] sm:$0xf]
  %v61 = vld [vmem:[%s1 + $0xa4] sm:$0xf]
  %v62 = vld [vmem:[%s1 + $0xa8] sm:$0xf]
  %v63 = vld [vmem:[%s1 + $0xac] sm:$0xf]
  %v64 = vld [vmem:[%s1 + $0xb0] sm:$0xf]
  %v65 = vld [vmem:[%s1 + $0xb4] sm:$0xf]
  %v66 = vld [vmem:[%s1 + $0xb8] sm:$0xf]
  %v67 = vld [vmem:[%s1 + $0xbc] sm:$0xf]
  %v68 = vld [vmem:[%s1 + $0xc0] sm:$0xf]
  %v69 = vld [vmem:[%s1 + $0xc4] sm:$0xf]
  %v70 = vld [vmem:[%s1 + $0xc8] sm:$0xf]
  %v71 = vld [vmem:[%s1 + $0xcc] sm:$0xf]
  %v72 = vld [vmem:[%s1 + $0xd0] sm:$0xf]
  %v73 = vld [vmem:[%s1 + $0xd4] sm:$0xf]
  %v74 = vld [vmem:[%s1 + $0xd8] sm:$0xf]
  %v75 = vld [vmem:[%s1 + $0xdc] sm:$0xf]
  %v76 = vld [vmem:[%s1 + $0xe0] sm:$0xf]
  %v77 = vld [vmem:[%s1 + $0xe4] sm:$0xf]
  %v78 = vld [vmem:[%s1 + $0xe8] sm:$0xf]
  %v79 = vld [vmem:[%s1 + $0xec] sm:$0xf]
  %v80 = vld [vmem:[%s1 + $0xf0] sm:$0xf]
  %v81 = vld [vmem:[%s1 + $0xf4] sm:$0xf]
  %v82 = vld [vmem:[%s1 + $0xf8] sm:$0xf]
  %v83 = vld [vmem:[%s1 + $0xfc] sm:$0xf]
  %v86 = vunpack.c.l.b16 %v18
  %v87 = vunpack.c.h.b16 %v18
  %v88 = vunpack.c.l.b16 %v19
  %v89 = vunpack.c.h.b16 %v19
  %v90 = vpack.c.b16 %v86, %v86
  %v91 = vpack.c.b16 %v87, %v87
  %v92 = vpack.c.b16 %v88, %v88
  %v93 = vpack.c.b16 %v89, %v89
  %v162 = vunpack.c.l.b16 %v20
  %v163 = vunpack.c.l.b16 %v21
  %v164 = vunpack.c.l.b16 %v22
  %v165 = vunpack.c.l.b16 %v23
  %v166 = vunpack.c.l.b16 %v24
  %v167 = vunpack.c.l.b16 %v25
  %v168 = vunpack.c.l.b16 %v26
  %v169 = vunpack.c.l.b16 %v27
  %v170 = vunpack.c.l.b16 %v28
  %v171 = vunpack.c.l.b16 %v29
  %v172 = vunpack.c.l.b16 %v30
  %v173 = vunpack.c.l.b16 %v31
  %v174 = vunpack.c.l.b16 %v32
  %v175 = vunpack.c.l.b16 %v33
  %v176 = vunpack.c.l.b16 %v34
  %v177 = vunpack.c.l.b16 %v35
  %v178 = vunpack.c.l.b16 %v36
  %v179 = vunpack.c.l.b16 %v37
  %v180 = vunpack.c.l.b16 %v38
  %v181 = vunpack.c.l.b16 %v39
  %v182 = vunpack.c.l.b16 %v40
  %v183 = vunpack.c.l.b16 %v41
  %v184 = vunpack.c.l.b16 %v42
  %v185 = vunpack.c.l.b16 %v43
  %v186 = vunpack.c.l.b16 %v44
  %v187 = vunpack.c.l.b16 %v45
  %v188 = vunpack.c.l.b16 %v46
  %v189 = vunpack.c.l.b16 %v47
  %v190 = vunpack.c.l.b16 %v48
  %v191 = vunpack.c.l.b16 %v49
  %v192 = vunpack.c.l.b16 %v50
  %v193 = vunpack.c.l.b16 %v51
  %v194 = vunpack.c.l.b16 %v52
  %v195 = vunpack.c.l.b16 %v53
  %v196 = vunpack.c.l.b16 %v54
  %v197 = vunpack.c.l.b16 %v55
  %v198 = vunpack.c.l.b16 %v56
  %v199 = vunpack.c.l.b16 %v57
  %v200 = vunpack.c.l.b16 %v58
  %v201 = vunpack.c.l.b16 %v59
  %v202 = vunpack.c.l.b16 %v60
  %v203 = vunpack.c.l.b16 %v61
  %v204 = vunpack.c.l.b16 %v62
  %v205 = vunpack.c.l.b16 %v63
  %v206 = vunpack.c.l.b16 %v64
  %v207 = vunpack.c.l.b16 %v65
  %v208 = vunpack.c.l.b16 %v66
  %v209 = vunpack.c.l.b16 %v67
  %v210 = vunpack.c.l.b16 %v68
  %v211 = vunpack.c.l.b16 %v69
  %v212 = vunpack.c.l.b16 %v70
  %v213 = vunpack.c.l.b16 %v71
  %v214 = vunpack.c.l.b16 %v72
  %v215 = vunpack.c.l.b16 %v73
  %v216 = vunpack.c.l.b16 %v74
  %v217 = vunpack.c.l.b16 %v75
  %v218 = vunpack.c.l.b16 %v76
  %v219 = vunpack.c.l.b16 %v77
  %v220 = vunpack.c.l.b16 %v78
  %v221 = vunpack.c.l.b16 %v79
  %v222 = vunpack.c.l.b16 %v80
  %v223 = vunpack.c.l.b16 %v81
  %v224 = vunpack.c.l.b16 %v82
  %v225 = vunpack.c.l.b16 %v83
  %v226 = vpack.c.b16 %v163, %v162
  %v227 = vpack.c.b16 %v165, %v164
  %v228 = vpack.c.b16 %v167, %v166
  %v229 = vpack.c.b16 %v169, %v168
  %v230 = vpack.c.b16 %v171, %v170
  %v231 = vpack.c.b16 %v173, %v172
  %v232 = vpack.c.b16 %v175, %v174
  %v233 = vpack.c.b16 %v177, %v176
  %v234 = vpack.c.b16 %v179, %v178
  %v235 = vpack.c.b16 %v181, %v180
  %v236 = vpack.c.b16 %v183, %v182
  %v237 = vpack.c.b16 %v185, %v184
  %v238 = vpack.c.b16 %v187, %v186
  %v239 = vpack.c.b16 %v189, %v188
  %v240 = vpack.c.b16 %v191, %v190
  %v241 = vpack.c.b16 %v193, %v192
  %v242 = vpack.c.b16 %v195, %v194
  %v243 = vpack.c.b16 %v197, %v196
  %v244 = vpack.c.b16 %v199, %v198
  %v245 = vpack.c.b16 %v201, %v200
  %v246 = vpack.c.b16 %v203, %v202
  %v247 = vpack.c.b16 %v205, %v204
  %v248 = vpack.c.b16 %v207, %v206
  %v249 = vpack.c.b16 %v209, %v208
  %v250 = vpack.c.b16 %v211, %v210
  %v251 = vpack.c.b16 %v213, %v212
  %v252 = vpack.c.b16 %v215, %v214
  %v253 = vpack.c.b16 %v217, %v216
  %v254 = vpack.c.b16 %v219, %v218
  %v255 = vpack.c.b16 %v221, %v220
  %v256 = vpack.c.b16 %v223, %v222
  %v257 = vpack.c.b16 %v225, %v224
  %290 = vmatprep.subr.bf16.mxu0 0
  %291 = vmatpush1.bf16.msra.mxu0 %v233
  %292 = vmatprep.subr.bf16.mxu0 0
  %293 = vmatpush1.bf16.msra.mxu0 %v232
  %294 = vmatprep.subr.bf16.mxu0 0
  %295 = vmatpush1.bf16.msra.mxu0 %v231
  %296 = vmatprep.subr.bf16.mxu0 0
  %297 = vmatpush1.bf16.msra.mxu0 %v230
  %298 = vmatprep.subr.bf16.mxu0 0
  %299 = vmatpush1.bf16.msra.mxu0 %v229
  %300 = vmatprep.subr.bf16.mxu0 0
  %301 = vmatpush1.bf16.msra.mxu0 %v228
  %302 = vmatprep.subr.bf16.mxu0 0
  %303 = vmatpush1.bf16.msra.mxu0 %v227
  %304 = vmatprep.subr.bf16.mxu0 0
  %305 = vmatpush1.bf16.msra.mxu0 %v226
  %306 = vmatprep.subr.bf16.mxu0 0
  %307 = vmatpush2.bf16.msra.mxu0 %v241
  %308 = vmatprep.subr.bf16.mxu0 0
  %309 = vmatpush2.bf16.msra.mxu0 %v240
  %310 = vmatprep.subr.bf16.mxu0 0
  %311 = vmatpush2.bf16.msra.mxu0 %v239
  %312 = vmatprep.subr.bf16.mxu0 0
  %313 = vmatpush2.bf16.msra.mxu0 %v238
  %314 = vmatprep.subr.bf16.mxu0 0
  %315 = vmatpush2.bf16.msra.mxu0 %v237
  %316 = vmatprep.subr.bf16.mxu0 0
  %317 = vmatpush2.bf16.msra.mxu0 %v236
  %318 = vmatprep.subr.bf16.mxu0 0
  %319 = vmatpush2.bf16.msra.mxu0 %v235
  %320 = vmatprep.subr.bf16.mxu0 0
  %321 = vmatpush2.bf16.msra.mxu0 %v234
  %322 = vmatprep.mubr.bf16.mxu0 %v91
  %323 = vmatmul.mubr.bf16.gmra.mxu0 %v90
  %v324 = vpop.f32.mrf.mxu0
  %v325 = vadd.f32 0.0, %v324
  %v326 = vpop.f32.mrf.mxu0
  %v327 = vpop.f32.mrf.mxu0
  %v328 = vpop.f32.mrf.mxu0
  %329 = vdwg.mxu0
  %330 = vmatprep.subr.bf16.mxu0 0
  %331 = vmatpush1.bf16.msra.mxu0 %v249
  %332 = vmatprep.subr.bf16.mxu0 0
  %333 = vmatpush1.bf16.msra.mxu0 %v248
  %334 = vmatprep.subr.bf16.mxu0 0
  %335 = vmatpush1.bf16.msra.mxu0 %v247
  %336 = vmatprep.subr.bf16.mxu0 0
  %337 = vmatpush1.bf16.msra.mxu0 %v246
  %338 = vmatprep.subr.bf16.mxu0 0
  %339 = vmatpush1.bf16.msra.mxu0 %v245
  %340 = vmatprep.subr.bf16.mxu0 0
  %341 = vmatpush1.bf16.msra.mxu0 %v244
  %342 = vmatprep.subr.bf16.mxu0 0
  %343 = vmatpush1.bf16.msra.mxu0 %v243
  %344 = vmatprep.subr.bf16.mxu0 0
  %345 = vmatpush1.bf16.msra.mxu0 %v242
  %346 = vmatprep.subr.bf16.mxu0 0
  %347 = vmatpush2.bf16.msra.mxu0 %v257
  %348 = vmatprep.subr.bf16.mxu0 0
  %349 = vmatpush2.bf16.msra.mxu0 %v256
  %350 = vmatprep.subr.bf16.mxu0 0
  %351 = vmatpush2.bf16.msra.mxu0 %v255
  %352 = vmatprep.subr.bf16.mxu0 0
  %353 = vmatpush2.bf16.msra.mxu0 %v254
  %354 = vmatprep.subr.bf16.mxu0 0
  %355 = vmatpush2.bf16.msra.mxu0 %v253
  %356 = vmatprep.subr.bf16.mxu0 0
  %357 = vmatpush2.bf16.msra.mxu0 %v252
  %358 = vmatprep.subr.bf16.mxu0 0
  %359 = vmatpush2.bf16.msra.mxu0 %v251
  %360 = vmatprep.subr.bf16.mxu0 0
  %361 = vmatpush2.bf16.msra.mxu0 %v250
  %362 = vmatprep.mubr.bf16.mxu0 %v93
  %363 = vmatmul.mubr.bf16.gmra.mxu0 %v92
  %v364 = vpop.f32.mrf.mxu0
  %v365 = vadd.f32 %v325, %v364
  %v366 = vpop.f32.mrf.mxu0
  %v367 = vpop.f32.mrf.mxu0
  %v368 = vpop.f32.mrf.mxu0
  %369 = vdwg.mxu0
  %v370 = vadd.f32 %v17, %v365
  %371 = vst [vmem:[#allocation2] sm:$0xff] %v370
  // Predicated region
  $region14: #{_lambda_.16} parent=0 // pred_check
    %p372 = pneg %p12
  $region15: #{_lambda_.16} parent=0 // pred_check_branch
    %374 = sbr.rel (%p372) target = $region17
  $region16: #{_lambda_.16} parent=0 // pred_region
    %v375 = vld [vmem:[#allocation2] sm:$0xff]
    %v376 = vpack.c.bf16 %v375, %v375
    %377 = vst [vmem:[%s2] sm:$0xf] %v376
  $region17: #{_lambda_.16} parent=0 // pred_fallthru
    _
  // Predicated region
  $region18: #{_lambda_.16} parent=0 // pred_check
    _
  $region19: #{_lambda_.16} parent=0 // pred_check_branch
    %379 = sbr.rel (0) target = $region21
  $region20: #{_lambda_.16} parent=0 // pred_region
    _
  $region21: #{_lambda_.16} parent=0 // pred_fallthru
    _
  // Predicated region
  $region22: #{_lambda_.16} parent=0 // pred_check
    _
  $region23: #{_lambda_.16} parent=0 // pred_check_branch
    %381 = sbr.rel (0) target = $region25
  $region24: #{_lambda_.16} parent=0 // pred_region
    _
  $region25: #{_lambda_.16} parent=0 // pred_fallthru
    _

// kernel: _lambda_.17
$region0: #{_lambda_.17}
  #allocation0 [shape = 'u32[]', space=smem, size = 0x4, offset = 0x4, fixed_abs, tag = 'smem constant byte address 0x4 - core index']
  #allocation1 [shape = 'u32[144,128]{1,0:T(1,128)}', space=vmem, size = 0x12000, scoped, tag = 'internal scratch']
  #allocation2 [shape = 'f32[32,128]{1,0:T(8,128)}', space=vmem, size = 0x4000, scoped, tag = 'scratch operand']
  %s0 = inlined_call_operand.vmem [shape: bf16[32,128], index: 0, kind: input, shape index: {}]
  %s1 = inlined_call_operand.vmem [shape: bf16[128,128], index: 1, kind: input, shape index: {}]
  %s2 = inlined_call_operand.vmem [shape: bf16[32,128], index: 2, kind: output, shape index: {0}]
  %s3 = inlined_call_operand.vmem [shape: f32[8,128], index: 3, kind: output, shape index: {1}]
  %4 = xla_tuple %s2, %s3
  %s5 = sld [smem:[#allocation0]]
  $region34: #{_lambda_.17} parent=0
    _
  %s7 = ssub.s32 1, %s5
  %s8 = scalar_select 0, %s7, %s5
  // Predicated region
  $region2: #{_lambda_.17} parent=0 // pred_check
    _
  $region3: #{_lambda_.17} parent=0 // pred_check_branch
    %10 = sbr.rel (0) target = $region5
  $region4: #{_lambda_.17} parent=0 // pred_region
    _
  $region5: #{_lambda_.17} parent=0 // pred_fallthru
    _
  // Predicated region
  $region6: #{_lambda_.17} parent=0 // pred_check
    _
  $region7: #{_lambda_.17} parent=0 // pred_check_branch
    %12 = sbr.rel (0) target = $region9
  $region8: #{_lambda_.17} parent=0 // pred_region
    _
  $region9: #{_lambda_.17} parent=0 // pred_fallthru
    _
  %p14 = scmp.eq.s32.totalorder 0, 0
  // Predicated region
  $region10: #{_lambda_.17} parent=0 // pred_check
    %p15 = pneg %p14
  $region11: #{_lambda_.17} parent=0 // pred_check_branch
    %17 = sbr.rel (%p15) target = $region13
  $region12: #{_lambda_.17} parent=0 // pred_region
    %18 = vst [vmem:[#allocation2] sm:$0xff] 0.0
    %19 = vst [vmem:[#allocation2 + $0x8] sm:$0xff] 0.0
    %20 = vst [vmem:[#allocation2 + $0x10] sm:$0xff] 0.0
    %21 = vst [vmem:[#allocation2 + $0x18] sm:$0xff] 0.0
  $region13: #{_lambda_.17} parent=0 // pred_fallthru
    _
  %v22 = vld [vmem:[#allocation2] sm:$0xff]
  %v23 = vld [vmem:[#allocation2 + $0x8] sm:$0xff]
  %v24 = vld [vmem:[#allocation2 + $0x10] sm:$0xff]
  %v25 = vld [vmem:[#allocation2 + $0x18] sm:$0xff]
  %v26 = vld [vmem:[%s0] sm:$0xf]
  %v27 = vld [vmem:[%s0 + $0x4] sm:$0xf]
  %v28 = vld [vmem:[%s0 + $0x8] sm:$0xf]
  %v29 = vld [vmem:[%s0 + $0xc] sm:$0xf]
  %v30 = vld [vmem:[%s1] sm:$0xf]
  %v31 = vld [vmem:[%s1 + $0x4] sm:$0xf]
  %v32 = vld [vmem:[%s1 + $0x8] sm:$0xf]
  %v33 = vld [vmem:[%s1 + $0xc] sm:$0xf]
  %v34 = vld [vmem:[%s1 + $0x10] sm:$0xf]
  %v35 = vld [vmem:[%s1 + $0x14] sm:$0xf]
  %v36 = vld [vmem:[%s1 + $0x18] sm:$0xf]
  %v37 = vld [vmem:[%s1 + $0x1c] sm:$0xf]
  %v38 = vld [vmem:[%s1 + $0x20] sm:$0xf]
  %v39 = vld [vmem:[%s1 + $0x24] sm:$0xf]
  %v40 = vld [vmem:[%s1 + $0x28] sm:$0xf]
  %v41 = vld [vmem:[%s1 + $0x2c] sm:$0xf]
  %v42 = vld [vmem:[%s1 + $0x30] sm:$0xf]
  %v43 = vld [vmem:[%s1 + $0x34] sm:$0xf]
  %v44 = vld [vmem:[%s1 + $0x38] sm:$0xf]
  %v45 = vld [vmem:[%s1 + $0x3c] sm:$0xf]
  %v50 = vunpack.c.l.b16 %v26
  %v51 = vunpack.c.l.b16 %v27
  %v52 = vunpack.c.l.b16 %v28
  %v53 = vunpack.c.l.b16 %v29
  %v54 = vpack.c.b16 %v51, %v50
  %v55 = vpack.c.b16 %v53, %v52
  %v74 = vunpack.c.l.b16 %v30
  %v75 = vunpack.c.l.b16 %v31
  %v76 = vunpack.c.l.b16 %v32
  %v77 = vunpack.c.l.b16 %v33
  %v78 = vunpack.c.l.b16 %v34
  %v79 = vunpack.c.l.b16 %v35
  %v80 = vunpack.c.l.b16 %v36
  %v81 = vunpack.c.l.b16 %v37
  %v82 = vunpack.c.l.b16 %v38
  %v83 = vunpack.c.l.b16 %v39
  %v84 = vunpack.c.l.b16 %v40
  %v85 = vunpack.c.l.b16 %v41
  %v86 = vunpack.c.l.b16 %v42
  %v87 = vunpack.c.l.b16 %v43
  %v88 = vunpack.c.l.b16 %v44
  %v89 = vunpack.c.l.b16 %v45
  %v90 = vpack.c.b16 %v75, %v74
  %v91 = vpack.c.b16 %v77, %v76
  %v92 = vpack.c.b16 %v79, %v78
  %v93 = vpack.c.b16 %v81, %v80
  %v94 = vpack.c.b16 %v83, %v82
  %v95 = vpack.c.b16 %v85, %v84
  %v96 = vpack.c.b16 %v87, %v86
  %v97 = vpack.c.b16 %v89, %v88
  %106 = vmatprep.subr.bf16.mxu0 0
  %107 = vmatpush1.bf16.msra.mxu0 %v97
  %108 = vmatprep.subr.bf16.mxu0 0
  %109 = vmatpush1.bf16.msra.mxu0 %v96
  %110 = vmatprep.subr.bf16.mxu0 0
  %111 = vmatpush1.bf16.msra.mxu0 %v95
  %112 = vmatprep.subr.bf16.mxu0 0
  %113 = vmatpush1.bf16.msra.mxu0 %v94
  %114 = vmatprep.subr.bf16.mxu0 0
  %115 = vmatpush1.bf16.msra.mxu0 %v93
  %116 = vmatprep.subr.bf16.mxu0 0
  %117 = vmatpush1.bf16.msra.mxu0 %v92
  %118 = vmatprep.subr.bf16.mxu0 0
  %119 = vmatpush1.bf16.msra.mxu0 %v91
  %120 = vmatprep.subr.bf16.mxu0 0
  %121 = vmatpush1.bf16.msra.mxu0 %v90
  %122 = vmatprep.subr.bf16.mxu0 0
  %123 = vmatpush2.bf16.msra.mxu0 0
  %124 = vmatprep.subr.bf16.mxu0 0
  %125 = vmatpush2.bf16.msra.mxu0 0
  %126 = vmatprep.subr.bf16.mxu0 0
  %127 = vmatpush2.bf16.msra.mxu0 0
  %128 = vmatprep.subr.bf16.mxu0 0
  %129 = vmatpush2.bf16.msra.mxu0 0
  %130 = vmatprep.subr.bf16.mxu0 0
  %131 = vmatpush2.bf16.msra.mxu0 0
  %132 = vmatprep.subr.bf16.mxu0 0
  %133 = vmatpush2.bf16.msra.mxu0 0
  %134 = vmatprep.subr.bf16.mxu0 0
  %135 = vmatpush2.bf16.msra.mxu0 0
  %136 = vmatprep.subr.bf16.mxu0 0
  %137 = vmatpush2.bf16.msra.mxu0 0
  %138 = vmatprep.mubr.bf16.mxu0 0
  %139 = vmatmul.mubr.bf16.gmra.mxu0 %v54
  %v140 = vpop.f32.mrf.mxu0
  %v141 = vadd.f32 0.0, %v140
  %v142 = vpop.f32.mrf.mxu0
  %v143 = vpop.f32.mrf.mxu0
  %v144 = vadd.f32 0.0, %v143
  %v145 = vpop.f32.mrf.mxu0
  %146 = vmatprep.mubr.bf16.mxu0 0
  %147 = vmatmul.mubr.bf16.gmra.mxu0 %v55
  %v148 = vpop.f32.mrf.mxu0
  %v149 = vadd.f32 0.0, %v148
  %v150 = vpop.f32.mrf.mxu0
  %v151 = vpop.f32.mrf.mxu0
  %v152 = vadd.f32 0.0, %v151
  %v153 = vpop.f32.mrf.mxu0
  %154 = vdwg.mxu0
  %v155 = vadd.f32 %v22, %v141
  %v156 = vadd.f32 %v23, %v144
  %v157 = vadd.f32 %v24, %v149
  %v158 = vadd.f32 %v25, %v152
  %159 = vst [vmem:[#allocation2] sm:$0xff] %v155
  %160 = vst [vmem:[#allocation2 + $0x8] sm:$0xff] %v156
  %161 = vst [vmem:[#allocation2 + $0x10] sm:$0xff] %v157
  %162 = vst [vmem:[#allocation2 + $0x18] sm:$0xff] %v158
  // Predicated region
  $region14: #{_lambda_.17} parent=0 // pred_check
    %p163 = pneg %p14
  $region15: #{_lambda_.17} parent=0 // pred_check_branch
    %165 = sbr.rel (%p163) target = $region17
  $region16: #{_lambda_.17} parent=0 // pred_region
    %v166 = vld [vmem:[#allocation2] sm:$0xff]
    %v167 = vld [vmem:[#allocation2 + $0x8] sm:$0xff]
    %v168 = vld [vmem:[#allocation2 + $0x10] sm:$0xff]
    %v169 = vld [vmem:[#allocation2 + $0x18] sm:$0xff]
    %v170 = vadd.f32 %v166, %v167
    %v171 = vadd.f32 %v170, %v168
    %v172 = vadd.f32 %v171, %v169
    %v173 = vrot.slane %v172, 4
    %v174 = vadd.f32 %v172, %v173
    %v175 = vrot.slane %v174, 2
    %v176 = vadd.f32 %v174, %v175
    %v177 = vrot.slane %v176, 1
    %v178 = vadd.f32 %v176, %v177
    %v179 = vmul.f32 %v166, %v166
    %v180 = vmul.f32 %v167, %v167
    %v181 = vmul.f32 %v168, %v168
    %v182 = vmul.f32 %v169, %v169
    %v183 = vadd.f32 %v179, %v180
    %v184 = vadd.f32 %v183, %v181
    %v185 = vadd.f32 %v184, %v182
    %v186 = vrot.slane %v185, 4
    %v187 = vadd.f32 %v185, %v186
    %v188 = vrot.slane %v187, 2
    %v189 = vadd.f32 %v187, %v188
    %v190 = vrot.slane %v189, 1
    %v191 = vadd.f32 %v189, %v190
    %vm192 = vcmask 1040384
    %v193 = vsel %vm192, %v178, %v191
    %vm194 = vcmask 1041408
    %v195 = vsel %vm194, %v193, 0.0
    %196 = vst [vmem:[%s3] sm:$0xff] %v195
    %v197 = vpack.c.bf16 %v167, %v166
    %v198 = vpack.c.bf16 %v169, %v168
    %v201 = vunpack.c.l.b16 %v197
    %v202 = vunpack.c.h.b16 %v197
    %v203 = vunpack.c.l.b16 %v198
    %v204 = vunpack.c.h.b16 %v198
    %v205 = vpack.c.b16 %v201, %v201
    %v206 = vpack.c.b16 %v202, %v202
    %v207 = vpack.c.b16 %v203, %v203
    %v208 = vpack.c.b16 %v204, %v204
    %213 = vst [vmem:[%s2] sm:$0xf] %v205
    %214 = vst [vmem:[%s2 + $0x4] sm:$0xf] %v206
    %215 = vst [vmem:[%s2 + $0x8] sm:$0xf] %v207
    %216 = vst [vmem:[%s2 + $0xc] sm:$0xf] %v208
  $region17: #{_lambda_.17} parent=0 // pred_fallthru
    _
  // Predicated region
  $region18: #{_lambda_.17} parent=0 // pred_check
    _
  $region19: #{_lambda_.17} parent=0 // pred_check_branch
    %218 = sbr.rel (0) target = $region21
  $region20: #{_lambda_.17} parent=0 // pred_region
    _
  $region21: #{_lambda_.17} parent=0 // pred_fallthru
    _
  // Predicated region
  $region22: #{_lambda_.17} parent=0 // pred_check
    _
  $region23: #{_lambda_.17} parent=0 // pred_check_branch
    %220 = sbr.rel (0) target = $region25
  $region24: #{_lambda_.17} parent=0 // pred_region
    _
  $region25: #{_lambda_.17} parent=0 // pred_fallthru
    _
  // Predicated region
  $region26: #{_lambda_.17} parent=0 // pred_check
    _
  $region27: #{_lambda_.17} parent=0 // pred_check_branch
    %222 = sbr.rel (0) target = $region29
  $region28: #{_lambda_.17} parent=0 // pred_region
    _
  $region29: #{_lambda_.17} parent=0 // pred_fallthru
    _
  // Predicated region
  $region30: #{_lambda_.17} parent=0 // pred_check
    _
  $region31: #{_lambda_.17} parent=0 // pred_check_branch
    %224 = sbr.rel (0) target = $region33
  $region32: #{_lambda_.17} parent=0 // pred_region
    _
  $region33: #{_lambda_.17} parent=0 // pred_fallthru
    _

// kernel: _lambda_.18
$region0: #{_lambda_.18}
  #allocation0 [shape = 'u32[]', space=smem, size = 0x4, offset = 0x4, fixed_abs, tag = 'smem constant byte address 0x4 - core index']
  #allocation1 [shape = 'u32[144,128]{1,0:T(1,128)}', space=vmem, size = 0x12000, scoped, tag = 'internal scratch']
  %s0 = inlined_call_operand.vmem [shape: bf16[32,128], index: 0, kind: input, shape index: {}]
  %s1 = inlined_call_operand.vmem [shape: f32[8,128], index: 1, kind: input, shape index: {}]
  %s2 = inlined_call_operand.vmem [shape: bf16[32,128], index: 2, kind: output, shape index: {}]
  %s3 = sld [smem:[#allocation0]]
  $region18: #{_lambda_.18} parent=0
    _
  %s5 = ssub.s32 1, %s3
  %s6 = scalar_select 0, %s5, %s3
  // Predicated region
  $region2: #{_lambda_.18} parent=0 // pred_check
    _
  $region3: #{_lambda_.18} parent=0 // pred_check_branch
    %8 = sbr.rel (0) target = $region5
  $region4: #{_lambda_.18} parent=0 // pred_region
    _
  $region5: #{_lambda_.18} parent=0 // pred_fallthru
    _
  // Predicated region
  $region6: #{_lambda_.18} parent=0 // pred_check
    _
  $region7: #{_lambda_.18} parent=0 // pred_check_branch
    %10 = sbr.rel (0) target = $region9
  $region8: #{_lambda_.18} parent=0 // pred_region
    _
  $region9: #{_lambda_.18} parent=0 // pred_fallthru
    _
  %v11 = vld [vmem:[%s1] sm:$0x1]
  %v12 = vmul.f32 %v11, 0.03125
  %v13 = vld [vmem:[%s1 + $0x1] sm:$0x1]
  %v14 = vmul.f32 %v13, 0.03125
  %v15 = vmul.f32 %v12, %v12
  %v16 = vsub.f32 %v14, %v15
  %v17 = vmax.f32 %v16, 0.0
  %v18 = vadd.f32 %v17, 1e-05
  %v19 = vrsqrt.pop %v18
  %v20 = vld [vmem:[%s0] sm:$0xf]
  %v21 = vld [vmem:[%s0 + $0x4] sm:$0xf]
  %v22 = vld [vmem:[%s0 + $0x8] sm:$0xf]
  %v23 = vld [vmem:[%s0 + $0xc] sm:$0xf]
  %v24 = vunpack.c.l.bf16 %v20
  %v25 = vunpack.c.l.bf16 %v21
  %v26 = vunpack.c.l.bf16 %v22
  %v27 = vunpack.c.l.bf16 %v23
  %v28 = vlaneseq
  %v29 = vshrl.u32 %v28, 7
  %v30 = vsub.s32 0, %v29
  %v31 = vrot.slane %v12, %v30
  %v32 = vsub.f32 %v24, %v31
  %v33 = vsub.f32 %v25, %v31
  %v34 = vsub.f32 %v26, %v31
  %v35 = vsub.f32 %v27, %v31
  %v36 = vlaneseq
  %v37 = vshrl.u32 %v36, 7
  %v38 = vsub.s32 0, %v37
  %v39 = vrot.slane %v19, %v38
  %v40 = vmul.f32 %v32, %v39
  %v41 = vmul.f32 %v33, %v39
  %v42 = vmul.f32 %v34, %v39
  %v43 = vmul.f32 %v35, %v39
  %v44 = vpack.c.bf16 %v41, %v40
  %v45 = vpack.c.bf16 %v43, %v42
  %v48 = vunpack.c.l.b16 %v44
  %v49 = vunpack.c.h.b16 %v44
  %v50 = vunpack.c.l.b16 %v45
  %v51 = vunpack.c.h.b16 %v45
  %v52 = vpack.c.b16 %v48, %v48
  %v53 = vpack.c.b16 %v49, %v49
  %v54 = vpack.c.b16 %v50, %v50
  %v55 = vpack.c.b16 %v51, %v51
  %60 = vst [vmem:[%s2] sm:$0xf] %v52
  %61 = vst [vmem:[%s2 + $0x4] sm:$0xf] %v53
  %62 = vst [vmem:[%s2 + $0x8] sm:$0xf] %v54
  %63 = vst [vmem:[%s2 + $0xc] sm:$0xf] %v55
  // Predicated region
  $region10: #{_lambda_.18} parent=0 // pred_check
    _
  $region11: #{_lambda_.18} parent=0 // pred_check_branch
    %65 = sbr.rel (0) target = $region13
  $region12: #{_lambda_.18} parent=0 // pred_region
    _
  $region13: #{_lambda_.18} parent=0 // pred_fallthru
    _
  // Predicated region
  $region14: #{_lambda_.18} parent=0 // pred_check
    _
  $region15: #{_lambda_.18} parent=0 // pred_check_branch
    %67 = sbr.rel (0) target = $region17
  $region16: #{_lambda_.18} parent=0 // pred_region
    _
  $region17: #{_lambda_.18} parent=0 // pred_fallthru
    _

// kernel: _lambda_.20
$region0: #{_lambda_.20}
  #allocation0 [shape = 'u32[]', space=smem, size = 0x4, offset = 0x4, fixed_abs, tag = 'smem constant byte address 0x4 - core index']
  #allocation1 [shape = 'u32[144,128]{1,0:T(1,128)}', space=vmem, size = 0x12000, scoped, tag = 'internal scratch']
  %s0 = inlined_call_operand.vmem [shape: bf16[128,128], index: 0, kind: input, shape index: {}]
  %s1 = inlined_call_operand.vmem [shape: f32[8,128], index: 1, kind: input, shape index: {}]
  %s2 = inlined_call_operand.vmem [shape: bf16[128,128], index: 2, kind: output, shape index: {}]
  %s3 = sld [smem:[#allocation0]]
  $region18: #{_lambda_.20} parent=0
    _
  %s5 = ssub.s32 1, %s3
  %s6 = scalar_select 0, %s5, %s3
  // Predicated region
  $region2: #{_lambda_.20} parent=0 // pred_check
    _
  $region3: #{_lambda_.20} parent=0 // pred_check_branch
    %8 = sbr.rel (0) target = $region5
  $region4: #{_lambda_.20} parent=0 // pred_region
    _
  $region5: #{_lambda_.20} parent=0 // pred_fallthru
    _
  // Predicated region
  $region6: #{_lambda_.20} parent=0 // pred_check
    _
  $region7: #{_lambda_.20} parent=0 // pred_check_branch
    %10 = sbr.rel (0) target = $region9
  $region8: #{_lambda_.20} parent=0 // pred_region
    _
  $region9: #{_lambda_.20} parent=0 // pred_fallthru
    _
  %v11 = vld [vmem:[%s1] sm:$0x1]
  %v12 = vmul.f32 %v11, 0.0078125
  %v13 = vld [vmem:[%s1 + $0x1] sm:$0x1]
  %v14 = vmul.f32 %v13, 0.0078125
  %v15 = vmul.f32 %v12, %v12
  %v16 = vsub.f32 %v14, %v15
  %v17 = vmax.f32 %v16, 0.0
  %v18 = vadd.f32 %v17, 1e-05
  %v19 = vrsqrt.pop %v18
  %v20 = vld [vmem:[%s0] sm:$0xf]
  %v21 = vld [vmem:[%s0 + $0x4] sm:$0xf]
  %v22 = vld [vmem:[%s0 + $0x8] sm:$0xf]
  %v23 = vld [vmem:[%s0 + $0xc] sm:$0xf]
  %v24 = vld [vmem:[%s0 + $0x10] sm:$0xf]
  %v25 = vld [vmem:[%s0 + $0x14] sm:$0xf]
  %v26 = vld [vmem:[%s0 + $0x18] sm:$0xf]
  %v27 = vld [vmem:[%s0 + $0x1c] sm:$0xf]
  %v28 = vld [vmem:[%s0 + $0x20] sm:$0xf]
  %v29 = vld [vmem:[%s0 + $0x24] sm:$0xf]
  %v30 = vld [vmem:[%s0 + $0x28] sm:$0xf]
  %v31 = vld [vmem:[%s0 + $0x2c] sm:$0xf]
  %v32 = vld [vmem:[%s0 + $0x30] sm:$0xf]
  %v33 = vld [vmem:[%s0 + $0x34] sm:$0xf]
  %v34 = vld [vmem:[%s0 + $0x38] sm:$0xf]
  %v35 = vld [vmem:[%s0 + $0x3c] sm:$0xf]
  %v36 = vunpack.c.l.bf16 %v20
  %v37 = vunpack.c.l.bf16 %v21
  %v38 = vunpack.c.l.bf16 %v22
  %v39 = vunpack.c.l.bf16 %v23
  %v40 = vunpack.c.l.bf16 %v24
  %v41 = vunpack.c.l.bf16 %v25
  %v42 = vunpack.c.l.bf16 %v26
  %v43 = vunpack.c.l.bf16 %v27
  %v44 = vunpack.c.l.bf16 %v28
  %v45 = vunpack.c.l.bf16 %v29
  %v46 = vunpack.c.l.bf16 %v30
  %v47 = vunpack.c.l.bf16 %v31
  %v48 = vunpack.c.l.bf16 %v32
  %v49 = vunpack.c.l.bf16 %v33
  %v50 = vunpack.c.l.bf16 %v34
  %v51 = vunpack.c.l.bf16 %v35
  %v52 = vlaneseq
  %v53 = vshrl.u32 %v52, 7
  %v54 = vsub.s32 0, %v53
  %v55 = vrot.slane %v12, %v54
  %v56 = vsub.f32 %v36, %v55
  %v57 = vsub.f32 %v37, %v55
  %v58 = vsub.f32 %v38, %v55
  %v59 = vsub.f32 %v39, %v55
  %v60 = vsub.f32 %v40, %v55
  %v61 = vsub.f32 %v41, %v55
  %v62 = vsub.f32 %v42, %v55
  %v63 = vsub.f32 %v43, %v55
  %v64 = vsub.f32 %v44, %v55
  %v65 = vsub.f32 %v45, %v55
  %v66 = vsub.f32 %v46, %v55
  %v67 = vsub.f32 %v47, %v55
  %v68 = vsub.f32 %v48, %v55
  %v69 = vsub.f32 %v49, %v55
  %v70 = vsub.f32 %v50, %v55
  %v71 = vsub.f32 %v51, %v55
  %v72 = vlaneseq
  %v73 = vshrl.u32 %v72, 7
  %v74 = vsub.s32 0, %v73
  %v75 = vrot.slane %v19, %v74
  %v76 = vmul.f32 %v56, %v75
  %v77 = vmul.f32 %v57, %v75
  %v78 = vmul.f32 %v58, %v75
  %v79 = vmul.f32 %v59, %v75
  %v80 = vmul.f32 %v60, %v75
  %v81 = vmul.f32 %v61, %v75
  %v82 = vmul.f32 %v62, %v75
  %v83 = vmul.f32 %v63, %v75
  %v84 = vmul.f32 %v64, %v75
  %v85 = vmul.f32 %v65, %v75
  %v86 = vmul.f32 %v66, %v75
  %v87 = vmul.f32 %v67, %v75
  %v88 = vmul.f32 %v68, %v75
  %v89 = vmul.f32 %v69, %v75
  %v90 = vmul.f32 %v70, %v75
  %v91 = vmul.f32 %v71, %v75
  %v92 = vpack.c.bf16 %v77, %v76
  %v93 = vpack.c.bf16 %v79, %v78
  %v94 = vpack.c.bf16 %v81, %v80
  %v95 = vpack.c.bf16 %v83, %v82
  %v96 = vpack.c.bf16 %v85, %v84
  %v97 = vpack.c.bf16 %v87, %v86
  %v98 = vpack.c.bf16 %v89, %v88
  %v99 = vpack.c.bf16 %v91, %v90
  %v108 = vunpack.c.l.b16 %v92
  %v109 = vunpack.c.h.b16 %v92
  %v110 = vunpack.c.l.b16 %v93
  %v111 = vunpack.c.h.b16 %v93
  %v112 = vunpack.c.l.b16 %v94
  %v113 = vunpack.c.h.b16 %v94
  %v114 = vunpack.c.l.b16 %v95
  %v115 = vunpack.c.h.b16 %v95
  %v116 = vunpack.c.l.b16 %v96
  %v117 = vunpack.c.h.b16 %v96
  %v118 = vunpack.c.l.b16 %v97
  %v119 = vunpack.c.h.b16 %v97
  %v120 = vunpack.c.l.b16 %v98
  %v121 = vunpack.c.h.b16 %v98
  %v122 = vunpack.c.l.b16 %v99
  %v123 = vunpack.c.h.b16 %v99
  %v124 = vpack.c.b16 %v108, %v108
  %v125 = vpack.c.b16 %v109, %v109
  %v126 = vpack.c.b16 %v110, %v110
  %v127 = vpack.c.b16 %v111, %v111
  %v128 = vpack.c.b16 %v112, %v112
  %v129 = vpack.c.b16 %v113, %v113
  %v130 = vpack.c.b16 %v114, %v114
  %v131 = vpack.c.b16 %v115, %v115
  %v132 = vpack.c.b16 %v116, %v116
  %v133 = vpack.c.b16 %v117, %v117
  %v134 = vpack.c.b16 %v118, %v118
  %v135 = vpack.c.b16 %v119, %v119
  %v136 = vpack.c.b16 %v120, %v120
  %v137 = vpack.c.b16 %v121, %v121
  %v138 = vpack.c.b16 %v122, %v122
  %v139 = vpack.c.b16 %v123, %v123
  %156 = vst [vmem:[%s2] sm:$0xf] %v124
  %157 = vst [vmem:[%s2 + $0x4] sm:$0xf] %v125
  %158 = vst [vmem:[%s2 + $0x8] sm:$0xf] %v126
  %159 = vst [vmem:[%s2 + $0xc] sm:$0xf] %v127
  %160 = vst [vmem:[%s2 + $0x10] sm:$0xf] %v128
  %161 = vst [vmem:[%s2 + $0x14] sm:$0xf] %v129
  %162 = vst [vmem:[%s2 + $0x18] sm:$0xf] %v130
  %163 = vst [vmem:[%s2 + $0x1c] sm:$0xf] %v131
  %164 = vst [vmem:[%s2 + $0x20] sm:$0xf] %v132
  %165 = vst [vmem:[%s2 + $0x24] sm:$0xf] %v133
  %166 = vst [vmem:[%s2 + $0x28] sm:$0xf] %v134
  %167 = vst [vmem:[%s2 + $0x2c] sm:$0xf] %v135
  %168 = vst [vmem:[%s2 + $0x30] sm:$0xf] %v136
  %169 = vst [vmem:[%s2 + $0x34] sm:$0xf] %v137
  %170 = vst [vmem:[%s2 + $0x38] sm:$0xf] %v138
  %171 = vst [vmem:[%s2 + $0x3c] sm:$0xf] %v139
  // Predicated region
  $region10: #{_lambda_.20} parent=0 // pred_check
    _
  $region11: #{_lambda_.20} parent=0 // pred_check_branch
    %173 = sbr.rel (0) target = $region13
  $region12: #{_lambda_.20} parent=0 // pred_region
    _
  $region13: #{_lambda_.20} parent=0 // pred_fallthru
    _
  // Predicated region
  $region14: #{_lambda_.20} parent=0 // pred_check
    _
  $region15: #{_lambda_.20} parent=0 // pred_check_branch
    %175 = sbr.rel (0) target = $region17
  $region16: #{_lambda_.20} parent=0 // pred_region
    _
  $region17: #{_lambda_.20} parent=0 // pred_fallthru
    _

// kernel: _lambda_.19
$region0: #{_lambda_.19}
  #allocation0 [shape = 'u32[]', space=smem, size = 0x4, offset = 0x4, fixed_abs, tag = 'smem constant byte address 0x4 - core index']
  #allocation1 [shape = 'u32[144,128]{1,0:T(1,128)}', space=vmem, size = 0x12000, scoped, tag = 'internal scratch']
  #allocation2 [shape = 'f32[128,128]{1,0:T(8,128)}', space=vmem, size = 0x10000, scoped, tag = 'scratch operand']
  %s0 = inlined_call_operand.vmem [shape: bf16[128,512], index: 0, kind: input, shape index: {}]
  %s1 = inlined_call_operand.vmem [shape: bf16[512,128], index: 1, kind: input, shape index: {}]
  %s2 = inlined_call_operand.vmem [shape: bf16[128,128], index: 2, kind: output, shape index: {0}]
  %s3 = inlined_call_operand.vmem [shape: f32[8,128], index: 3, kind: output, shape index: {1}]
  %4 = xla_tuple %s2, %s3
  %s5 = sld [smem:[#allocation0]]
  $region34: #{_lambda_.19} parent=0
    _
  %s7 = ssub.s32 1, %s5
  %s8 = scalar_select 0, %s7, %s5
  // Predicated region
  $region2: #{_lambda_.19} parent=0 // pred_check
    _
  $region3: #{_lambda_.19} parent=0 // pred_check_branch
    %10 = sbr.rel (0) target = $region5
  $region4: #{_lambda_.19} parent=0 // pred_region
    _
  $region5: #{_lambda_.19} parent=0 // pred_fallthru
    _
  // Predicated region
  $region6: #{_lambda_.19} parent=0 // pred_check
    _
  $region7: #{_lambda_.19} parent=0 // pred_check_branch
    %12 = sbr.rel (0) target = $region9
  $region8: #{_lambda_.19} parent=0 // pred_region
    _
  $region9: #{_lambda_.19} parent=0 // pred_fallthru
    _
  %p14 = scmp.eq.s32.totalorder 0, 0
  // Predicated region
  $region10: #{_lambda_.19} parent=0 // pred_check
    %p15 = pneg %p14
  $region11: #{_lambda_.19} parent=0 // pred_check_branch
    %17 = sbr.rel (%p15) target = $region13
  $region12: #{_lambda_.19} parent=0 // pred_region
    %18 = vst [vmem:[#allocation2] sm:$0xff] 0.0
    %19 = vst [vmem:[#allocation2 + $0x8] sm:$0xff] 0.0
    %20 = vst [vmem:[#allocation2 + $0x10] sm:$0xff] 0.0
    %21 = vst [vmem:[#allocation2 + $0x18] sm:$0xff] 0.0
    %22 = vst [vmem:[#allocation2 + $0x20] sm:$0xff] 0.0
    %23 = vst [vmem:[#allocation2 + $0x28] sm:$0xff] 0.0
    %24 = vst [vmem:[#allocation2 + $0x30] sm:$0xff] 0.0
    %25 = vst [vmem:[#allocation2 + $0x38] sm:$0xff] 0.0
    %26 = vst [vmem:[#allocation2 + $0x40] sm:$0xff] 0.0
    %27 = vst [vmem:[#allocation2 + $0x48] sm:$0xff] 0.0
    %28 = vst [vmem:[#allocation2 + $0x50] sm:$0xff] 0.0
    %29 = vst [vmem:[#allocation2 + $0x58] sm:$0xff] 0.0
    %30 = vst [vmem:[#allocation2 + $0x60] sm:$0xff] 0.0
    %31 = vst [vmem:[#allocation2 + $0x68] sm:$0xff] 0.0
    %32 = vst [vmem:[#allocation2 + $0x70] sm:$0xff] 0.0
    %33 = vst [vmem:[#allocation2 + $0x78] sm:$0xff] 0.0
  $region13: #{_lambda_.19} parent=0 // pred_fallthru
    _
  %v34 = vld [vmem:[#allocation2] sm:$0xff]
  %v35 = vld [vmem:[#allocation2 + $0x8] sm:$0xff]
  %v36 = vld [vmem:[#allocation2 + $0x10] sm:$0xff]
  %v37 = vld [vmem:[#allocation2 + $0x18] sm:$0xff]
  %v38 = vld [vmem:[#allocation2 + $0x20] sm:$0xff]
  %v39 = vld [vmem:[#allocation2 + $0x28] sm:$0xff]
  %v40 = vld [vmem:[#allocation2 + $0x30] sm:$0xff]
  %v41 = vld [vmem:[#allocation2 + $0x38] sm:$0xff]
  %v42 = vld [vmem:[#allocation2 + $0x40] sm:$0xff]
  %v43 = vld [vmem:[#allocation2 + $0x48] sm:$0xff]
  %v44 = vld [vmem:[#allocation2 + $0x50] sm:$0xff]
  %v45 = vld [vmem:[#allocation2 + $0x58] sm:$0xff]
  %v46 = vld [vmem:[#allocation2 + $0x60] sm:$0xff]
  %v47 = vld [vmem:[#allocation2 + $0x68] sm:$0xff]
  %v48 = vld [vmem:[#allocation2 + $0x70] sm:$0xff]
  %v49 = vld [vmem:[#allocation2 + $0x78] sm:$0xff]
  %v50 = vld [vmem:[%s0] sm:$0xff]
  %v51 = vld [vmem:[%s0 + $0x8] sm:$0xff]
  %v52 = vld [vmem:[%s0 + $0x10] sm:$0xff]
  %v53 = vld [vmem:[%s0 + $0x18] sm:$0xff]
  %v54 = vld [vmem:[%s0 + $0x20] sm:$0xff]
  %v55 = vld [vmem:[%s0 + $0x28] sm:$0xff]
  %v56 = vld [vmem:[%s0 + $0x30] sm:$0xff]
  %v57 = vld [vmem:[%s0 + $0x38] sm:$0xff]
  %v58 = vld [vmem:[%s0 + $0x40] sm:$0xff]
  %v59 = vld [vmem:[%s0 + $0x48] sm:$0xff]
  %v60 = vld [vmem:[%s0 + $0x50] sm:$0xff]
  %v61 = vld [vmem:[%s0 + $0x58] sm:$0xff]
  %v62 = vld [vmem:[%s0 + $0x60] sm:$0xff]
  %v63 = vld [vmem:[%s0 + $0x68] sm:$0xff]
  %v64 = vld [vmem:[%s0 + $0x70] sm:$0xff]
  %v65 = vld [vmem:[%s0 + $0x78] sm:$0xff]
  %v66 = vld [vmem:[%s0 + $0x80] sm:$0xff]
  %v67 = vld [vmem:[%s0 + $0x88] sm:$0xff]
  %v68 = vld [vmem:[%s0 + $0x90] sm:$0xff]
  %v69 = vld [vmem:[%s0 + $0x98] sm:$0xff]
  %v70 = vld [vmem:[%s0 + $0xa0] sm:$0xff]
  %v71 = vld [vmem:[%s0 + $0xa8] sm:$0xff]
  %v72 = vld [vmem:[%s0 + $0xb0] sm:$0xff]
  %v73 = vld [vmem:[%s0 + $0xb8] sm:$0xff]
  %v74 = vld [vmem:[%s0 + $0xc0] sm:$0xff]
  %v75 = vld [vmem:[%s0 + $0xc8] sm:$0xff]
  %v76 = vld [vmem:[%s0 + $0xd0] sm:$0xff]
  %v77 = vld [vmem:[%s0 + $0xd8] sm:$0xff]
  %v78 = vld [vmem:[%s0 + $0xe0] sm:$0xff]
  %v79 = vld [vmem:[%s0 + $0xe8] sm:$0xff]
  %v80 = vld [vmem:[%s0 + $0xf0] sm:$0xff]
  %v81 = vld [vmem:[%s0 + $0xf8] sm:$0xff]
  %v82 = vld [vmem:[%s1] sm:$0xf]
  %v83 = vld [vmem:[%s1 + $0x4] sm:$0xf]
  %v84 = vld [vmem:[%s1 + $0x8] sm:$0xf]
  %v85 = vld [vmem:[%s1 + $0xc] sm:$0xf]
  %v86 = vld [vmem:[%s1 + $0x10] sm:$0xf]
  %v87 = vld [vmem:[%s1 + $0x14] sm:$0xf]
  %v88 = vld [vmem:[%s1 + $0x18] sm:$0xf]
  %v89 = vld [vmem:[%s1 + $0x1c] sm:$0xf]
  %v90 = vld [vmem:[%s1 + $0x20] sm:$0xf]
  %v91 = vld [vmem:[%s1 + $0x24] sm:$0xf]
  %v92 = vld [vmem:[%s1 + $0x28] sm:$0xf]
  %v93 = vld [vmem:[%s1 + $0x2c] sm:$0xf]
  %v94 = vld [vmem:[%s1 + $0x30] sm:$0xf]
  %v95 = vld [vmem:[%s1 + $0x34] sm:$0xf]
  %v96 = vld [vmem:[%s1 + $0x38] sm:$0xf]
  %v97 = vld [vmem:[%s1 + $0x3c] sm:$0xf]
  %v98 = vld [vmem:[%s1 + $0x40] sm:$0xf]
  %v99 = vld [vmem:[%s1 + $0x44] sm:$0xf]
  %v100 = vld [vmem:[%s1 + $0x48] sm:$0xf]
  %v101 = vld [vmem:[%s1 + $0x4c] sm:$0xf]
  %v102 = vld [vmem:[%s1 + $0x50] sm:$0xf]
  %v103 = vld [vmem:[%s1 + $0x54] sm:$0xf]
  %v104 = vld [vmem:[%s1 + $0x58] sm:$0xf]
  %v105 = vld [vmem:[%s1 + $0x5c] sm:$0xf]
  %v106 = vld [vmem:[%s1 + $0x60] sm:$0xf]
  %v107 = vld [vmem:[%s1 + $0x64] sm:$0xf]
  %v108 = vld [vmem:[%s1 + $0x68] sm:$0xf]
  %v109 = vld [vmem:[%s1 + $0x6c] sm:$0xf]
  %v110 = vld [vmem:[%s1 + $0x70] sm:$0xf]
  %v111 = vld [vmem:[%s1 + $0x74] sm:$0xf]
  %v112 = vld [vmem:[%s1 + $0x78] sm:$0xf]
  %v113 = vld [vmem:[%s1 + $0x7c] sm:$0xf]
  %v114 = vld [vmem:[%s1 + $0x80] sm:$0xf]
  %v115 = vld [vmem:[%s1 + $0x84] sm:$0xf]
  %v116 = vld [vmem:[%s1 + $0x88] sm:$0xf]
  %v117 = vld [vmem:[%s1 + $0x8c] sm:$0xf]
  %v118 = vld [vmem:[%s1 + $0x90] sm:$0xf]
  %v119 = vld [vmem:[%s1 + $0x94] sm:$0xf]
  %v120 = vld [vmem:[%s1 + $0x98] sm:$0xf]
  %v121 = vld [vmem:[%s1 + $0x9c] sm:$0xf]
  %v122 = vld [vmem:[%s1 + $0xa0] sm:$0xf]
  %v123 = vld [vmem:[%s1 + $0xa4] sm:$0xf]
  %v124 = vld [vmem:[%s1 + $0xa8] sm:$0xf]
  %v125 = vld [vmem:[%s1 + $0xac] sm:$0xf]
  %v126 = vld [vmem:[%s1 + $0xb0] sm:$0xf]
  %v127 = vld [vmem:[%s1 + $0xb4] sm:$0xf]
  %v128 = vld [vmem:[%s1 + $0xb8] sm:$0xf]
  %v129 = vld [vmem:[%s1 + $0xbc] sm:$0xf]
  %v130 = vld [vmem:[%s1 + $0xc0] sm:$0xf]
  %v131 = vld [vmem:[%s1 + $0xc4] sm:$0xf]
  %v132 = vld [vmem:[%s1 + $0xc8] sm:$0xf]
  %v133 = vld [vmem:[%s1 + $0xcc] sm:$0xf]
  %v134 = vld [vmem:[%s1 + $0xd0] sm:$0xf]
  %v135 = vld [vmem:[%s1 + $0xd4] sm:$0xf]
  %v136 = vld [vmem:[%s1 + $0xd8] sm:$0xf]
  %v137 = vld [vmem:[%s1 + $0xdc] sm:$0xf]
  %v138 = vld [vmem:[%s1 + $0xe0] sm:$0xf]
  %v139 = vld [vmem:[%s1 + $0xe4] sm:$0xf]
  %v140 = vld [vmem:[%s1 + $0xe8] sm:$0xf]
  %v141 = vld [vmem:[%s1 + $0xec] sm:$0xf]
  %v142 = vld [vmem:[%s1 + $0xf0] sm:$0xf]
  %v143 = vld [vmem:[%s1 + $0xf4] sm:$0xf]
  %v144 = vld [vmem:[%s1 + $0xf8] sm:$0xf]
  %v145 = vld [vmem:[%s1 + $0xfc] sm:$0xf]
  %v178 = vunpack.c.l.b16 %v50
  %v179 = vunpack.c.h.b16 %v50
  %v180 = vunpack.c.l.b16 %v51
  %v181 = vunpack.c.h.b16 %v51
  %v182 = vunpack.c.l.b16 %v52
  %v183 = vunpack.c.h.b16 %v52
  %v184 = vunpack.c.l.b16 %v53
  %v185 = vunpack.c.h.b16 %v53
  %v186 = vunpack.c.l.b16 %v54
  %v187 = vunpack.c.h.b16 %v54
  %v188 = vunpack.c.l.b16 %v55
  %v189 = vunpack.c.h.b16 %v55
  %v190 = vunpack.c.l.b16 %v56
  %v191 = vunpack.c.h.b16 %v56
  %v192 = vunpack.c.l.b16 %v57
  %v193 = vunpack.c.h.b16 %v57
  %v194 = vunpack.c.l.b16 %v58
  %v195 = vunpack.c.h.b16 %v58
  %v196 = vunpack.c.l.b16 %v59
  %v197 = vunpack.c.h.b16 %v59
  %v198 = vunpack.c.l.b16 %v60
  %v199 = vunpack.c.h.b16 %v60
  %v200 = vunpack.c.l.b16 %v61
  %v201 = vunpack.c.h.b16 %v61
  %v202 = vunpack.c.l.b16 %v62
  %v203 = vunpack.c.h.b16 %v62
  %v204 = vunpack.c.l.b16 %v63
  %v205 = vunpack.c.h.b16 %v63
  %v206 = vunpack.c.l.b16 %v64
  %v207 = vunpack.c.h.b16 %v64
  %v208 = vunpack.c.l.b16 %v65
  %v209 = vunpack.c.h.b16 %v65
  %v210 = vunpack.c.l.b16 %v66
  %v211 = vunpack.c.h.b16 %v66
  %v212 = vunpack.c.l.b16 %v67
  %v213 = vunpack.c.h.b16 %v67
  %v214 = vunpack.c.l.b16 %v68
  %v215 = vunpack.c.h.b16 %v68
  %v216 = vunpack.c.l.b16 %v69
  %v217 = vunpack.c.h.b16 %v69
  %v218 = vunpack.c.l.b16 %v70
  %v219 = vunpack.c.h.b16 %v70
  %v220 = vunpack.c.l.b16 %v71
  %v221 = vunpack.c.h.b16 %v71
  %v222 = vunpack.c.l.b16 %v72
  %v223 = vunpack.c.h.b16 %v72
  %v224 = vunpack.c.l.b16 %v73
  %v225 = vunpack.c.h.b16 %v73
  %v226 = vunpack.c.l.b16 %v74
  %v227 = vunpack.c.h.b16 %v74
  %v228 = vunpack.c.l.b16 %v75
  %v229 = vunpack.c.h.b16 %v75
  %v230 = vunpack.c.l.b16 %v76
  %v231 = vunpack.c.h.b16 %v76
  %v232 = vunpack.c.l.b16 %v77
  %v233 = vunpack.c.h.b16 %v77
  %v234 = vunpack.c.l.b16 %v78
  %v235 = vunpack.c.h.b16 %v78
  %v236 = vunpack.c.l.b16 %v79
  %v237 = vunpack.c.h.b16 %v79
  %v238 = vunpack.c.l.b16 %v80
  %v239 = vunpack.c.h.b16 %v80
  %v240 = vunpack.c.l.b16 %v81
  %v241 = vunpack.c.h.b16 %v81
  %v242 = vpack.c.b16 %v182, %v178
  %v243 = vpack.c.b16 %v183, %v179
  %v244 = vpack.c.b16 %v184, %v180
  %v245 = vpack.c.b16 %v185, %v181
  %v246 = vpack.c.b16 %v190, %v186
  %v247 = vpack.c.b16 %v191, %v187
  %v248 = vpack.c.b16 %v192, %v188
  %v249 = vpack.c.b16 %v193, %v189
  %v250 = vpack.c.b16 %v198, %v194
  %v251 = vpack.c.b16 %v199, %v195
  %v252 = vpack.c.b16 %v200, %v196
  %v253 = vpack.c.b16 %v201, %v197
  %v254 = vpack.c.b16 %v206, %v202
  %v255 = vpack.c.b16 %v207, %v203
  %v256 = vpack.c.b16 %v208, %v204
  %v257 = vpack.c.b16 %v209, %v205
  %v258 = vpack.c.b16 %v214, %v210
  %v259 = vpack.c.b16 %v215, %v211
  %v260 = vpack.c.b16 %v216, %v212
  %v261 = vpack.c.b16 %v217, %v213
  %v262 = vpack.c.b16 %v222, %v218
  %v263 = vpack.c.b16 %v223, %v219
  %v264 = vpack.c.b16 %v224, %v220
  %v265 = vpack.c.b16 %v225, %v221
  %v266 = vpack.c.b16 %v230, %v226
  %v267 = vpack.c.b16 %v231, %v227
  %v268 = vpack.c.b16 %v232, %v228
  %v269 = vpack.c.b16 %v233, %v229
  %v270 = vpack.c.b16 %v238, %v234
  %v271 = vpack.c.b16 %v239, %v235
  %v272 = vpack.c.b16 %v240, %v236
  %v273 = vpack.c.b16 %v241, %v237
  %v370 = vunpack.c.l.b16 %v82
  %v371 = vunpack.c.l.b16 %v83
  %v372 = vunpack.c.l.b16 %v84
  %v373 = vunpack.c.l.b16 %v85
  %v374 = vunpack.c.l.b16 %v86
  %v375 = vunpack.c.l.b16 %v87
  %v376 = vunpack.c.l.b16 %v88
  %v377 = vunpack.c.l.b16 %v89
  %v378 = vunpack.c.l.b16 %v90
  %v379 = vunpack.c.l.b16 %v91
  %v380 = vunpack.c.l.b16 %v92
  %v381 = vunpack.c.l.b16 %v93
  %v382 = vunpack.c.l.b16 %v94
  %v383 = vunpack.c.l.b16 %v95
  %v384 = vunpack.c.l.b16 %v96
  %v385 = vunpack.c.l.b16 %v97
  %v386 = vunpack.c.l.b16 %v98
  %v387 = vunpack.c.l.b16 %v99
  %v388 = vunpack.c.l.b16 %v100
  %v389 = vunpack.c.l.b16 %v101
  %v390 = vunpack.c.l.b16 %v102
  %v391 = vunpack.c.l.b16 %v103
  %v392 = vunpack.c.l.b16 %v104
  %v393 = vunpack.c.l.b16 %v105
  %v394 = vunpack.c.l.b16 %v106
  %v395 = vunpack.c.l.b16 %v107
  %v396 = vunpack.c.l.b16 %v108
  %v397 = vunpack.c.l.b16 %v109
  %v398 = vunpack.c.l.b16 %v110
  %v399 = vunpack.c.l.b16 %v111
  %v400 = vunpack.c.l.b16 %v112
  %v401 = vunpack.c.l.b16 %v113
  %v402 = vunpack.c.l.b16 %v114
  %v403 = vunpack.c.l.b16 %v115
  %v404 = vunpack.c.l.b16 %v116
  %v405 = vunpack.c.l.b16 %v117
  %v406 = vunpack.c.l.b16 %v118
  %v407 = vunpack.c.l.b16 %v119
  %v408 = vunpack.c.l.b16 %v120
  %v409 = vunpack.c.l.b16 %v121
  %v410 = vunpack.c.l.b16 %v122
  %v411 = vunpack.c.l.b16 %v123
  %v412 = vunpack.c.l.b16 %v124
  %v413 = vunpack.c.l.b16 %v125
  %v414 = vunpack.c.l.b16 %v126
  %v415 = vunpack.c.l.b16 %v127
  %v416 = vunpack.c.l.b16 %v128
  %v417 = vunpack.c.l.b16 %v129
  %v418 = vunpack.c.l.b16 %v130
  %v419 = vunpack.c.l.b16 %v131
  %v420 = vunpack.c.l.b16 %v132
  %v421 = vunpack.c.l.b16 %v133
  %v422 = vunpack.c.l.b16 %v134
  %v423 = vunpack.c.l.b16 %v135
  %v424 = vunpack.c.l.b16 %v136
  %v425 = vunpack.c.l.b16 %v137
  %v426 = vunpack.c.l.b16 %v138
  %v427 = vunpack.c.l.b16 %v139
  %v428 = vunpack.c.l.b16 %v140
  %v429 = vunpack.c.l.b16 %v141
  %v430 = vunpack.c.l.b16 %v142
  %v431 = vunpack.c.l.b16 %v143
  %v432 = vunpack.c.l.b16 %v144
  %v433 = vunpack.c.l.b16 %v145
  %v434 = vpack.c.b16 %v371, %v370
  %v435 = vpack.c.b16 %v373, %v372
  %v436 = vpack.c.b16 %v375, %v374
  %v437 = vpack.c.b16 %v377, %v376
  %v438 = vpack.c.b16 %v379, %v378
  %v439 = vpack.c.b16 %v381, %v380
  %v440 = vpack.c.b16 %v383, %v382
  %v441 = vpack.c.b16 %v385, %v384
  %v442 = vpack.c.b16 %v387, %v386
  %v443 = vpack.c.b16 %v389, %v388
  %v444 = vpack.c.b16 %v391, %v390
  %v445 = vpack.c.b16 %v393, %v392
  %v446 = vpack.c.b16 %v395, %v394
  %v447 = vpack.c.b16 %v397, %v396
  %v448 = vpack.c.b16 %v399, %v398
  %v449 = vpack.c.b16 %v401, %v400
  %v450 = vpack.c.b16 %v403, %v402
  %v451 = vpack.c.b16 %v405, %v404
  %v452 = vpack.c.b16 %v407, %v406
  %v453 = vpack.c.b16 %v409, %v408
  %v454 = vpack.c.b16 %v411, %v410
  %v455 = vpack.c.b16 %v413, %v412
  %v456 = vpack.c.b16 %v415, %v414
  %v457 = vpack.c.b16 %v417, %v416
  %v458 = vpack.c.b16 %v419, %v418
  %v459 = vpack.c.b16 %v421, %v420
  %v460 = vpack.c.b16 %v423, %v422
  %v461 = vpack.c.b16 %v425, %v424
  %v462 = vpack.c.b16 %v427, %v426
  %v463 = vpack.c.b16 %v429, %v428
  %v464 = vpack.c.b16 %v431, %v430
  %v465 = vpack.c.b16 %v433, %v432
  %498 = vmatprep.subr.bf16.mxu0 0
  %499 = vmatpush1.bf16.msra.mxu0 %v441
  %500 = vmatprep.subr.bf16.mxu0 0
  %501 = vmatpush1.bf16.msra.mxu0 %v440
  %502 = vmatprep.subr.bf16.mxu0 0
  %503 = vmatpush1.bf16.msra.mxu0 %v439
  %504 = vmatprep.subr.bf16.mxu0 0
  %505 = vmatpush1.bf16.msra.mxu0 %v438
  %506 = vmatprep.subr.bf16.mxu0 0
  %507 = vmatpush1.bf16.msra.mxu0 %v437
  %508 = vmatprep.subr.bf16.mxu0 0
  %509 = vmatpush1.bf16.msra.mxu0 %v436
  %510 = vmatprep.subr.bf16.mxu0 0
  %511 = vmatpush1.bf16.msra.mxu0 %v435
  %512 = vmatprep.subr.bf16.mxu0 0
  %513 = vmatpush1.bf16.msra.mxu0 %v434
  %514 = vmatprep.subr.bf16.mxu0 0
  %515 = vmatpush2.bf16.msra.mxu0 %v449
  %516 = vmatprep.subr.bf16.mxu0 0
  %517 = vmatpush2.bf16.msra.mxu0 %v448
  %518 = vmatprep.subr.bf16.mxu0 0
  %519 = vmatpush2.bf16.msra.mxu0 %v447
  %520 = vmatprep.subr.bf16.mxu0 0
  %521 = vmatpush2.bf16.msra.mxu0 %v446
  %522 = vmatprep.subr.bf16.mxu0 0
  %523 = vmatpush2.bf16.msra.mxu0 %v445
  %524 = vmatprep.subr.bf16.mxu0 0
  %525 = vmatpush2.bf16.msra.mxu0 %v444
  %526 = vmatprep.subr.bf16.mxu0 0
  %527 = vmatpush2.bf16.msra.mxu0 %v443
  %528 = vmatprep.subr.bf16.mxu0 0
  %529 = vmatpush2.bf16.msra.mxu0 %v442
  %530 = vmatprep.mubr.bf16.mxu0 %v243
  %531 = vmatmul.mubr.bf16.gmra.mxu0 %v242
  %v532 = vpop.f32.mrf.mxu0
  %v533 = vadd.f32 0.0, %v532
  %v534 = vpop.f32.mrf.mxu0
  %v535 = vpop.f32.mrf.mxu0
  %v536 = vadd.f32 0.0, %v535
  %v537 = vpop.f32.mrf.mxu0
  %538 = vmatprep.mubr.bf16.mxu0 %v247
  %539 = vmatmul.mubr.bf16.gmra.mxu0 %v246
  %v540 = vpop.f32.mrf.mxu0
  %v541 = vadd.f32 0.0, %v540
  %v542 = vpop.f32.mrf.mxu0
  %v543 = vpop.f32.mrf.mxu0
  %v544 = vadd.f32 0.0, %v543
  %v545 = vpop.f32.mrf.mxu0
  %546 = vmatprep.mubr.bf16.mxu0 %v251
  %547 = vmatmul.mubr.bf16.gmra.mxu0 %v250
  %v548 = vpop.f32.mrf.mxu0
  %v549 = vadd.f32 0.0, %v548
  %v550 = vpop.f32.mrf.mxu0
  %v551 = vpop.f32.mrf.mxu0
  %v552 = vadd.f32 0.0, %v551
  %v553 = vpop.f32.mrf.mxu0
  %554 = vmatprep.mubr.bf16.mxu0 %v255
  %555 = vmatmul.mubr.bf16.gmra.mxu0 %v254
  %v556 = vpop.f32.mrf.mxu0
  %v557 = vadd.f32 0.0, %v556
  %v558 = vpop.f32.mrf.mxu0
  %v559 = vpop.f32.mrf.mxu0
  %v560 = vadd.f32 0.0, %v559
  %v561 = vpop.f32.mrf.mxu0
  %562 = vmatprep.mubr.bf16.mxu0 %v259
  %563 = vmatmul.mubr.bf16.gmra.mxu0 %v258
  %v564 = vpop.f32.mrf.mxu0
  %v565 = vadd.f32 0.0, %v564
  %v566 = vpop.f32.mrf.mxu0
  %v567 = vpop.f32.mrf.mxu0
  %v568 = vadd.f32 0.0, %v567
  %v569 = vpop.f32.mrf.mxu0
  %570 = vmatprep.mubr.bf16.mxu0 %v263
  %571 = vmatmul.mubr.bf16.gmra.mxu0 %v262
  %v572 = vpop.f32.mrf.mxu0
  %v573 = vadd.f32 0.0, %v572
  %v574 = vpop.f32.mrf.mxu0
  %v575 = vpop.f32.mrf.mxu0
  %v576 = vadd.f32 0.0, %v575
  %v577 = vpop.f32.mrf.mxu0
  %578 = vmatprep.mubr.bf16.mxu0 %v267
  %579 = vmatmul.mubr.bf16.gmra.mxu0 %v266
  %v580 = vpop.f32.mrf.mxu0
  %v581 = vadd.f32 0.0, %v580
  %v582 = vpop.f32.mrf.mxu0
  %v583 = vpop.f32.mrf.mxu0
  %v584 = vadd.f32 0.0, %v583
  %v585 = vpop.f32.mrf.mxu0
  %586 = vmatprep.mubr.bf16.mxu0 %v271
  %587 = vmatmul.mubr.bf16.gmra.mxu0 %v270
  %v588 = vpop.f32.mrf.mxu0
  %v589 = vadd.f32 0.0, %v588
  %v590 = vpop.f32.mrf.mxu0
  %v591 = vpop.f32.mrf.mxu0
  %v592 = vadd.f32 0.0, %v591
  %v593 = vpop.f32.mrf.mxu0
  %594 = vdwg.mxu0
  %595 = vmatprep.subr.bf16.mxu0 0
  %596 = vmatpush1.bf16.msra.mxu0 %v457
  %597 = vmatprep.subr.bf16.mxu0 0
  %598 = vmatpush1.bf16.msra.mxu0 %v456
  %599 = vmatprep.subr.bf16.mxu0 0
  %600 = vmatpush1.bf16.msra.mxu0 %v455
  %601 = vmatprep.subr.bf16.mxu0 0
  %602 = vmatpush1.bf16.msra.mxu0 %v454
  %603 = vmatprep.subr.bf16.mxu0 0
  %604 = vmatpush1.bf16.msra.mxu0 %v453
  %605 = vmatprep.subr.bf16.mxu0 0
  %606 = vmatpush1.bf16.msra.mxu0 %v452
  %607 = vmatprep.subr.bf16.mxu0 0
  %608 = vmatpush1.bf16.msra.mxu0 %v451
  %609 = vmatprep.subr.bf16.mxu0 0
  %610 = vmatpush1.bf16.msra.mxu0 %v450
  %611 = vmatprep.subr.bf16.mxu0 0
  %612 = vmatpush2.bf16.msra.mxu0 %v465
  %613 = vmatprep.subr.bf16.mxu0 0
  %614 = vmatpush2.bf16.msra.mxu0 %v464
  %615 = vmatprep.subr.bf16.mxu0 0
  %616 = vmatpush2.bf16.msra.mxu0 %v463
  %617 = vmatprep.subr.bf16.mxu0 0
  %618 = vmatpush2.bf16.msra.mxu0 %v462
  %619 = vmatprep.subr.bf16.mxu0 0
  %620 = vmatpush2.bf16.msra.mxu0 %v461
  %621 = vmatprep.subr.bf16.mxu0 0
  %622 = vmatpush2.bf16.msra.mxu0 %v460
  %623 = vmatprep.subr.bf16.mxu0 0
  %624 = vmatpush2.bf16.msra.mxu0 %v459
  %625 = vmatprep.subr.bf16.mxu0 0
  %626 = vmatpush2.bf16.msra.mxu0 %v458
  %627 = vmatprep.mubr.bf16.mxu0 %v245
  %628 = vmatmul.mubr.bf16.gmra.mxu0 %v244
  %v629 = vpop.f32.mrf.mxu0
  %v630 = vadd.f32 %v533, %v629
  %v631 = vpop.f32.mrf.mxu0
  %v632 = vpop.f32.mrf.mxu0
  %v633 = vadd.f32 %v536, %v632
  %v634 = vpop.f32.mrf.mxu0
  %635 = vmatprep.mubr.bf16.mxu0 %v249
  %636 = vmatmul.mubr.bf16.gmra.mxu0 %v248
  %v637 = vpop.f32.mrf.mxu0
  %v638 = vadd.f32 %v541, %v637
  %v639 = vpop.f32.mrf.mxu0
  %v640 = vpop.f32.mrf.mxu0
  %v641 = vadd.f32 %v544, %v640
  %v642 = vpop.f32.mrf.mxu0
  %643 = vmatprep.mubr.bf16.mxu0 %v253
  %644 = vmatmul.mubr.bf16.gmra.mxu0 %v252
  %v645 = vpop.f32.mrf.mxu0
  %v646 = vadd.f32 %v549, %v645
  %v647 = vpop.f32.mrf.mxu0
  %v648 = vpop.f32.mrf.mxu0
  %v649 = vadd.f32 %v552, %v648
  %v650 = vpop.f32.mrf.mxu0
  %651 = vmatprep.mubr.bf16.mxu0 %v257
  %652 = vmatmul.mubr.bf16.gmra.mxu0 %v256
  %v653 = vpop.f32.mrf.mxu0
  %v654 = vadd.f32 %v557, %v653
  %v655 = vpop.f32.mrf.mxu0
  %v656 = vpop.f32.mrf.mxu0
  %v657 = vadd.f32 %v560, %v656
  %v658 = vpop.f32.mrf.mxu0
  %659 = vmatprep.mubr.bf16.mxu0 %v261
  %660 = vmatmul.mubr.bf16.gmra.mxu0 %v260
  %v661 = vpop.f32.mrf.mxu0
  %v662 = vadd.f32 %v565, %v661
  %v663 = vpop.f32.mrf.mxu0
  %v664 = vpop.f32.mrf.mxu0
  %v665 = vadd.f32 %v568, %v664
  %v666 = vpop.f32.mrf.mxu0
  %667 = vmatprep.mubr.bf16.mxu0 %v265
  %668 = vmatmul.mubr.bf16.gmra.mxu0 %v264
  %v669 = vpop.f32.mrf.mxu0
  %v670 = vadd.f32 %v573, %v669
  %v671 = vpop.f32.mrf.mxu0
  %v672 = vpop.f32.mrf.mxu0
  %v673 = vadd.f32 %v576, %v672
  %v674 = vpop.f32.mrf.mxu0
  %675 = vmatprep.mubr.bf16.mxu0 %v269
  %676 = vmatmul.mubr.bf16.gmra.mxu0 %v268
  %v677 = vpop.f32.mrf.mxu0
  %v678 = vadd.f32 %v581, %v677
  %v679 = vpop.f32.mrf.mxu0
  %v680 = vpop.f32.mrf.mxu0
  %v681 = vadd.f32 %v584, %v680
  %v682 = vpop.f32.mrf.mxu0
  %683 = vmatprep.mubr.bf16.mxu0 %v273
  %684 = vmatmul.mubr.bf16.gmra.mxu0 %v272
  %v685 = vpop.f32.mrf.mxu0
  %v686 = vadd.f32 %v589, %v685
  %v687 = vpop.f32.mrf.mxu0
  %v688 = vpop.f32.mrf.mxu0
  %v689 = vadd.f32 %v592, %v688
  %v690 = vpop.f32.mrf.mxu0
  %691 = vdwg.mxu0
  %v692 = vadd.f32 %v34, %v630
  %v693 = vadd.f32 %v35, %v633
  %v694 = vadd.f32 %v36, %v638
  %v695 = vadd.f32 %v37, %v641
  %v696 = vadd.f32 %v38, %v646
  %v697 = vadd.f32 %v39, %v649
  %v698 = vadd.f32 %v40, %v654
  %v699 = vadd.f32 %v41, %v657
  %v700 = vadd.f32 %v42, %v662
  %v701 = vadd.f32 %v43, %v665
  %v702 = vadd.f32 %v44, %v670
  %v703 = vadd.f32 %v45, %v673
  %v704 = vadd.f32 %v46, %v678
  %v705 = vadd.f32 %v47, %v681
  %v706 = vadd.f32 %v48, %v686
  %v707 = vadd.f32 %v49, %v689
  %708 = vst [vmem:[#allocation2] sm:$0xff] %v692
  %709 = vst [vmem:[#allocation2 + $0x8] sm:$0xff] %v693
  %710 = vst [vmem:[#allocation2 + $0x10] sm:$0xff] %v694
  %711 = vst [vmem:[#allocation2 + $0x18] sm:$0xff] %v695
  %712 = vst [vmem:[#allocation2 + $0x20] sm:$0xff] %v696
  %713 = vst [vmem:[#allocation2 + $0x28] sm:$0xff] %v697
  %714 = vst [vmem:[#allocation2 + $0x30] sm:$0xff] %v698
  %715 = vst [vmem:[#allocation2 + $0x38] sm:$0xff] %v699
  %716 = vst [vmem:[#allocation2 + $0x40] sm:$0xff] %v700
  %717 = vst [vmem:[#allocation2 + $0x48] sm:$0xff] %v701
  %718 = vst [vmem:[#allocation2 + $0x50] sm:$0xff] %v702
  %719 = vst [vmem:[#allocation2 + $0x58] sm:$0xff] %v703
  %720 = vst [vmem:[#allocation2 + $0x60] sm:$0xff] %v704
  %721 = vst [vmem:[#allocation2 + $0x68] sm:$0xff] %v705
  %722 = vst [vmem:[#allocation2 + $0x70] sm:$0xff] %v706
  %723 = vst [vmem:[#allocation2 + $0x78] sm:$0xff] %v707
  // Predicated region
  $region14: #{_lambda_.19} parent=0 // pred_check
    %p724 = pneg %p14
  $region15: #{_lambda_.19} parent=0 // pred_check_branch
    %726 = sbr.rel (%p724) target = $region17
  $region16: #{_lambda_.19} parent=0 // pred_region
    %v727 = vld [vmem:[#allocation2] sm:$0xff]
    %v728 = vld [vmem:[#allocation2 + $0x8] sm:$0xff]
    %v729 = vld [vmem:[#allocation2 + $0x10] sm:$0xff]
    %v730 = vld [vmem:[#allocation2 + $0x18] sm:$0xff]
    %v731 = vld [vmem:[#allocation2 + $0x20] sm:$0xff]
    %v732 = vld [vmem:[#allocation2 + $0x28] sm:$0xff]
    %v733 = vld [vmem:[#allocation2 + $0x30] sm:$0xff]
    %v734 = vld [vmem:[#allocation2 + $0x38] sm:$0xff]
    %v735 = vld [vmem:[#allocation2 + $0x40] sm:$0xff]
    %v736 = vld [vmem:[#allocation2 + $0x48] sm:$0xff]
    %v737 = vld [vmem:[#allocation2 + $0x50] sm:$0xff]
    %v738 = vld [vmem:[#allocation2 + $0x58] sm:$0xff]
    %v739 = vld [vmem:[#allocation2 + $0x60] sm:$0xff]
    %v740 = vld [vmem:[#allocation2 + $0x68] sm:$0xff]
    %v741 = vld [vmem:[#allocation2 + $0x70] sm:$0xff]
    %v742 = vld [vmem:[#allocation2 + $0x78] sm:$0xff]
    %v743 = vadd.f32 %v727, %v728
    %v744 = vadd.f32 %v743, %v729
    %v745 = vadd.f32 %v744, %v730
    %v746 = vadd.f32 %v745, %v731
    %v747 = vadd.f32 %v746, %v732
    %v748 = vadd.f32 %v747, %v733
    %v749 = vadd.f32 %v748, %v734
    %v750 = vadd.f32 %v749, %v735
    %v751 = vadd.f32 %v750, %v736
    %v752 = vadd.f32 %v751, %v737
    %v753 = vadd.f32 %v752, %v738
    %v754 = vadd.f32 %v753, %v739
    %v755 = vadd.f32 %v754, %v740
    %v756 = vadd.f32 %v755, %v741
    %v757 = vadd.f32 %v756, %v742
    %v758 = vrot.slane %v757, 4
    %v759 = vadd.f32 %v757, %v758
    %v760 = vrot.slane %v759, 2
    %v761 = vadd.f32 %v759, %v760
    %v762 = vrot.slane %v761, 1
    %v763 = vadd.f32 %v761, %v762
    %v764 = vmul.f32 %v727, %v727
    %v765 = vmul.f32 %v728, %v728
    %v766 = vmul.f32 %v729, %v729
    %v767 = vmul.f32 %v730, %v730
    %v768 = vmul.f32 %v731, %v731
    %v769 = vmul.f32 %v732, %v732
    %v770 = vmul.f32 %v733, %v733
    %v771 = vmul.f32 %v734, %v734
    %v772 = vmul.f32 %v735, %v735
    %v773 = vmul.f32 %v736, %v736
    %v774 = vmul.f32 %v737, %v737
    %v775 = vmul.f32 %v738, %v738
    %v776 = vmul.f32 %v739, %v739
    %v777 = vmul.f32 %v740, %v740
    %v778 = vmul.f32 %v741, %v741
    %v779 = vmul.f32 %v742, %v742
    %v780 = vadd.f32 %v764, %v765
    %v781 = vadd.f32 %v780, %v766
    %v782 = vadd.f32 %v781, %v767
    %v783 = vadd.f32 %v782, %v768
    %v784 = vadd.f32 %v783, %v769
    %v785 = vadd.f32 %v784, %v770
    %v786 = vadd.f32 %v785, %v771
    %v787 = vadd.f32 %v786, %v772
    %v788 = vadd.f32 %v787, %v773
    %v789 = vadd.f32 %v788, %v774
    %v790 = vadd.f32 %v789, %v775
    %v791 = vadd.f32 %v790, %v776
    %v792 = vadd.f32 %v791, %v777
    %v793 = vadd.f32 %v792, %v778
    %v794 = vadd.f32 %v793, %v779
    %v795 = vrot.slane %v794, 4
    %v796 = vadd.f32 %v794, %v795
    %v797 = vrot.slane %v796, 2
    %v798 = vadd.f32 %v796, %v797
    %v799 = vrot.slane %v798, 1
    %v800 = vadd.f32 %v798, %v799
    %vm801 = vcmask 1040384
    %v802 = vsel %vm801, %v763, %v800
    %vm803 = vcmask 1041408
    %v804 = vsel %vm803, %v802, 0.0
    %805 = vst [vmem:[%s3] sm:$0xff] %v804
    %v806 = vpack.c.bf16 %v728, %v727
    %v807 = vpack.c.bf16 %v730, %v729
    %v808 = vpack.c.bf16 %v732, %v731
    %v809 = vpack.c.bf16 %v734, %v733
    %v810 = vpack.c.bf16 %v736, %v735
    %v811 = vpack.c.bf16 %v738, %v737
    %v812 = vpack.c.bf16 %v740, %v739
    %v813 = vpack.c.bf16 %v742, %v741
    %v822 = vunpack.c.l.b16 %v806
    %v823 = vunpack.c.h.b16 %v806
    %v824 = vunpack.c.l.b16 %v807
    %v825 = vunpack.c.h.b16 %v807
    %v826 = vunpack.c.l.b16 %v808
    %v827 = vunpack.c.h.b16 %v808
    %v828 = vunpack.c.l.b16 %v809
    %v829 = vunpack.c.h.b16 %v809
    %v830 = vunpack.c.l.b16 %v810
    %v831 = vunpack.c.h.b16 %v810
    %v832 = vunpack.c.l.b16 %v811
    %v833 = vunpack.c.h.b16 %v811
    %v834 = vunpack.c.l.b16 %v812
    %v835 = vunpack.c.h.b16 %v812
    %v836 = vunpack.c.l.b16 %v813
    %v837 = vunpack.c.h.b16 %v813
    %v838 = vpack.c.b16 %v822, %v822
    %v839 = vpack.c.b16 %v823, %v823
    %v840 = vpack.c.b16 %v824, %v824
    %v841 = vpack.c.b16 %v825, %v825
    %v842 = vpack.c.b16 %v826, %v826
    %v843 = vpack.c.b16 %v827, %v827
    %v844 = vpack.c.b16 %v828, %v828
    %v845 = vpack.c.b16 %v829, %v829
    %v846 = vpack.c.b16 %v830, %v830
    %v847 = vpack.c.b16 %v831, %v831
    %v848 = vpack.c.b16 %v832, %v832
    %v849 = vpack.c.b16 %v833, %v833
    %v850 = vpack.c.b16 %v834, %v834
    %v851 = vpack.c.b16 %v835, %v835
    %v852 = vpack.c.b16 %v836, %v836
    %v853 = vpack.c.b16 %v837, %v837
    %870 = vst [vmem:[%s2] sm:$0xf] %v838
    %871 = vst [vmem:[%s2 + $0x4] sm:$0xf] %v839
    %872 = vst [vmem:[%s2 + $0x8] sm:$0xf] %v840
    %873 = vst [vmem:[%s2 + $0xc] sm:$0xf] %v841
    %874 = vst [vmem:[%s2 + $0x10] sm:$0xf] %v842
    %875 = vst [vmem:[%s2 + $0x14] sm:$0xf] %v843
    %876 = vst [vmem:[%s2 + $0x18] sm:$0xf] %v844
    %877 = vst [vmem:[%s2 + $0x1c] sm:$0xf] %v845
    %878 = vst [vmem:[%s2 + $0x20] sm:$0xf] %v846
    %879 = vst [vmem:[%s2 + $0x24] sm:$0xf] %v847
    %880 = vst [vmem:[%s2 + $0x28] sm:$0xf] %v848
    %881 = vst [vmem:[%s2 + $0x2c] sm:$0xf] %v849
    %882 = vst [vmem:[%s2 + $0x30] sm:$0xf] %v850
    %883 = vst [vmem:[%s2 + $0x34] sm:$0xf] %v851
    %884 = vst [vmem:[%s2 + $0x38] sm:$0xf] %v852
    %885 = vst [vmem:[%s2 + $0x3c] sm:$0xf] %v853
  $region17: #{_lambda_.19} parent=0 // pred_fallthru
    _
  // Predicated region
  $region18: #{_lambda_.19} parent=0 // pred_check
    _
  $region19: #{_lambda_.19} parent=0 // pred_check_branch
    %887 = sbr.rel (0) target = $region21
  $region20: #{_lambda_.19} parent=0 // pred_region
    _
  $region21: #{_lambda_.19} parent=0 // pred_fallthru
    _
  // Predicated region
  $region22: #{_lambda_.19} parent=0 // pred_check
    _
  $region23: #{_lambda_.19} parent=0 // pred_check_branch
    %889 = sbr.rel (0) target = $region25
  $region24: #{_lambda_.19} parent=0 // pred_region
    _
  $region25: #{_lambda_.19} parent=0 // pred_fallthru
    _
  // Predicated region
  $region26: #{_lambda_.19} parent=0 // pred_check
    _
  $region27: #{_lambda_.19} parent=0 // pred_check_branch
    %891 = sbr.rel (0) target = $region29
  $region28: #{_lambda_.19} parent=0 // pred_region
    _
  $region29: #{_lambda_.19} parent=0 // pred_fallthru
    _
  // Predicated region
  $region30: #{_lambda_.19} parent=0 // pred_check
    _
  $region31: #{_lambda_.19} parent=0 // pred_check_branch
    %893 = sbr.rel (0) target = $region33
  $region32: #{_lambda_.19} parent=0 // pred_region
    _
  $region33: #{_lambda_.19} parent=0 // pred_fallthru
    _

// kernel: _lambda_.21
$region0: #{_lambda_.21}
  #allocation0 [shape = 'u32[]', space=smem, size = 0x4, offset = 0x4, fixed_abs, tag = 'smem constant byte address 0x4 - core index']
  #allocation1 [shape = 'u32[144,128]{1,0:T(1,128)}', space=vmem, size = 0x12000, scoped, tag = 'internal scratch']
  #allocation2 [shape = 'f32[512,128]{1,0:T(8,128)}', space=vmem, size = 0x40000, scoped, tag = 'scratch operand']
  %s0 = inlined_call_operand.vmem [shape: bf16[512,256], index: 0, kind: input, shape index: {}]
  %s1 = inlined_call_operand.vmem [shape: bf16[256,128], index: 1, kind: input, shape index: {}]
  %s2 = inlined_call_operand.vmem [shape: bf16[512,128], index: 2, kind: output, shape index: {}]
  %s3 = sld [smem:[#allocation0]]
  $region26: #{_lambda_.21} parent=0
    _
  %s5 = ssub.s32 1, %s3
  %s6 = scalar_select 0, %s5, %s3
  // Predicated region
  $region2: #{_lambda_.21} parent=0 // pred_check
    _
  $region3: #{_lambda_.21} parent=0 // pred_check_branch
    %8 = sbr.rel (0) target = $region5
  $region4: #{_lambda_.21} parent=0 // pred_region
    _
  $region5: #{_lambda_.21} parent=0 // pred_fallthru
    _
  // Predicated region
  $region6: #{_lambda_.21} parent=0 // pred_check
    _
  $region7: #{_lambda_.21} parent=0 // pred_check_branch
    %10 = sbr.rel (0) target = $region9
  $region8: #{_lambda_.21} parent=0 // pred_region
    _
  $region9: #{_lambda_.21} parent=0 // pred_fallthru
    _
  %p12 = scmp.eq.s32.totalorder 0, 0
  // Predicated region
  $region10: #{_lambda_.21} parent=0 // pred_check
    %p13 = pneg %p12
  $region11: #{_lambda_.21} parent=0 // pred_check_branch
    %15 = sbr.rel (%p13) target = $region13
  $region12: #{_lambda_.21} parent=0 // pred_region
    %16 = vst [vmem:[#allocation2] sm:$0xff] 0.0
    %17 = vst [vmem:[#allocation2 + $0x8] sm:$0xff] 0.0
    %18 = vst [vmem:[#allocation2 + $0x10] sm:$0xff] 0.0
    %19 = vst [vmem:[#allocation2 + $0x18] sm:$0xff] 0.0
    %20 = vst [vmem:[#allocation2 + $0x20] sm:$0xff] 0.0
    %21 = vst [vmem:[#allocation2 + $0x28] sm:$0xff] 0.0
    %22 = vst [vmem:[#allocation2 + $0x30] sm:$0xff] 0.0
    %23 = vst [vmem:[#allocation2 + $0x38] sm:$0xff] 0.0
    %24 = vst [vmem:[#allocation2 + $0x40] sm:$0xff] 0.0
    %25 = vst [vmem:[#allocation2 + $0x48] sm:$0xff] 0.0
    %26 = vst [vmem:[#allocation2 + $0x50] sm:$0xff] 0.0
    %27 = vst [vmem:[#allocation2 + $0x58] sm:$0xff] 0.0
    %28 = vst [vmem:[#allocation2 + $0x60] sm:$0xff] 0.0
    %29 = vst [vmem:[#allocation2 + $0x68] sm:$0xff] 0.0
    %30 = vst [vmem:[#allocation2 + $0x70] sm:$0xff] 0.0
    %31 = vst [vmem:[#allocation2 + $0x78] sm:$0xff] 0.0
    %32 = vst [vmem:[#allocation2 + $0x80] sm:$0xff] 0.0
    %33 = vst [vmem:[#allocation2 + $0x88] sm:$0xff] 0.0
    %34 = vst [vmem:[#allocation2 + $0x90] sm:$0xff] 0.0
    %35 = vst [vmem:[#allocation2 + $0x98] sm:$0xff] 0.0
    %36 = vst [vmem:[#allocation2 + $0xa0] sm:$0xff] 0.0
    %37 = vst [vmem:[#allocation2 + $0xa8] sm:$0xff] 0.0
    %38 = vst [vmem:[#allocation2 + $0xb0] sm:$0xff] 0.0
    %39 = vst [vmem:[#allocation2 + $0xb8] sm:$0xff] 0.0
    %40 = vst [vmem:[#allocation2 + $0xc0] sm:$0xff] 0.0
    %41 = vst [vmem:[#allocation2 + $0xc8] sm:$0xff] 0.0
    %42 = vst [vmem:[#allocation2 + $0xd0] sm:$0xff] 0.0
    %43 = vst [vmem:[#allocation2 + $0xd8] sm:$0xff] 0.0
    %44 = vst [vmem:[#allocation2 + $0xe0] sm:$0xff] 0.0
    %45 = vst [vmem:[#allocation2 + $0xe8] sm:$0xff] 0.0
    %46 = vst [vmem:[#allocation2 + $0xf0] sm:$0xff] 0.0
    %47 = vst [vmem:[#allocation2 + $0xf8] sm:$0xff] 0.0
    %48 = vst [vmem:[#allocation2 + $0x100] sm:$0xff] 0.0
    %49 = vst [vmem:[#allocation2 + $0x108] sm:$0xff] 0.0
    %50 = vst [vmem:[#allocation2 + $0x110] sm:$0xff] 0.0
    %51 = vst [vmem:[#allocation2 + $0x118] sm:$0xff] 0.0
    %52 = vst [vmem:[#allocation2 + $0x120] sm:$0xff] 0.0
    %53 = vst [vmem:[#allocation2 + $0x128] sm:$0xff] 0.0
    %54 = vst [vmem:[#allocation2 + $0x130] sm:$0xff] 0.0
    %55 = vst [vmem:[#allocation2 + $0x138] sm:$0xff] 0.0
    %56 = vst [vmem:[#allocation2 + $0x140] sm:$0xff] 0.0
    %57 = vst [vmem:[#allocation2 + $0x148] sm:$0xff] 0.0
    %58 = vst [vmem:[#allocation2 + $0x150] sm:$0xff] 0.0
    %59 = vst [vmem:[#allocation2 + $0x158] sm:$0xff] 0.0
    %60 = vst [vmem:[#allocation2 + $0x160] sm:$0xff] 0.0
    %61 = vst [vmem:[#allocation2 + $0x168] sm:$0xff] 0.0
    %62 = vst [vmem:[#allocation2 + $0x170] sm:$0xff] 0.0
    %63 = vst [vmem:[#allocation2 + $0x178] sm:$0xff] 0.0
    %64 = vst [vmem:[#allocation2 + $0x180] sm:$0xff] 0.0
    %65 = vst [vmem:[#allocation2 + $0x188] sm:$0xff] 0.0
    %66 = vst [vmem:[#allocation2 + $0x190] sm:$0xff] 0.0
    %67 = vst [vmem:[#allocation2 + $0x198] sm:$0xff] 0.0
    %68 = vst [vmem:[#allocation2 + $0x1a0] sm:$0xff] 0.0
    %69 = vst [vmem:[#allocation2 + $0x1a8] sm:$0xff] 0.0
    %70 = vst [vmem:[#allocation2 + $0x1b0] sm:$0xff] 0.0
    %71 = vst [vmem:[#allocation2 + $0x1b8] sm:$0xff] 0.0
    %72 = vst [vmem:[#allocation2 + $0x1c0] sm:$0xff] 0.0
    %73 = vst [vmem:[#allocation2 + $0x1c8] sm:$0xff] 0.0
    %74 = vst [vmem:[#allocation2 + $0x1d0] sm:$0xff] 0.0
    %75 = vst [vmem:[#allocation2 + $0x1d8] sm:$0xff] 0.0
    %76 = vst [vmem:[#allocation2 + $0x1e0] sm:$0xff] 0.0
    %77 = vst [vmem:[#allocation2 + $0x1e8] sm:$0xff] 0.0
    %78 = vst [vmem:[#allocation2 + $0x1f0] sm:$0xff] 0.0
    %79 = vst [vmem:[#allocation2 + $0x1f8] sm:$0xff] 0.0
  $region13: #{_lambda_.21} parent=0 // pred_fallthru
    _
  %v80 = vld [vmem:[#allocation2] sm:$0xff]
  %v81 = vld [vmem:[#allocation2 + $0x8] sm:$0xff]
  %v82 = vld [vmem:[#allocation2 + $0x10] sm:$0xff]
  %v83 = vld [vmem:[#allocation2 + $0x18] sm:$0xff]
  %v84 = vld [vmem:[#allocation2 + $0x20] sm:$0xff]
  %v85 = vld [vmem:[#allocation2 + $0x28] sm:$0xff]
  %v86 = vld [vmem:[#allocation2 + $0x30] sm:$0xff]
  %v87 = vld [vmem:[#allocation2 + $0x38] sm:$0xff]
  %v88 = vld [vmem:[#allocation2 + $0x40] sm:$0xff]
  %v89 = vld [vmem:[#allocation2 + $0x48] sm:$0xff]
  %v90 = vld [vmem:[#allocation2 + $0x50] sm:$0xff]
  %v91 = vld [vmem:[#allocation2 + $0x58] sm:$0xff]
  %v92 = vld [vmem:[#allocation2 + $0x60] sm:$0xff]
  %v93 = vld [vmem:[#allocation2 + $0x68] sm:$0xff]
  %v94 = vld [vmem:[#allocation2 + $0x70] sm:$0xff]
  %v95 = vld [vmem:[#allocation2 + $0x78] sm:$0xff]
  %v96 = vld [vmem:[#allocation2 + $0x80] sm:$0xff]
  %v97 = vld [vmem:[#allocation2 + $0x88] sm:$0xff]
  %v98 = vld [vmem:[#allocation2 + $0x90] sm:$0xff]
  %v99 = vld [vmem:[#allocation2 + $0x98] sm:$0xff]
  %v100 = vld [vmem:[#allocation2 + $0xa0] sm:$0xff]
  %v101 = vld [vmem:[#allocation2 + $0xa8] sm:$0xff]
  %v102 = vld [vmem:[#allocation2 + $0xb0] sm:$0xff]
  %v103 = vld [vmem:[#allocation2 + $0xb8] sm:$0xff]
  %v104 = vld [vmem:[#allocation2 + $0xc0] sm:$0xff]
  %v105 = vld [vmem:[#allocation2 + $0xc8] sm:$0xff]
  %v106 = vld [vmem:[#allocation2 + $0xd0] sm:$0xff]
  %v107 = vld [vmem:[#allocation2 + $0xd8] sm:$0xff]
  %v108 = vld [vmem:[#allocation2 + $0xe0] sm:$0xff]
  %v109 = vld [vmem:[#allocation2 + $0xe8] sm:$0xff]
  %v110 = vld [vmem:[#allocation2 + $0xf0] sm:$0xff]
  %v111 = vld [vmem:[#allocation2 + $0xf8] sm:$0xff]
  %v112 = vld [vmem:[#allocation2 + $0x100] sm:$0xff]
  %v113 = vld [vmem:[#allocation2 + $0x108] sm:$0xff]
  %v114 = vld [vmem:[#allocation2 + $0x110] sm:$0xff]
  %v115 = vld [vmem:[#allocation2 + $0x118] sm:$0xff]
  %v116 = vld [vmem:[#allocation2 + $0x120] sm:$0xff]
  %v117 = vld [vmem:[#allocation2 + $0x128] sm:$0xff]
  %v118 = vld [vmem:[#allocation2 + $0x130] sm:$0xff]
  %v119 = vld [vmem:[#allocation2 + $0x138] sm:$0xff]
  %v120 = vld [vmem:[#allocation2 + $0x140] sm:$0xff]
  %v121 = vld [vmem:[#allocation2 + $0x148] sm:$0xff]
  %v122 = vld [vmem:[#allocation2 + $0x150] sm:$0xff]
  %v123 = vld [vmem:[#allocation2 + $0x158] sm:$0xff]
  %v124 = vld [vmem:[#allocation2 + $0x160] sm:$0xff]
  %v125 = vld [vmem:[#allocation2 + $0x168] sm:$0xff]
  %v126 = vld [vmem:[#allocation2 + $0x170] sm:$0xff]
  %v127 = vld [vmem:[#allocation2 + $0x178] sm:$0xff]
  %v128 = vld [vmem:[#allocation2 + $0x180] sm:$0xff]
  %v129 = vld [vmem:[#allocation2 + $0x188] sm:$0xff]
  %v130 = vld [vmem:[#allocation2 + $0x190] sm:$0xff]
  %v131 = vld [vmem:[#allocation2 + $0x198] sm:$0xff]
  %v132 = vld [vmem:[#allocation2 + $0x1a0] sm:$0xff]
  %v133 = vld [vmem:[#allocation2 + $0x1a8] sm:$0xff]
  %v134 = vld [vmem:[#allocation2 + $0x1b0] sm:$0xff]
  %v135 = vld [vmem:[#allocation2 + $0x1b8] sm:$0xff]
  %v136 = vld [vmem:[#allocation2 + $0x1c0] sm:$0xff]
  %v137 = vld [vmem:[#allocation2 + $0x1c8] sm:$0xff]
  %v138 = vld [vmem:[#allocation2 + $0x1d0] sm:$0xff]
  %v139 = vld [vmem:[#allocation2 + $0x1d8] sm:$0xff]
  %v140 = vld [vmem:[#allocation2 + $0x1e0] sm:$0xff]
  %v141 = vld [vmem:[#allocation2 + $0x1e8] sm:$0xff]
  %v142 = vld [vmem:[#allocation2 + $0x1f0] sm:$0xff]
  %v143 = vld [vmem:[#allocation2 + $0x1f8] sm:$0xff]
  %v144 = vld [vmem:[%s0] sm:$0xff]
  %v145 = vld [vmem:[%s0 + $0x8] sm:$0xff]
  %v146 = vld [vmem:[%s0 + $0x10] sm:$0xff]
  %v147 = vld [vmem:[%s0 + $0x18] sm:$0xff]
  %v148 = vld [vmem:[%s0 + $0x20] sm:$0xff]
  %v149 = vld [vmem:[%s0 + $0x28] sm:$0xff]
  %v150 = vld [vmem:[%s0 + $0x30] sm:$0xff]
  %v151 = vld [vmem:[%s0 + $0x38] sm:$0xff]
  %v152 = vld [vmem:[%s0 + $0x40] sm:$0xff]
  %v153 = vld [vmem:[%s0 + $0x48] sm:$0xff]
  %v154 = vld [vmem:[%s0 + $0x50] sm:$0xff]
  %v155 = vld [vmem:[%s0 + $0x58] sm:$0xff]
  %v156 = vld [vmem:[%s0 + $0x60] sm:$0xff]
  %v157 = vld [vmem:[%s0 + $0x68] sm:$0xff]
  %v158 = vld [vmem:[%s0 + $0x70] sm:$0xff]
  %v159 = vld [vmem:[%s0 + $0x78] sm:$0xff]
  %v160 = vld [vmem:[%s0 + $0x80] sm:$0xff]
  %v161 = vld [vmem:[%s0 + $0x88] sm:$0xff]
  %v162 = vld [vmem:[%s0 + $0x90] sm:$0xff]
  %v163 = vld [vmem:[%s0 + $0x98] sm:$0xff]
  %v164 = vld [vmem:[%s0 + $0xa0] sm:$0xff]
  %v165 = vld [vmem:[%s0 + $0xa8] sm:$0xff]
  %v166 = vld [vmem:[%s0 + $0xb0] sm:$0xff]
  %v167 = vld [vmem:[%s0 + $0xb8] sm:$0xff]
  %v168 = vld [vmem:[%s0 + $0xc0] sm:$0xff]
  %v169 = vld [vmem:[%s0 + $0xc8] sm:$0xff]
  %v170 = vld [vmem:[%s0 + $0xd0] sm:$0xff]
  %v171 = vld [vmem:[%s0 + $0xd8] sm:$0xff]
  %v172 = vld [vmem:[%s0 + $0xe0] sm:$0xff]
  %v173 = vld [vmem:[%s0 + $0xe8] sm:$0xff]
  %v174 = vld [vmem:[%s0 + $0xf0] sm:$0xff]
  %v175 = vld [vmem:[%s0 + $0xf8] sm:$0xff]
  %v176 = vld [vmem:[%s0 + $0x100] sm:$0xff]
  %v177 = vld [vmem:[%s0 + $0x108] sm:$0xff]
  %v178 = vld [vmem:[%s0 + $0x110] sm:$0xff]
  %v179 = vld [vmem:[%s0 + $0x118] sm:$0xff]
  %v180 = vld [vmem:[%s0 + $0x120] sm:$0xff]
  %v181 = vld [vmem:[%s0 + $0x128] sm:$0xff]
  %v182 = vld [vmem:[%s0 + $0x130] sm:$0xff]
  %v183 = vld [vmem:[%s0 + $0x138] sm:$0xff]
  %v184 = vld [vmem:[%s0 + $0x140] sm:$0xff]
  %v185 = vld [vmem:[%s0 + $0x148] sm:$0xff]
  %v186 = vld [vmem:[%s0 + $0x150] sm:$0xff]
  %v187 = vld [vmem:[%s0 + $0x158] sm:$0xff]
  %v188 = vld [vmem:[%s0 + $0x160] sm:$0xff]
  %v189 = vld [vmem:[%s0 + $0x168] sm:$0xff]
  %v190 = vld [vmem:[%s0 + $0x170] sm:$0xff]
  %v191 = vld [vmem:[%s0 + $0x178] sm:$0xff]
  %v192 = vld [vmem:[%s0 + $0x180] sm:$0xff]
  %v193 = vld [vmem:[%s0 + $0x188] sm:$0xff]
  %v194 = vld [vmem:[%s0 + $0x190] sm:$0xff]
  %v195 = vld [vmem:[%s0 + $0x198] sm:$0xff]
  %v196 = vld [vmem:[%s0 + $0x1a0] sm:$0xff]
  %v197 = vld [vmem:[%s0 + $0x1a8] sm:$0xff]
  %v198 = vld [vmem:[%s0 + $0x1b0] sm:$0xff]
  %v199 = vld [vmem:[%s0 + $0x1b8] sm:$0xff]
  %v200 = vld [vmem:[%s0 + $0x1c0] sm:$0xff]
  %v201 = vld [vmem:[%s0 + $0x1c8] sm:$0xff]
  %v202 = vld [vmem:[%s0 + $0x1d0] sm:$0xff]
  %v203 = vld [vmem:[%s0 + $0x1d8] sm:$0xff]
  %v204 = vld [vmem:[%s0 + $0x1e0] sm:$0xff]
  %v205 = vld [vmem:[%s0 + $0x1e8] sm:$0xff]
  %v206 = vld [vmem:[%s0 + $0x1f0] sm:$0xff]
  %v207 = vld [vmem:[%s0 + $0x1f8] sm:$0xff]
  %v208 = vld [vmem:[%s1] sm:$0xf]
  %v209 = vld [vmem:[%s1 + $0x4] sm:$0xf]
  %v210 = vld [vmem:[%s1 + $0x8] sm:$0xf]
  %v211 = vld [vmem:[%s1 + $0xc] sm:$0xf]
  %v212 = vld [vmem:[%s1 + $0x10] sm:$0xf]
  %v213 = vld [vmem:[%s1 + $0x14] sm:$0xf]
  %v214 = vld [vmem:[%s1 + $0x18] sm:$0xf]
  %v215 = vld [vmem:[%s1 + $0x1c] sm:$0xf]
  %v216 = vld [vmem:[%s1 + $0x20] sm:$0xf]
  %v217 = vld [vmem:[%s1 + $0x24] sm:$0xf]
  %v218 = vld [vmem:[%s1 + $0x28] sm:$0xf]
  %v219 = vld [vmem:[%s1 + $0x2c] sm:$0xf]
  %v220 = vld [vmem:[%s1 + $0x30] sm:$0xf]
  %v221 = vld [vmem:[%s1 + $0x34] sm:$0xf]
  %v222 = vld [vmem:[%s1 + $0x38] sm:$0xf]
  %v223 = vld [vmem:[%s1 + $0x3c] sm:$0xf]
  %v224 = vld [vmem:[%s1 + $0x40] sm:$0xf]
  %v225 = vld [vmem:[%s1 + $0x44] sm:$0xf]
  %v226 = vld [vmem:[%s1 + $0x48] sm:$0xf]
  %v227 = vld [vmem:[%s1 + $0x4c] sm:$0xf]
  %v228 = vld [vmem:[%s1 + $0x50] sm:$0xf]
  %v229 = vld [vmem:[%s1 + $0x54] sm:$0xf]
  %v230 = vld [vmem:[%s1 + $0x58] sm:$0xf]
  %v231 = vld [vmem:[%s1 + $0x5c] sm:$0xf]
  %v232 = vld [vmem:[%s1 + $0x60] sm:$0xf]
  %v233 = vld [vmem:[%s1 + $0x64] sm:$0xf]
  %v234 = vld [vmem:[%s1 + $0x68] sm:$0xf]
  %v235 = vld [vmem:[%s1 + $0x6c] sm:$0xf]
  %v236 = vld [vmem:[%s1 + $0x70] sm:$0xf]
  %v237 = vld [vmem:[%s1 + $0x74] sm:$0xf]
  %v238 = vld [vmem:[%s1 + $0x78] sm:$0xf]
  %v239 = vld [vmem:[%s1 + $0x7c] sm:$0xf]
  %v304 = vunpack.c.l.b16 %v144
  %v305 = vunpack.c.h.b16 %v144
  %v306 = vunpack.c.l.b16 %v145
  %v307 = vunpack.c.h.b16 %v145
  %v308 = vunpack.c.l.b16 %v146
  %v309 = vunpack.c.h.b16 %v146
  %v310 = vunpack.c.l.b16 %v147
  %v311 = vunpack.c.h.b16 %v147
  %v312 = vunpack.c.l.b16 %v148
  %v313 = vunpack.c.h.b16 %v148
  %v314 = vunpack.c.l.b16 %v149
  %v315 = vunpack.c.h.b16 %v149
  %v316 = vunpack.c.l.b16 %v150
  %v317 = vunpack.c.h.b16 %v150
  %v318 = vunpack.c.l.b16 %v151
  %v319 = vunpack.c.h.b16 %v151
  %v320 = vunpack.c.l.b16 %v152
  %v321 = vunpack.c.h.b16 %v152
  %v322 = vunpack.c.l.b16 %v153
  %v323 = vunpack.c.h.b16 %v153
  %v324 = vunpack.c.l.b16 %v154
  %v325 = vunpack.c.h.b16 %v154
  %v326 = vunpack.c.l.b16 %v155
  %v327 = vunpack.c.h.b16 %v155
  %v328 = vunpack.c.l.b16 %v156
  %v329 = vunpack.c.h.b16 %v156
  %v330 = vunpack.c.l.b16 %v157
  %v331 = vunpack.c.h.b16 %v157
  %v332 = vunpack.c.l.b16 %v158
  %v333 = vunpack.c.h.b16 %v158
  %v334 = vunpack.c.l.b16 %v159
  %v335 = vunpack.c.h.b16 %v159
  %v336 = vunpack.c.l.b16 %v160
  %v337 = vunpack.c.h.b16 %v160
  %v338 = vunpack.c.l.b16 %v161
  %v339 = vunpack.c.h.b16 %v161
  %v340 = vunpack.c.l.b16 %v162
  %v341 = vunpack.c.h.b16 %v162
  %v342 = vunpack.c.l.b16 %v163
  %v343 = vunpack.c.h.b16 %v163
  %v344 = vunpack.c.l.b16 %v164
  %v345 = vunpack.c.h.b16 %v164
  %v346 = vunpack.c.l.b16 %v165
  %v347 = vunpack.c.h.b16 %v165
  %v348 = vunpack.c.l.b16 %v166
  %v349 = vunpack.c.h.b16 %v166
  %v350 = vunpack.c.l.b16 %v167
  %v351 = vunpack.c.h.b16 %v167
  %v352 = vunpack.c.l.b16 %v168
  %v353 = vunpack.c.h.b16 %v168
  %v354 = vunpack.c.l.b16 %v169
  %v355 = vunpack.c.h.b16 %v169
  %v356 = vunpack.c.l.b16 %v170
  %v357 = vunpack.c.h.b16 %v170
  %v358 = vunpack.c.l.b16 %v171
  %v359 = vunpack.c.h.b16 %v171
  %v360 = vunpack.c.l.b16 %v172
  %v361 = vunpack.c.h.b16 %v172
  %v362 = vunpack.c.l.b16 %v173
  %v363 = vunpack.c.h.b16 %v173
  %v364 = vunpack.c.l.b16 %v174
  %v365 = vunpack.c.h.b16 %v174
  %v366 = vunpack.c.l.b16 %v175
  %v367 = vunpack.c.h.b16 %v175
  %v368 = vunpack.c.l.b16 %v176
  %v369 = vunpack.c.h.b16 %v176
  %v370 = vunpack.c.l.b16 %v177
  %v371 = vunpack.c.h.b16 %v177
  %v372 = vunpack.c.l.b16 %v178
  %v373 = vunpack.c.h.b16 %v178
  %v374 = vunpack.c.l.b16 %v179
  %v375 = vunpack.c.h.b16 %v179
  %v376 = vunpack.c.l.b16 %v180
  %v377 = vunpack.c.h.b16 %v180
  %v378 = vunpack.c.l.b16 %v181
  %v379 = vunpack.c.h.b16 %v181
  %v380 = vunpack.c.l.b16 %v182
  %v381 = vunpack.c.h.b16 %v182
  %v382 = vunpack.c.l.b16 %v183
  %v383 = vunpack.c.h.b16 %v183
  %v384 = vunpack.c.l.b16 %v184
  %v385 = vunpack.c.h.b16 %v184
  %v386 = vunpack.c.l.b16 %v185
  %v387 = vunpack.c.h.b16 %v185
  %v388 = vunpack.c.l.b16 %v186
  %v389 = vunpack.c.h.b16 %v186
  %v390 = vunpack.c.l.b16 %v187
  %v391 = vunpack.c.h.b16 %v187
  %v392 = vunpack.c.l.b16 %v188
  %v393 = vunpack.c.h.b16 %v188
  %v394 = vunpack.c.l.b16 %v189
  %v395 = vunpack.c.h.b16 %v189
  %v396 = vunpack.c.l.b16 %v190
  %v397 = vunpack.c.h.b16 %v190
  %v398 = vunpack.c.l.b16 %v191
  %v399 = vunpack.c.h.b16 %v191
  %v400 = vunpack.c.l.b16 %v192
  %v401 = vunpack.c.h.b16 %v192
  %v402 = vunpack.c.l.b16 %v193
  %v403 = vunpack.c.h.b16 %v193
  %v404 = vunpack.c.l.b16 %v194
  %v405 = vunpack.c.h.b16 %v194
  %v406 = vunpack.c.l.b16 %v195
  %v407 = vunpack.c.h.b16 %v195
  %v408 = vunpack.c.l.b16 %v196
  %v409 = vunpack.c.h.b16 %v196
  %v410 = vunpack.c.l.b16 %v197
  %v411 = vunpack.c.h.b16 %v197
  %v412 = vunpack.c.l.b16 %v198
  %v413 = vunpack.c.h.b16 %v198
  %v414 = vunpack.c.l.b16 %v199
  %v415 = vunpack.c.h.b16 %v199
  %v416 = vunpack.c.l.b16 %v200
  %v417 = vunpack.c.h.b16 %v200
  %v418 = vunpack.c.l.b16 %v201
  %v419 = vunpack.c.h.b16 %v201
  %v420 = vunpack.c.l.b16 %v202
  %v421 = vunpack.c.h.b16 %v202
  %v422 = vunpack.c.l.b16 %v203
  %v423 = vunpack.c.h.b16 %v203
  %v424 = vunpack.c.l.b16 %v204
  %v425 = vunpack.c.h.b16 %v204
  %v426 = vunpack.c.l.b16 %v205
  %v427 = vunpack.c.h.b16 %v205
  %v428 = vunpack.c.l.b16 %v206
  %v429 = vunpack.c.h.b16 %v206
  %v430 = vunpack.c.l.b16 %v207
  %v431 = vunpack.c.h.b16 %v207
  %v432 = vpack.c.b16 %v306, %v304
  %v433 = vpack.c.b16 %v307, %v305
  %v434 = vpack.c.b16 %v310, %v308
  %v435 = vpack.c.b16 %v311, %v309
  %v436 = vpack.c.b16 %v314, %v312
  %v437 = vpack.c.b16 %v315, %v313
  %v438 = vpack.c.b16 %v318, %v316
  %v439 = vpack.c.b16 %v319, %v317
  %v440 = vpack.c.b16 %v322, %v320
  %v441 = vpack.c.b16 %v323, %v321
  %v442 = vpack.c.b16 %v326, %v324
  %v443 = vpack.c.b16 %v327, %v325
  %v444 = vpack.c.b16 %v330, %v328
  %v445 = vpack.c.b16 %v331, %v329
  %v446 = vpack.c.b16 %v334, %v332
  %v447 = vpack.c.b16 %v335, %v333
  %v448 = vpack.c.b16 %v338, %v336
  %v449 = vpack.c.b16 %v339, %v337
  %v450 = vpack.c.b16 %v342, %v340
  %v451 = vpack.c.b16 %v343, %v341
  %v452 = vpack.c.b16 %v346, %v344
  %v453 = vpack.c.b16 %v347, %v345
  %v454 = vpack.c.b16 %v350, %v348
  %v455 = vpack.c.b16 %v351, %v349
  %v456 = vpack.c.b16 %v354, %v352
  %v457 = vpack.c.b16 %v355, %v353
  %v458 = vpack.c.b16 %v358, %v356
  %v459 = vpack.c.b16 %v359, %v357
  %v460 = vpack.c.b16 %v362, %v360
  %v461 = vpack.c.b16 %v363, %v361
  %v462 = vpack.c.b16 %v366, %v364
  %v463 = vpack.c.b16 %v367, %v365
  %v464 = vpack.c.b16 %v370, %v368
  %v465 = vpack.c.b16 %v371, %v369
  %v466 = vpack.c.b16 %v374, %v372
  %v467 = vpack.c.b16 %v375, %v373
  %v468 = vpack.c.b16 %v378, %v376
  %v469 = vpack.c.b16 %v379, %v377
  %v470 = vpack.c.b16 %v382, %v380
  %v471 = vpack.c.b16 %v383, %v381
  %v472 = vpack.c.b16 %v386, %v384
  %v473 = vpack.c.b16 %v387, %v385
  %v474 = vpack.c.b16 %v390, %v388
  %v475 = vpack.c.b16 %v391, %v389
  %v476 = vpack.c.b16 %v394, %v392
  %v477 = vpack.c.b16 %v395, %v393
  %v478 = vpack.c.b16 %v398, %v396
  %v479 = vpack.c.b16 %v399, %v397
  %v480 = vpack.c.b16 %v402, %v400
  %v481 = vpack.c.b16 %v403, %v401
  %v482 = vpack.c.b16 %v406, %v404
  %v483 = vpack.c.b16 %v407, %v405
  %v484 = vpack.c.b16 %v410, %v408
  %v485 = vpack.c.b16 %v411, %v409
  %v486 = vpack.c.b16 %v414, %v412
  %v487 = vpack.c.b16 %v415, %v413
  %v488 = vpack.c.b16 %v418, %v416
  %v489 = vpack.c.b16 %v419, %v417
  %v490 = vpack.c.b16 %v422, %v420
  %v491 = vpack.c.b16 %v423, %v421
  %v492 = vpack.c.b16 %v426, %v424
  %v493 = vpack.c.b16 %v427, %v425
  %v494 = vpack.c.b16 %v430, %v428
  %v495 = vpack.c.b16 %v431, %v429
  %v592 = vunpack.c.l.b16 %v208
  %v593 = vunpack.c.l.b16 %v209
  %v594 = vunpack.c.l.b16 %v210
  %v595 = vunpack.c.l.b16 %v211
  %v596 = vunpack.c.l.b16 %v212
  %v597 = vunpack.c.l.b16 %v213
  %v598 = vunpack.c.l.b16 %v214
  %v599 = vunpack.c.l.b16 %v215
  %v600 = vunpack.c.l.b16 %v216
  %v601 = vunpack.c.l.b16 %v217
  %v602 = vunpack.c.l.b16 %v218
  %v603 = vunpack.c.l.b16 %v219
  %v604 = vunpack.c.l.b16 %v220
  %v605 = vunpack.c.l.b16 %v221
  %v606 = vunpack.c.l.b16 %v222
  %v607 = vunpack.c.l.b16 %v223
  %v608 = vunpack.c.l.b16 %v224
  %v609 = vunpack.c.l.b16 %v225
  %v610 = vunpack.c.l.b16 %v226
  %v611 = vunpack.c.l.b16 %v227
  %v612 = vunpack.c.l.b16 %v228
  %v613 = vunpack.c.l.b16 %v229
  %v614 = vunpack.c.l.b16 %v230
  %v615 = vunpack.c.l.b16 %v231
  %v616 = vunpack.c.l.b16 %v232
  %v617 = vunpack.c.l.b16 %v233
  %v618 = vunpack.c.l.b16 %v234
  %v619 = vunpack.c.l.b16 %v235
  %v620 = vunpack.c.l.b16 %v236
  %v621 = vunpack.c.l.b16 %v237
  %v622 = vunpack.c.l.b16 %v238
  %v623 = vunpack.c.l.b16 %v239
  %v624 = vpack.c.b16 %v593, %v592
  %v625 = vpack.c.b16 %v595, %v594
  %v626 = vpack.c.b16 %v597, %v596
  %v627 = vpack.c.b16 %v599, %v598
  %v628 = vpack.c.b16 %v601, %v600
  %v629 = vpack.c.b16 %v603, %v602
  %v630 = vpack.c.b16 %v605, %v604
  %v631 = vpack.c.b16 %v607, %v606
  %v632 = vpack.c.b16 %v609, %v608
  %v633 = vpack.c.b16 %v611, %v610
  %v634 = vpack.c.b16 %v613, %v612
  %v635 = vpack.c.b16 %v615, %v614
  %v636 = vpack.c.b16 %v617, %v616
  %v637 = vpack.c.b16 %v619, %v618
  %v638 = vpack.c.b16 %v621, %v620
  %v639 = vpack.c.b16 %v623, %v622
  %656 = vmatprep.subr.bf16.mxu0 0
  %657 = vmatpush1.bf16.msra.mxu0 %v631
  %658 = vmatprep.subr.bf16.mxu0 0
  %659 = vmatpush1.bf16.msra.mxu0 %v630
  %660 = vmatprep.subr.bf16.mxu0 0
  %661 = vmatpush1.bf16.msra.mxu0 %v629
  %662 = vmatprep.subr.bf16.mxu0 0
  %663 = vmatpush1.bf16.msra.mxu0 %v628
  %664 = vmatprep.subr.bf16.mxu0 0
  %665 = vmatpush1.bf16.msra.mxu0 %v627
  %666 = vmatprep.subr.bf16.mxu0 0
  %667 = vmatpush1.bf16.msra.mxu0 %v626
  %668 = vmatprep.subr.bf16.mxu0 0
  %669 = vmatpush1.bf16.msra.mxu0 %v625
  %670 = vmatprep.subr.bf16.mxu0 0
  %671 = vmatpush1.bf16.msra.mxu0 %v624
  %672 = vmatprep.subr.bf16.mxu0 0
  %673 = vmatpush2.bf16.msra.mxu0 %v639
  %674 = vmatprep.subr.bf16.mxu0 0
  %675 = vmatpush2.bf16.msra.mxu0 %v638
  %676 = vmatprep.subr.bf16.mxu0 0
  %677 = vmatpush2.bf16.msra.mxu0 %v637
  %678 = vmatprep.subr.bf16.mxu0 0
  %679 = vmatpush2.bf16.msra.mxu0 %v636
  %680 = vmatprep.subr.bf16.mxu0 0
  %681 = vmatpush2.bf16.msra.mxu0 %v635
  %682 = vmatprep.subr.bf16.mxu0 0
  %683 = vmatpush2.bf16.msra.mxu0 %v634
  %684 = vmatprep.subr.bf16.mxu0 0
  %685 = vmatpush2.bf16.msra.mxu0 %v633
  %686 = vmatprep.subr.bf16.mxu0 0
  %687 = vmatpush2.bf16.msra.mxu0 %v632
  %688 = vmatprep.mubr.bf16.mxu0 %v433
  %689 = vmatmul.mubr.bf16.gmra.mxu0 %v432
  %v690 = vpop.f32.mrf.mxu0
  %v691 = vadd.f32 0.0, %v690
  %v692 = vpop.f32.mrf.mxu0
  %v693 = vpop.f32.mrf.mxu0
  %v694 = vadd.f32 0.0, %v693
  %v695 = vpop.f32.mrf.mxu0
  %696 = vmatprep.mubr.bf16.mxu0 %v435
  %697 = vmatmul.mubr.bf16.gmra.mxu0 %v434
  %v698 = vpop.f32.mrf.mxu0
  %v699 = vadd.f32 0.0, %v698
  %v700 = vpop.f32.mrf.mxu0
  %v701 = vpop.f32.mrf.mxu0
  %v702 = vadd.f32 0.0, %v701
  %v703 = vpop.f32.mrf.mxu0
  %704 = vmatprep.mubr.bf16.mxu0 %v437
  %705 = vmatmul.mubr.bf16.gmra.mxu0 %v436
  %v706 = vpop.f32.mrf.mxu0
  %v707 = vadd.f32 0.0, %v706
  %v708 = vpop.f32.mrf.mxu0
  %v709 = vpop.f32.mrf.mxu0
  %v710 = vadd.f32 0.0, %v709
  %v711 = vpop.f32.mrf.mxu0
  %712 = vmatprep.mubr.bf16.mxu0 %v439
  %713 = vmatmul.mubr.bf16.gmra.mxu0 %v438
  %v714 = vpop.f32.mrf.mxu0
  %v715 = vadd.f32 0.0, %v714
  %v716 = vpop.f32.mrf.mxu0
  %v717 = vpop.f32.mrf.mxu0
  %v718 = vadd.f32 0.0, %v717
  %v719 = vpop.f32.mrf.mxu0
  %720 = vmatprep.mubr.bf16.mxu0 %v441
  %721 = vmatmul.mubr.bf16.gmra.mxu0 %v440
  %v722 = vpop.f32.mrf.mxu0
  %v723 = vadd.f32 0.0, %v722
  %v724 = vpop.f32.mrf.mxu0
  %v725 = vpop.f32.mrf.mxu0
  %v726 = vadd.f32 0.0, %v725
  %v727 = vpop.f32.mrf.mxu0
  %728 = vmatprep.mubr.bf16.mxu0 %v443
  %729 = vmatmul.mubr.bf16.gmra.mxu0 %v442
  %v730 = vpop.f32.mrf.mxu0
  %v731 = vadd.f32 0.0, %v730
  %v732 = vpop.f32.mrf.mxu0
  %v733 = vpop.f32.mrf.mxu0
  %v734 = vadd.f32 0.0, %v733
  %v735 = vpop.f32.mrf.mxu0
  %736 = vmatprep.mubr.bf16.mxu0 %v445
  %737 = vmatmul.mubr.bf16.gmra.mxu0 %v444
  %v738 = vpop.f32.mrf.mxu0
  %v739 = vadd.f32 0.0, %v738
  %v740 = vpop.f32.mrf.mxu0
  %v741 = vpop.f32.mrf.mxu0
  %v742 = vadd.f32 0.0, %v741
  %v743 = vpop.f32.mrf.mxu0
  %744 = vmatprep.mubr.bf16.mxu0 %v447
  %745 = vmatmul.mubr.bf16.gmra.mxu0 %v446
  %v746 = vpop.f32.mrf.mxu0
  %v747 = vadd.f32 0.0, %v746
  %v748 = vpop.f32.mrf.mxu0
  %v749 = vpop.f32.mrf.mxu0
  %v750 = vadd.f32 0.0, %v749
  %v751 = vpop.f32.mrf.mxu0
  %752 = vmatprep.mubr.bf16.mxu0 %v449
  %753 = vmatmul.mubr.bf16.gmra.mxu0 %v448
  %v754 = vpop.f32.mrf.mxu0
  %v755 = vadd.f32 0.0, %v754
  %v756 = vpop.f32.mrf.mxu0
  %v757 = vpop.f32.mrf.mxu0
  %v758 = vadd.f32 0.0, %v757
  %v759 = vpop.f32.mrf.mxu0
  %760 = vmatprep.mubr.bf16.mxu0 %v451
  %761 = vmatmul.mubr.bf16.gmra.mxu0 %v450
  %v762 = vpop.f32.mrf.mxu0
  %v763 = vadd.f32 0.0, %v762
  %v764 = vpop.f32.mrf.mxu0
  %v765 = vpop.f32.mrf.mxu0
  %v766 = vadd.f32 0.0, %v765
  %v767 = vpop.f32.mrf.mxu0
  %768 = vmatprep.mubr.bf16.mxu0 %v453
  %769 = vmatmul.mubr.bf16.gmra.mxu0 %v452
  %v770 = vpop.f32.mrf.mxu0
  %v771 = vadd.f32 0.0, %v770
  %v772 = vpop.f32.mrf.mxu0
  %v773 = vpop.f32.mrf.mxu0
  %v774 = vadd.f32 0.0, %v773
  %v775 = vpop.f32.mrf.mxu0
  %776 = vmatprep.mubr.bf16.mxu0 %v455
  %777 = vmatmul.mubr.bf16.gmra.mxu0 %v454
  %v778 = vpop.f32.mrf.mxu0
  %v779 = vadd.f32 0.0, %v778
  %v780 = vpop.f32.mrf.mxu0
  %v781 = vpop.f32.mrf.mxu0
  %v782 = vadd.f32 0.0, %v781
  %v783 = vpop.f32.mrf.mxu0
  %784 = vmatprep.mubr.bf16.mxu0 %v457
  %785 = vmatmul.mubr.bf16.gmra.mxu0 %v456
  %v786 = vpop.f32.mrf.mxu0
  %v787 = vadd.f32 0.0, %v786
  %v788 = vpop.f32.mrf.mxu0
  %v789 = vpop.f32.mrf.mxu0
  %v790 = vadd.f32 0.0, %v789
  %v791 = vpop.f32.mrf.mxu0
  %792 = vmatprep.mubr.bf16.mxu0 %v459
  %793 = vmatmul.mubr.bf16.gmra.mxu0 %v458
  %v794 = vpop.f32.mrf.mxu0
  %v795 = vadd.f32 0.0, %v794
  %v796 = vpop.f32.mrf.mxu0
  %v797 = vpop.f32.mrf.mxu0
  %v798 = vadd.f32 0.0, %v797
  %v799 = vpop.f32.mrf.mxu0
  %800 = vmatprep.mubr.bf16.mxu0 %v461
  %801 = vmatmul.mubr.bf16.gmra.mxu0 %v460
  %v802 = vpop.f32.mrf.mxu0
  %v803 = vadd.f32 0.0, %v802
  %v804 = vpop.f32.mrf.mxu0
  %v805 = vpop.f32.mrf.mxu0
  %v806 = vadd.f32 0.0, %v805
  %v807 = vpop.f32.mrf.mxu0
  %808 = vmatprep.mubr.bf16.mxu0 %v463
  %809 = vmatmul.mubr.bf16.gmra.mxu0 %v462
  %v810 = vpop.f32.mrf.mxu0
  %v811 = vadd.f32 0.0, %v810
  %v812 = vpop.f32.mrf.mxu0
  %v813 = vpop.f32.mrf.mxu0
  %v814 = vadd.f32 0.0, %v813
  %v815 = vpop.f32.mrf.mxu0
  %816 = vmatprep.mubr.bf16.mxu0 %v465
  %817 = vmatmul.mubr.bf16.gmra.mxu0 %v464
  %v818 = vpop.f32.mrf.mxu0
  %v819 = vadd.f32 0.0, %v818
  %v820 = vpop.f32.mrf.mxu0
  %v821 = vpop.f32.mrf.mxu0
  %v822 = vadd.f32 0.0, %v821
  %v823 = vpop.f32.mrf.mxu0
  %824 = vmatprep.mubr.bf16.mxu0 %v467
  %825 = vmatmul.mubr.bf16.gmra.mxu0 %v466
  %v826 = vpop.f32.mrf.mxu0
  %v827 = vadd.f32 0.0, %v826
  %v828 = vpop.f32.mrf.mxu0
  %v829 = vpop.f32.mrf.mxu0
  %v830 = vadd.f32 0.0, %v829
  %v831 = vpop.f32.mrf.mxu0
  %832 = vmatprep.mubr.bf16.mxu0 %v469
  %833 = vmatmul.mubr.bf16.gmra.mxu0 %v468
  %v834 = vpop.f32.mrf.mxu0
  %v835 = vadd.f32 0.0, %v834
  %v836 = vpop.f32.mrf.mxu0
  %v837 = vpop.f32.mrf.mxu0
  %v838 = vadd.f32 0.0, %v837
  %v839 = vpop.f32.mrf.mxu0
  %840 = vmatprep.mubr.bf16.mxu0 %v471
  %841 = vmatmul.mubr.bf16.gmra.mxu0 %v470
  %v842 = vpop.f32.mrf.mxu0
  %v843 = vadd.f32 0.0, %v842
  %v844 = vpop.f32.mrf.mxu0
  %v845 = vpop.f32.mrf.mxu0
  %v846 = vadd.f32 0.0, %v845
  %v847 = vpop.f32.mrf.mxu0
  %848 = vmatprep.mubr.bf16.mxu0 %v473
  %849 = vmatmul.mubr.bf16.gmra.mxu0 %v472
  %v850 = vpop.f32.mrf.mxu0
  %v851 = vadd.f32 0.0, %v850
  %v852 = vpop.f32.mrf.mxu0
  %v853 = vpop.f32.mrf.mxu0
  %v854 = vadd.f32 0.0, %v853
  %v855 = vpop.f32.mrf.mxu0
  %856 = vmatprep.mubr.bf16.mxu0 %v475
  %857 = vmatmul.mubr.bf16.gmra.mxu0 %v474
  %v858 = vpop.f32.mrf.mxu0
  %v859 = vadd.f32 0.0, %v858
  %v860 = vpop.f32.mrf.mxu0
  %v861 = vpop.f32.mrf.mxu0
  %v862 = vadd.f32 0.0, %v861
  %v863 = vpop.f32.mrf.mxu0
  %864 = vmatprep.mubr.bf16.mxu0 %v477
  %865 = vmatmul.mubr.bf16.gmra.mxu0 %v476
  %v866 = vpop.f32.mrf.mxu0
  %v867 = vadd.f32 0.0, %v866
  %v868 = vpop.f32.mrf.mxu0
  %v869 = vpop.f32.mrf.mxu0
  %v870 = vadd.f32 0.0, %v869
  %v871 = vpop.f32.mrf.mxu0
  %872 = vmatprep.mubr.bf16.mxu0 %v479
  %873 = vmatmul.mubr.bf16.gmra.mxu0 %v478
  %v874 = vpop.f32.mrf.mxu0
  %v875 = vadd.f32 0.0, %v874
  %v876 = vpop.f32.mrf.mxu0
  %v877 = vpop.f32.mrf.mxu0
  %v878 = vadd.f32 0.0, %v877
  %v879 = vpop.f32.mrf.mxu0
  %880 = vmatprep.mubr.bf16.mxu0 %v481
  %881 = vmatmul.mubr.bf16.gmra.mxu0 %v480
  %v882 = vpop.f32.mrf.mxu0
  %v883 = vadd.f32 0.0, %v882
  %v884 = vpop.f32.mrf.mxu0
  %v885 = vpop.f32.mrf.mxu0
  %v886 = vadd.f32 0.0, %v885
  %v887 = vpop.f32.mrf.mxu0
  %888 = vmatprep.mubr.bf16.mxu0 %v483
  %889 = vmatmul.mubr.bf16.gmra.mxu0 %v482
  %v890 = vpop.f32.mrf.mxu0
  %v891 = vadd.f32 0.0, %v890
  %v892 = vpop.f32.mrf.mxu0
  %v893 = vpop.f32.mrf.mxu0
  %v894 = vadd.f32 0.0, %v893
  %v895 = vpop.f32.mrf.mxu0
  %896 = vmatprep.mubr.bf16.mxu0 %v485
  %897 = vmatmul.mubr.bf16.gmra.mxu0 %v484
  %v898 = vpop.f32.mrf.mxu0
  %v899 = vadd.f32 0.0, %v898
  %v900 = vpop.f32.mrf.mxu0
  %v901 = vpop.f32.mrf.mxu0
  %v902 = vadd.f32 0.0, %v901
  %v903 = vpop.f32.mrf.mxu0
  %904 = vmatprep.mubr.bf16.mxu0 %v487
  %905 = vmatmul.mubr.bf16.gmra.mxu0 %v486
  %v906 = vpop.f32.mrf.mxu0
  %v907 = vadd.f32 0.0, %v906
  %v908 = vpop.f32.mrf.mxu0
  %v909 = vpop.f32.mrf.mxu0
  %v910 = vadd.f32 0.0, %v909
  %v911 = vpop.f32.mrf.mxu0
  %912 = vmatprep.mubr.bf16.mxu0 %v489
  %913 = vmatmul.mubr.bf16.gmra.mxu0 %v488
  %v914 = vpop.f32.mrf.mxu0
  %v915 = vadd.f32 0.0, %v914
  %v916 = vpop.f32.mrf.mxu0
  %v917 = vpop.f32.mrf.mxu0
  %v918 = vadd.f32 0.0, %v917
  %v919 = vpop.f32.mrf.mxu0
  %920 = vmatprep.mubr.bf16.mxu0 %v491
  %921 = vmatmul.mubr.bf16.gmra.mxu0 %v490
  %v922 = vpop.f32.mrf.mxu0
  %v923 = vadd.f32 0.0, %v922
  %v924 = vpop.f32.mrf.mxu0
  %v925 = vpop.f32.mrf.mxu0
  %v926 = vadd.f32 0.0, %v925
  %v927 = vpop.f32.mrf.mxu0
  %928 = vmatprep.mubr.bf16.mxu0 %v493
  %929 = vmatmul.mubr.bf16.gmra.mxu0 %v492
  %v930 = vpop.f32.mrf.mxu0
  %v931 = vadd.f32 0.0, %v930
  %v932 = vpop.f32.mrf.mxu0
  %v933 = vpop.f32.mrf.mxu0
  %v934 = vadd.f32 0.0, %v933
  %v935 = vpop.f32.mrf.mxu0
  %936 = vmatprep.mubr.bf16.mxu0 %v495
  %937 = vmatmul.mubr.bf16.gmra.mxu0 %v494
  %v938 = vpop.f32.mrf.mxu0
  %v939 = vadd.f32 0.0, %v938
  %v940 = vpop.f32.mrf.mxu0
  %v941 = vpop.f32.mrf.mxu0
  %v942 = vadd.f32 0.0, %v941
  %v943 = vpop.f32.mrf.mxu0
  %944 = vdwg.mxu0
  %v945 = vadd.f32 %v80, %v691
  %v946 = vadd.f32 %v81, %v694
  %v947 = vadd.f32 %v82, %v699
  %v948 = vadd.f32 %v83, %v702
  %v949 = vadd.f32 %v84, %v707
  %v950 = vadd.f32 %v85, %v710
  %v951 = vadd.f32 %v86, %v715
  %v952 = vadd.f32 %v87, %v718
  %v953 = vadd.f32 %v88, %v723
  %v954 = vadd.f32 %v89, %v726
  %v955 = vadd.f32 %v90, %v731
  %v956 = vadd.f32 %v91, %v734
  %v957 = vadd.f32 %v92, %v739
  %v958 = vadd.f32 %v93, %v742
  %v959 = vadd.f32 %v94, %v747
  %v960 = vadd.f32 %v95, %v750
  %v961 = vadd.f32 %v96, %v755
  %v962 = vadd.f32 %v97, %v758
  %v963 = vadd.f32 %v98, %v763
  %v964 = vadd.f32 %v99, %v766
  %v965 = vadd.f32 %v100, %v771
  %v966 = vadd.f32 %v101, %v774
  %v967 = vadd.f32 %v102, %v779
  %v968 = vadd.f32 %v103, %v782
  %v969 = vadd.f32 %v104, %v787
  %v970 = vadd.f32 %v105, %v790
  %v971 = vadd.f32 %v106, %v795
  %v972 = vadd.f32 %v107, %v798
  %v973 = vadd.f32 %v108, %v803
  %v974 = vadd.f32 %v109, %v806
  %v975 = vadd.f32 %v110, %v811
  %v976 = vadd.f32 %v111, %v814
  %v977 = vadd.f32 %v112, %v819
  %v978 = vadd.f32 %v113, %v822
  %v979 = vadd.f32 %v114, %v827
  %v980 = vadd.f32 %v115, %v830
  %v981 = vadd.f32 %v116, %v835
  %v982 = vadd.f32 %v117, %v838
  %v983 = vadd.f32 %v118, %v843
  %v984 = vadd.f32 %v119, %v846
  %v985 = vadd.f32 %v120, %v851
  %v986 = vadd.f32 %v121, %v854
  %v987 = vadd.f32 %v122, %v859
  %v988 = vadd.f32 %v123, %v862
  %v989 = vadd.f32 %v124, %v867
  %v990 = vadd.f32 %v125, %v870
  %v991 = vadd.f32 %v126, %v875
  %v992 = vadd.f32 %v127, %v878
  %v993 = vadd.f32 %v128, %v883
  %v994 = vadd.f32 %v129, %v886
  %v995 = vadd.f32 %v130, %v891
  %v996 = vadd.f32 %v131, %v894
  %v997 = vadd.f32 %v132, %v899
  %v998 = vadd.f32 %v133, %v902
  %v999 = vadd.f32 %v134, %v907
  %v1000 = vadd.f32 %v135, %v910
  %v1001 = vadd.f32 %v136, %v915
  %v1002 = vadd.f32 %v137, %v918
  %v1003 = vadd.f32 %v138, %v923
  %v1004 = vadd.f32 %v139, %v926
  %v1005 = vadd.f32 %v140, %v931
  %v1006 = vadd.f32 %v141, %v934
  %v1007 = vadd.f32 %v142, %v939
  %v1008 = vadd.f32 %v143, %v942
  %1009 = vst [vmem:[#allocation2] sm:$0xff] %v945
  %1010 = vst [vmem:[#allocation2 + $0x8] sm:$0xff] %v946
  %1011 = vst [vmem:[#allocation2 + $0x10] sm:$0xff] %v947
  %1012 = vst [vmem:[#allocation2 + $0x18] sm:$0xff] %v948
  %1013 = vst [vmem:[#allocation2 + $0x20] sm:$0xff] %v949
  %1014 = vst [vmem:[#allocation2 + $0x28] sm:$0xff] %v950
  %1015 = vst [vmem:[#allocation2 + $0x30] sm:$0xff] %v951
  %1016 = vst [vmem:[#allocation2 + $0x38] sm:$0xff] %v952
  %1017 = vst [vmem:[#allocation2 + $0x40] sm:$0xff] %v953
  %1018 = vst [vmem:[#allocation2 + $0x48] sm:$0xff] %v954
  %1019 = vst [vmem:[#allocation2 + $0x50] sm:$0xff] %v955
  %1020 = vst [vmem:[#allocation2 + $0x58] sm:$0xff] %v956
  %1021 = vst [vmem:[#allocation2 + $0x60] sm:$0xff] %v957
  %1022 = vst [vmem:[#allocation2 + $0x68] sm:$0xff] %v958
  %1023 = vst [vmem:[#allocation2 + $0x70] sm:$0xff] %v959
  %1024 = vst [vmem:[#allocation2 + $0x78] sm:$0xff] %v960
  %1025 = vst [vmem:[#allocation2 + $0x80] sm:$0xff] %v961
  %1026 = vst [vmem:[#allocation2 + $0x88] sm:$0xff] %v962
  %1027 = vst [vmem:[#allocation2 + $0x90] sm:$0xff] %v963
  %1028 = vst [vmem:[#allocation2 + $0x98] sm:$0xff] %v964
  %1029 = vst [vmem:[#allocation2 + $0xa0] sm:$0xff] %v965
  %1030 = vst [vmem:[#allocation2 + $0xa8] sm:$0xff] %v966
  %1031 = vst [vmem:[#allocation2 + $0xb0] sm:$0xff] %v967
  %1032 = vst [vmem:[#allocation2 + $0xb8] sm:$0xff] %v968
  %1033 = vst [vmem:[#allocation2 + $0xc0] sm:$0xff] %v969
  %1034 = vst [vmem:[#allocation2 + $0xc8] sm:$0xff] %v970
  %1035 = vst [vmem:[#allocation2 + $0xd0] sm:$0xff] %v971
  %1036 = vst [vmem:[#allocation2 + $0xd8] sm:$0xff] %v972
  %1037 = vst [vmem:[#allocation2 + $0xe0] sm:$0xff] %v973
  %1038 = vst [vmem:[#allocation2 + $0xe8] sm:$0xff] %v974
  %1039 = vst [vmem:[#allocation2 + $0xf0] sm:$0xff] %v975
  %1040 = vst [vmem:[#allocation2 + $0xf8] sm:$0xff] %v976
  %1041 = vst [vmem:[#allocation2 + $0x100] sm:$0xff] %v977
  %1042 = vst [vmem:[#allocation2 + $0x108] sm:$0xff] %v978
  %1043 = vst [vmem:[#allocation2 + $0x110] sm:$0xff] %v979
  %1044 = vst [vmem:[#allocation2 + $0x118] sm:$0xff] %v980
  %1045 = vst [vmem:[#allocation2 + $0x120] sm:$0xff] %v981
  %1046 = vst [vmem:[#allocation2 + $0x128] sm:$0xff] %v982
  %1047 = vst [vmem:[#allocation2 + $0x130] sm:$0xff] %v983
  %1048 = vst [vmem:[#allocation2 + $0x138] sm:$0xff] %v984
  %1049 = vst [vmem:[#allocation2 + $0x140] sm:$0xff] %v985
  %1050 = vst [vmem:[#allocation2 + $0x148] sm:$0xff] %v986
  %1051 = vst [vmem:[#allocation2 + $0x150] sm:$0xff] %v987
  %1052 = vst [vmem:[#allocation2 + $0x158] sm:$0xff] %v988
  %1053 = vst [vmem:[#allocation2 + $0x160] sm:$0xff] %v989
  %1054 = vst [vmem:[#allocation2 + $0x168] sm:$0xff] %v990
  %1055 = vst [vmem:[#allocation2 + $0x170] sm:$0xff] %v991
  %1056 = vst [vmem:[#allocation2 + $0x178] sm:$0xff] %v992
  %1057 = vst [vmem:[#allocation2 + $0x180] sm:$0xff] %v993
  %1058 = vst [vmem:[#allocation2 + $0x188] sm:$0xff] %v994
  %1059 = vst [vmem:[#allocation2 + $0x190] sm:$0xff] %v995
  %1060 = vst [vmem:[#allocation2 + $0x198] sm:$0xff] %v996
  %1061 = vst [vmem:[#allocation2 + $0x1a0] sm:$0xff] %v997
  %1062 = vst [vmem:[#allocation2 + $0x1a8] sm:$0xff] %v998
  %1063 = vst [vmem:[#allocation2 + $0x1b0] sm:$0xff] %v999
  %1064 = vst [vmem:[#allocation2 + $0x1b8] sm:$0xff] %v1000
  %1065 = vst [vmem:[#allocation2 + $0x1c0] sm:$0xff] %v1001
  %1066 = vst [vmem:[#allocation2 + $0x1c8] sm:$0xff] %v1002
  %1067 = vst [vmem:[#allocation2 + $0x1d0] sm:$0xff] %v1003
  %1068 = vst [vmem:[#allocation2 + $0x1d8] sm:$0xff] %v1004
  %1069 = vst [vmem:[#allocation2 + $0x1e0] sm:$0xff] %v1005
  %1070 = vst [vmem:[#allocation2 + $0x1e8] sm:$0xff] %v1006
  %1071 = vst [vmem:[#allocation2 + $0x1f0] sm:$0xff] %v1007
  %1072 = vst [vmem:[#allocation2 + $0x1f8] sm:$0xff] %v1008
  // Predicated region
  $region14: #{_lambda_.21} parent=0 // pred_check
    %p1073 = pneg %p12
  $region15: #{_lambda_.21} parent=0 // pred_check_branch
    %1075 = sbr.rel (%p1073) target = $region17
  $region16: #{_lambda_.21} parent=0 // pred_region
    %v1076 = vld [vmem:[#allocation2] sm:$0xff]
    %v1077 = vld [vmem:[#allocation2 + $0x8] sm:$0xff]
    %v1078 = vld [vmem:[#allocation2 + $0x10] sm:$0xff]
    %v1079 = vld [vmem:[#allocation2 + $0x18] sm:$0xff]
    %v1080 = vld [vmem:[#allocation2 + $0x20] sm:$0xff]
    %v1081 = vld [vmem:[#allocation2 + $0x28] sm:$0xff]
    %v1082 = vld [vmem:[#allocation2 + $0x30] sm:$0xff]
    %v1083 = vld [vmem:[#allocation2 + $0x38] sm:$0xff]
    %v1084 = vld [vmem:[#allocation2 + $0x40] sm:$0xff]
    %v1085 = vld [vmem:[#allocation2 + $0x48] sm:$0xff]
    %v1086 = vld [vmem:[#allocation2 + $0x50] sm:$0xff]
    %v1087 = vld [vmem:[#allocation2 + $0x58] sm:$0xff]
    %v1088 = vld [vmem:[#allocation2 + $0x60] sm:$0xff]
    %v1089 = vld [vmem:[#allocation2 + $0x68] sm:$0xff]
    %v1090 = vld [vmem:[#allocation2 + $0x70] sm:$0xff]
    %v1091 = vld [vmem:[#allocation2 + $0x78] sm:$0xff]
    %v1092 = vld [vmem:[#allocation2 + $0x80] sm:$0xff]
    %v1093 = vld [vmem:[#allocation2 + $0x88] sm:$0xff]
    %v1094 = vld [vmem:[#allocation2 + $0x90] sm:$0xff]
    %v1095 = vld [vmem:[#allocation2 + $0x98] sm:$0xff]
    %v1096 = vld [vmem:[#allocation2 + $0xa0] sm:$0xff]
    %v1097 = vld [vmem:[#allocation2 + $0xa8] sm:$0xff]
    %v1098 = vld [vmem:[#allocation2 + $0xb0] sm:$0xff]
    %v1099 = vld [vmem:[#allocation2 + $0xb8] sm:$0xff]
    %v1100 = vld [vmem:[#allocation2 + $0xc0] sm:$0xff]
    %v1101 = vld [vmem:[#allocation2 + $0xc8] sm:$0xff]
    %v1102 = vld [vmem:[#allocation2 + $0xd0] sm:$0xff]
    %v1103 = vld [vmem:[#allocation2 + $0xd8] sm:$0xff]
    %v1104 = vld [vmem:[#allocation2 + $0xe0] sm:$0xff]
    %v1105 = vld [vmem:[#allocation2 + $0xe8] sm:$0xff]
    %v1106 = vld [vmem:[#allocation2 + $0xf0] sm:$0xff]
    %v1107 = vld [vmem:[#allocation2 + $0xf8] sm:$0xff]
    %v1108 = vld [vmem:[#allocation2 + $0x100] sm:$0xff]
    %v1109 = vld [vmem:[#allocation2 + $0x108] sm:$0xff]
    %v1110 = vld [vmem:[#allocation2 + $0x110] sm:$0xff]
    %v1111 = vld [vmem:[#allocation2 + $0x118] sm:$0xff]
    %v1112 = vld [vmem:[#allocation2 + $0x120] sm:$0xff]
    %v1113 = vld [vmem:[#allocation2 + $0x128] sm:$0xff]
    %v1114 = vld [vmem:[#allocation2 + $0x130] sm:$0xff]
    %v1115 = vld [vmem:[#allocation2 + $0x138] sm:$0xff]
    %v1116 = vld [vmem:[#allocation2 + $0x140] sm:$0xff]
    %v1117 = vld [vmem:[#allocation2 + $0x148] sm:$0xff]
    %v1118 = vld [vmem:[#allocation2 + $0x150] sm:$0xff]
    %v1119 = vld [vmem:[#allocation2 + $0x158] sm:$0xff]
    %v1120 = vld [vmem:[#allocation2 + $0x160] sm:$0xff]
    %v1121 = vld [vmem:[#allocation2 + $0x168] sm:$0xff]
    %v1122 = vld [vmem:[#allocation2 + $0x170] sm:$0xff]
    %v1123 = vld [vmem:[#allocation2 + $0x178] sm:$0xff]
    %v1124 = vld [vmem:[#allocation2 + $0x180] sm:$0xff]
    %v1125 = vld [vmem:[#allocation2 + $0x188] sm:$0xff]
    %v1126 = vld [vmem:[#allocation2 + $0x190] sm:$0xff]
    %v1127 = vld [vmem:[#allocation2 + $0x198] sm:$0xff]
    %v1128 = vld [vmem:[#allocation2 + $0x1a0] sm:$0xff]
    %v1129 = vld [vmem:[#allocation2 + $0x1a8] sm:$0xff]
    %v1130 = vld [vmem:[#allocation2 + $0x1b0] sm:$0xff]
    %v1131 = vld [vmem:[#allocation2 + $0x1b8] sm:$0xff]
    %v1132 = vld [vmem:[#allocation2 + $0x1c0] sm:$0xff]
    %v1133 = vld [vmem:[#allocation2 + $0x1c8] sm:$0xff]
    %v1134 = vld [vmem:[#allocation2 + $0x1d0] sm:$0xff]
    %v1135 = vld [vmem:[#allocation2 + $0x1d8] sm:$0xff]
    %v1136 = vld [vmem:[#allocation2 + $0x1e0] sm:$0xff]
    %v1137 = vld [vmem:[#allocation2 + $0x1e8] sm:$0xff]
    %v1138 = vld [vmem:[#allocation2 + $0x1f0] sm:$0xff]
    %v1139 = vld [vmem:[#allocation2 + $0x1f8] sm:$0xff]
    %v1140 = vtanh.pop %v1076
    %v1141 = vtanh.pop %v1077
    %v1142 = vtanh.pop %v1078
    %v1143 = vtanh.pop %v1079
    %v1144 = vtanh.pop %v1080
    %v1145 = vtanh.pop %v1081
    %v1146 = vtanh.pop %v1082
    %v1147 = vtanh.pop %v1083
    %v1148 = vtanh.pop %v1084
    %v1149 = vtanh.pop %v1085
    %v1150 = vtanh.pop %v1086
    %v1151 = vtanh.pop %v1087
    %v1152 = vtanh.pop %v1088
    %v1153 = vtanh.pop %v1089
    %v1154 = vtanh.pop %v1090
    %v1155 = vtanh.pop %v1091
    %v1156 = vtanh.pop %v1092
    %v1157 = vtanh.pop %v1093
    %v1158 = vtanh.pop %v1094
    %v1159 = vtanh.pop %v1095
    %v1160 = vtanh.pop %v1096
    %v1161 = vtanh.pop %v1097
    %v1162 = vtanh.pop %v1098
    %v1163 = vtanh.pop %v1099
    %v1164 = vtanh.pop %v1100
    %v1165 = vtanh.pop %v1101
    %v1166 = vtanh.pop %v1102
    %v1167 = vtanh.pop %v1103
    %v1168 = vtanh.pop %v1104
    %v1169 = vtanh.pop %v1105
    %v1170 = vtanh.pop %v1106
    %v1171 = vtanh.pop %v1107
    %v1172 = vtanh.pop %v1108
    %v1173 = vtanh.pop %v1109
    %v1174 = vtanh.pop %v1110
    %v1175 = vtanh.pop %v1111
    %v1176 = vtanh.pop %v1112
    %v1177 = vtanh.pop %v1113
    %v1178 = vtanh.pop %v1114
    %v1179 = vtanh.pop %v1115
    %v1180 = vtanh.pop %v1116
    %v1181 = vtanh.pop %v1117
    %v1182 = vtanh.pop %v1118
    %v1183 = vtanh.pop %v1119
    %v1184 = vtanh.pop %v1120
    %v1185 = vtanh.pop %v1121
    %v1186 = vtanh.pop %v1122
    %v1187 = vtanh.pop %v1123
    %v1188 = vtanh.pop %v1124
    %v1189 = vtanh.pop %v1125
    %v1190 = vtanh.pop %v1126
    %v1191 = vtanh.pop %v1127
    %v1192 = vtanh.pop %v1128
    %v1193 = vtanh.pop %v1129
    %v1194 = vtanh.pop %v1130
    %v1195 = vtanh.pop %v1131
    %v1196 = vtanh.pop %v1132
    %v1197 = vtanh.pop %v1133
    %v1198 = vtanh.pop %v1134
    %v1199 = vtanh.pop %v1135
    %v1200 = vtanh.pop %v1136
    %v1201 = vtanh.pop %v1137
    %v1202 = vtanh.pop %v1138
    %v1203 = vtanh.pop %v1139
    %v1204 = vpack.c.bf16 %v1141, %v1140
    %v1205 = vpack.c.bf16 %v1143, %v1142
    %v1206 = vpack.c.bf16 %v1145, %v1144
    %v1207 = vpack.c.bf16 %v1147, %v1146
    %v1208 = vpack.c.bf16 %v1149, %v1148
    %v1209 = vpack.c.bf16 %v1151, %v1150
    %v1210 = vpack.c.bf16 %v1153, %v1152
    %v1211 = vpack.c.bf16 %v1155, %v1154
    %v1212 = vpack.c.bf16 %v1157, %v1156
    %v1213 = vpack.c.bf16 %v1159, %v1158
    %v1214 = vpack.c.bf16 %v1161, %v1160
    %v1215 = vpack.c.bf16 %v1163, %v1162
    %v1216 = vpack.c.bf16 %v1165, %v1164
    %v1217 = vpack.c.bf16 %v1167, %v1166
    %v1218 = vpack.c.bf16 %v1169, %v1168
    %v1219 = vpack.c.bf16 %v1171, %v1170
    %v1220 = vpack.c.bf16 %v1173, %v1172
    %v1221 = vpack.c.bf16 %v1175, %v1174
    %v1222 = vpack.c.bf16 %v1177, %v1176
    %v1223 = vpack.c.bf16 %v1179, %v1178
    %v1224 = vpack.c.bf16 %v1181, %v1180
    %v1225 = vpack.c.bf16 %v1183, %v1182
    %v1226 = vpack.c.bf16 %v1185, %v1184
    %v1227 = vpack.c.bf16 %v1187, %v1186
    %v1228 = vpack.c.bf16 %v1189, %v1188
    %v1229 = vpack.c.bf16 %v1191, %v1190
    %v1230 = vpack.c.bf16 %v1193, %v1192
    %v1231 = vpack.c.bf16 %v1195, %v1194
    %v1232 = vpack.c.bf16 %v1197, %v1196
    %v1233 = vpack.c.bf16 %v1199, %v1198
    %v1234 = vpack.c.bf16 %v1201, %v1200
    %v1235 = vpack.c.bf16 %v1203, %v1202
    %v1268 = vunpack.c.l.b16 %v1204
    %v1269 = vunpack.c.h.b16 %v1204
    %v1270 = vunpack.c.l.b16 %v1205
    %v1271 = vunpack.c.h.b16 %v1205
    %v1272 = vunpack.c.l.b16 %v1206
    %v1273 = vunpack.c.h.b16 %v1206
    %v1274 = vunpack.c.l.b16 %v1207
    %v1275 = vunpack.c.h.b16 %v1207
    %v1276 = vunpack.c.l.b16 %v1208
    %v1277 = vunpack.c.h.b16 %v1208
    %v1278 = vunpack.c.l.b16 %v1209
    %v1279 = vunpack.c.h.b16 %v1209
    %v1280 = vunpack.c.l.b16 %v1210
    %v1281 = vunpack.c.h.b16 %v1210
    %v1282 = vunpack.c.l.b16 %v1211
    %v1283 = vunpack.c.h.b16 %v1211
    %v1284 = vunpack.c.l.b16 %v1212
    %v1285 = vunpack.c.h.b16 %v1212
    %v1286 = vunpack.c.l.b16 %v1213
    %v1287 = vunpack.c.h.b16 %v1213
    %v1288 = vunpack.c.l.b16 %v1214
    %v1289 = vunpack.c.h.b16 %v1214
    %v1290 = vunpack.c.l.b16 %v1215
    %v1291 = vunpack.c.h.b16 %v1215
    %v1292 = vunpack.c.l.b16 %v1216
    %v1293 = vunpack.c.h.b16 %v1216
    %v1294 = vunpack.c.l.b16 %v1217
    %v1295 = vunpack.c.h.b16 %v1217
    %v1296 = vunpack.c.l.b16 %v1218
    %v1297 = vunpack.c.h.b16 %v1218
    %v1298 = vunpack.c.l.b16 %v1219
    %v1299 = vunpack.c.h.b16 %v1219
    %v1300 = vunpack.c.l.b16 %v1220
    %v1301 = vunpack.c.h.b16 %v1220
    %v1302 = vunpack.c.l.b16 %v1221
    %v1303 = vunpack.c.h.b16 %v1221
    %v1304 = vunpack.c.l.b16 %v1222
    %v1305 = vunpack.c.h.b16 %v1222
    %v1306 = vunpack.c.l.b16 %v1223
    %v1307 = vunpack.c.h.b16 %v1223
    %v1308 = vunpack.c.l.b16 %v1224
    %v1309 = vunpack.c.h.b16 %v1224
    %v1310 = vunpack.c.l.b16 %v1225
    %v1311 = vunpack.c.h.b16 %v1225
    %v1312 = vunpack.c.l.b16 %v1226
    %v1313 = vunpack.c.h.b16 %v1226
    %v1314 = vunpack.c.l.b16 %v1227
    %v1315 = vunpack.c.h.b16 %v1227
    %v1316 = vunpack.c.l.b16 %v1228
    %v1317 = vunpack.c.h.b16 %v1228
    %v1318 = vunpack.c.l.b16 %v1229
    %v1319 = vunpack.c.h.b16 %v1229
    %v1320 = vunpack.c.l.b16 %v1230
    %v1321 = vunpack.c.h.b16 %v1230
    %v1322 = vunpack.c.l.b16 %v1231
    %v1323 = vunpack.c.h.b16 %v1231
    %v1324 = vunpack.c.l.b16 %v1232
    %v1325 = vunpack.c.h.b16 %v1232
    %v1326 = vunpack.c.l.b16 %v1233
    %v1327 = vunpack.c.h.b16 %v1233
    %v1328 = vunpack.c.l.b16 %v1234
    %v1329 = vunpack.c.h.b16 %v1234
    %v1330 = vunpack.c.l.b16 %v1235
    %v1331 = vunpack.c.h.b16 %v1235
    %v1332 = vpack.c.b16 %v1268, %v1268
    %v1333 = vpack.c.b16 %v1269, %v1269
    %v1334 = vpack.c.b16 %v1270, %v1270
    %v1335 = vpack.c.b16 %v1271, %v1271
    %v1336 = vpack.c.b16 %v1272, %v1272
    %v1337 = vpack.c.b16 %v1273, %v1273
    %v1338 = vpack.c.b16 %v1274, %v1274
    %v1339 = vpack.c.b16 %v1275, %v1275
    %v1340 = vpack.c.b16 %v1276, %v1276
    %v1341 = vpack.c.b16 %v1277, %v1277
    %v1342 = vpack.c.b16 %v1278, %v1278
    %v1343 = vpack.c.b16 %v1279, %v1279
    %v1344 = vpack.c.b16 %v1280, %v1280
    %v1345 = vpack.c.b16 %v1281, %v1281
    %v1346 = vpack.c.b16 %v1282, %v1282
    %v1347 = vpack.c.b16 %v1283, %v1283
    %v1348 = vpack.c.b16 %v1284, %v1284
    %v1349 = vpack.c.b16 %v1285, %v1285
    %v1350 = vpack.c.b16 %v1286, %v1286
    %v1351 = vpack.c.b16 %v1287, %v1287
    %v1352 = vpack.c.b16 %v1288, %v1288
    %v1353 = vpack.c.b16 %v1289, %v1289
    %v1354 = vpack.c.b16 %v1290, %v1290
    %v1355 = vpack.c.b16 %v1291, %v1291
    %v1356 = vpack.c.b16 %v1292, %v1292
    %v1357 = vpack.c.b16 %v1293, %v1293
    %v1358 = vpack.c.b16 %v1294, %v1294
    %v1359 = vpack.c.b16 %v1295, %v1295
    %v1360 = vpack.c.b16 %v1296, %v1296
    %v1361 = vpack.c.b16 %v1297, %v1297
    %v1362 = vpack.c.b16 %v1298, %v1298
    %v1363 = vpack.c.b16 %v1299, %v1299
    %v1364 = vpack.c.b16 %v1300, %v1300
    %v1365 = vpack.c.b16 %v1301, %v1301
    %v1366 = vpack.c.b16 %v1302, %v1302
    %v1367 = vpack.c.b16 %v1303, %v1303
    %v1368 = vpack.c.b16 %v1304, %v1304
    %v1369 = vpack.c.b16 %v1305, %v1305
    %v1370 = vpack.c.b16 %v1306, %v1306
    %v1371 = vpack.c.b16 %v1307, %v1307
    %v1372 = vpack.c.b16 %v1308, %v1308
    %v1373 = vpack.c.b16 %v1309, %v1309
    %v1374 = vpack.c.b16 %v1310, %v1310
    %v1375 = vpack.c.b16 %v1311, %v1311
    %v1376 = vpack.c.b16 %v1312, %v1312
    %v1377 = vpack.c.b16 %v1313, %v1313
    %v1378 = vpack.c.b16 %v1314, %v1314
    %v1379 = vpack.c.b16 %v1315, %v1315
    %v1380 = vpack.c.b16 %v1316, %v1316
    %v1381 = vpack.c.b16 %v1317, %v1317
    %v1382 = vpack.c.b16 %v1318, %v1318
    %v1383 = vpack.c.b16 %v1319, %v1319
    %v1384 = vpack.c.b16 %v1320, %v1320
    %v1385 = vpack.c.b16 %v1321, %v1321
    %v1386 = vpack.c.b16 %v1322, %v1322
    %v1387 = vpack.c.b16 %v1323, %v1323
    %v1388 = vpack.c.b16 %v1324, %v1324
    %v1389 = vpack.c.b16 %v1325, %v1325
    %v1390 = vpack.c.b16 %v1326, %v1326
    %v1391 = vpack.c.b16 %v1327, %v1327
    %v1392 = vpack.c.b16 %v1328, %v1328
    %v1393 = vpack.c.b16 %v1329, %v1329
    %v1394 = vpack.c.b16 %v1330, %v1330
    %v1395 = vpack.c.b16 %v1331, %v1331
    %1460 = vst [vmem:[%s2] sm:$0xf] %v1332
    %1461 = vst [vmem:[%s2 + $0x4] sm:$0xf] %v1333
    %1462 = vst [vmem:[%s2 + $0x8] sm:$0xf] %v1334
    %1463 = vst [vmem:[%s2 + $0xc] sm:$0xf] %v1335
    %1464 = vst [vmem:[%s2 + $0x10] sm:$0xf] %v1336
    %1465 = vst [vmem:[%s2 + $0x14] sm:$0xf] %v1337
    %1466 = vst [vmem:[%s2 + $0x18] sm:$0xf] %v1338
    %1467 = vst [vmem:[%s2 + $0x1c] sm:$0xf] %v1339
    %1468 = vst [vmem:[%s2 + $0x20] sm:$0xf] %v1340
    %1469 = vst [vmem:[%s2 + $0x24] sm:$0xf] %v1341
    %1470 = vst [vmem:[%s2 + $0x28] sm:$0xf] %v1342
    %1471 = vst [vmem:[%s2 + $0x2c] sm:$0xf] %v1343
    %1472 = vst [vmem:[%s2 + $0x30] sm:$0xf] %v1344
    %1473 = vst [vmem:[%s2 + $0x34] sm:$0xf] %v1345
    %1474 = vst [vmem:[%s2 + $0x38] sm:$0xf] %v1346
    %1475 = vst [vmem:[%s2 + $0x3c] sm:$0xf] %v1347
    %1476 = vst [vmem:[%s2 + $0x40] sm:$0xf] %v1348
    %1477 = vst [vmem:[%s2 + $0x44] sm:$0xf] %v1349
    %1478 = vst [vmem:[%s2 + $0x48] sm:$0xf] %v1350
    %1479 = vst [vmem:[%s2 + $0x4c] sm:$0xf] %v1351
    %1480 = vst [vmem:[%s2 + $0x50] sm:$0xf] %v1352
    %1481 = vst [vmem:[%s2 + $0x54] sm:$0xf] %v1353
    %1482 = vst [vmem:[%s2 + $0x58] sm:$0xf] %v1354
    %1483 = vst [vmem:[%s2 + $0x5c] sm:$0xf] %v1355
    %1484 = vst [vmem:[%s2 + $0x60] sm:$0xf] %v1356
    %1485 = vst [vmem:[%s2 + $0x64] sm:$0xf] %v1357
    %1486 = vst [vmem:[%s2 + $0x68] sm:$0xf] %v1358
    %1487 = vst [vmem:[%s2 + $0x6c] sm:$0xf] %v1359
    %1488 = vst [vmem:[%s2 + $0x70] sm:$0xf] %v1360
    %1489 = vst [vmem:[%s2 + $0x74] sm:$0xf] %v1361
    %1490 = vst [vmem:[%s2 + $0x78] sm:$0xf] %v1362
    %1491 = vst [vmem:[%s2 + $0x7c] sm:$0xf] %v1363
    %1492 = vst [vmem:[%s2 + $0x80] sm:$0xf] %v1364
    %1493 = vst [vmem:[%s2 + $0x84] sm:$0xf] %v1365
    %1494 = vst [vmem:[%s2 + $0x88] sm:$0xf] %v1366
    %1495 = vst [vmem:[%s2 + $0x8c] sm:$0xf] %v1367
    %1496 = vst [vmem:[%s2 + $0x90] sm:$0xf] %v1368
    %1497 = vst [vmem:[%s2 + $0x94] sm:$0xf] %v1369
    %1498 = vst [vmem:[%s2 + $0x98] sm:$0xf] %v1370
    %1499 = vst [vmem:[%s2 + $0x9c] sm:$0xf] %v1371
    %1500 = vst [vmem:[%s2 + $0xa0] sm:$0xf] %v1372
    %1501 = vst [vmem:[%s2 + $0xa4] sm:$0xf] %v1373
    %1502 = vst [vmem:[%s2 + $0xa8] sm:$0xf] %v1374
    %1503 = vst [vmem:[%s2 + $0xac] sm:$0xf] %v1375
    %1504 = vst [vmem:[%s2 + $0xb0] sm:$0xf] %v1376
    %1505 = vst [vmem:[%s2 + $0xb4] sm:$0xf] %v1377
    %1506 = vst [vmem:[%s2 + $0xb8] sm:$0xf] %v1378
    %1507 = vst [vmem:[%s2 + $0xbc] sm:$0xf] %v1379
    %1508 = vst [vmem:[%s2 + $0xc0] sm:$0xf] %v1380
    %1509 = vst [vmem:[%s2 + $0xc4] sm:$0xf] %v1381
    %1510 = vst [vmem:[%s2 + $0xc8] sm:$0xf] %v1382
    %1511 = vst [vmem:[%s2 + $0xcc] sm:$0xf] %v1383
    %1512 = vst [vmem:[%s2 + $0xd0] sm:$0xf] %v1384
    %1513 = vst [vmem:[%s2 + $0xd4] sm:$0xf] %v1385
    %1514 = vst [vmem:[%s2 + $0xd8] sm:$0xf] %v1386
    %1515 = vst [vmem:[%s2 + $0xdc] sm:$0xf] %v1387
    %1516 = vst [vmem:[%s2 + $0xe0] sm:$0xf] %v1388
    %1517 = vst [vmem:[%s2 + $0xe4] sm:$0xf] %v1389
    %1518 = vst [vmem:[%s2 + $0xe8] sm:$0xf] %v1390
    %1519 = vst [vmem:[%s2 + $0xec] sm:$0xf] %v1391
    %1520 = vst [vmem:[%s2 + $0xf0] sm:$0xf] %v1392
    %1521 = vst [vmem:[%s2 + $0xf4] sm:$0xf] %v1393
    %1522 = vst [vmem:[%s2 + $0xf8] sm:$0xf] %v1394
    %1523 = vst [vmem:[%s2 + $0xfc] sm:$0xf] %v1395
  $region17: #{_lambda_.21} parent=0 // pred_fallthru
    _
  // Predicated region
  $region18: #{_lambda_.21} parent=0 // pred_check
    _
  $region19: #{_lambda_.21} parent=0 // pred_check_branch
    %1525 = sbr.rel (0) target = $region21
  $region20: #{_lambda_.21} parent=0 // pred_region
    _
  $region21: #{_lambda_.21} parent=0 // pred_fallthru
    _
  // Predicated region
  $region22: #{_lambda_.21} parent=0 // pred_check
    _
  $region23: #{_lambda_.21} parent=0 // pred_check_branch
    %1527 = sbr.rel (0) target = $region25
  $region24: #{_lambda_.21} parent=0 // pred_region
    _
  $region25: #{_lambda_.21} parent=0 // pred_fallthru
    _

</llo_original>
